<compile_context>
chip_gen: v7x
topology: tpu7x:2x2x1
jax: 0.10.0
libtpu: 0.0.40
codegen_flags: <defaults>
</compile_context>

<pallas_src>
import math

import jax
import jax.numpy as jnp
from jax import lax
from jax.experimental import pallas as pl
from jax.experimental.pallas import tpu as pltpu

D_MODEL = 32
N_HEADS = 4
D_K = D_MODEL // N_HEADS
D_FF = 64
N_LAYERS = 2
EPS = 1e-6
_ATTN_SCALE = 1.0 / math.sqrt(D_K)


# ----------------------------- Fused encoder kernel -----------------------------

def _layer_norm(v, a, b):
    """Matches the torch LayerNorm in the spec: unbiased std, denom = std + eps."""
    mean = jnp.mean(v, axis=-1, keepdims=True)
    diff = v - mean
    var_unbiased = jnp.sum(diff * diff, axis=-1, keepdims=True) * (1.0 / (D_MODEL - 1))
    std = jnp.sqrt(var_unbiased)
    inv = pl.reciprocal(std + EPS, approx=True)   # EUP slot (co-issues with VPU work)
    return a * diff * inv + b


def _encoder_kernel(x_ref, bias_ref, wqkv_ref, bqkv_ref, wo_ref, bo_ref,
                    w1_ref, b1_ref, w2_ref, b2_ref, lna_ref, lnb_ref, o_ref):
    # Per-batch block: x (1, S, D) -> (S, D); additive mask bias (1, 1, S) -> (1, S).
    x0 = x_ref[0]                      # (S, D)
    bias = bias_ref[0]                 # (1, S), 0 where keep, -1e9 where masked

    # Weights (shared across layers; VMEM resident, loaded once).
    wo = wo_ref[...]                   # (D, D)
    bo = bo_ref[...]                   # (1, D)
    w1 = w1_ref[...]                   # (D, D_FF)
    b1 = b1_ref[...]                   # (1, D_FF)
    w2 = w2_ref[...]                   # (D_FF, D)
    b2 = b2_ref[...]                   # (1, D)
    ln1_a = lna_ref[0]                 # (1, D)
    ln1_b = lnb_ref[0]
    ln2_a = lna_ref[1]
    ln2_b = lnb_ref[1]
    fin_a = lna_ref[2]
    fin_b = lnb_ref[2]

    def layer_body(_, xc):
        # ---- self-attention sublayer:  x + MHA(LN(x)) ----
        xn = _layer_norm(xc, ln1_a, ln1_b)                      # (S, D)

        head_out = None
        for h in range(N_HEADS):                                # static, fully unrolled
            wq = wqkv_ref[0, h]                                  # (D, D_K)
            wk = wqkv_ref[1, h]
            wv = wqkv_ref[2, h]
            bq = bqkv_ref[0, h]                                  # (1, D_K)
            bk = bqkv_ref[1, h]
            bv = bqkv_ref[2, h]

            q = jnp.dot(xn, wq, preferred_element_type=jnp.float32) + bq   # (S, D_K)
            k = jnp.dot(xn, wk, preferred_element_type=jnp.float32) + bk
            v = jnp.dot(xn, wv, preferred_element_type=jnp.float32) + bv

            s = jnp.dot(q, k.T, preferred_element_type=jnp.float32) * _ATTN_SCALE + bias
            s_max = jnp.max(s, axis=-1, keepdims=True)
            p = jnp.exp(s - s_max)
            p = p * pl.reciprocal(jnp.sum(p, axis=-1, keepdims=True), approx=True)
            ctx = jnp.dot(p, v, preferred_element_type=jnp.float32)         # (S, D_K)

            # concat-heads-then-project  ==  sum_h ctx_h @ Wo[h*Dk:(h+1)*Dk, :]
            contrib = jnp.dot(ctx, wo[h * D_K:(h + 1) * D_K, :],
                              preferred_element_type=jnp.float32)           # (S, D)
            head_out = contrib if head_out is None else head_out + contrib

        xc = xc + head_out + bo

        # ---- feed-forward sublayer:  x + FFN(LN(x)) ----
        xn2 = _layer_norm(xc, ln2_a, ln2_b)
        hmid = jnp.maximum(
            jnp.dot(xn2, w1, preferred_element_type=jnp.float32) + b1, 0.0)
        ff = jnp.dot(hmid, w2, preferred_element_type=jnp.float32) + b2
        return xc + ff

    # TODO(synk): dropout inside SublayerConnection is omitted (inference semantics).
    xf = lax.fori_loop(0, N_LAYERS, layer_body, x0)

    # Encoder's final LayerNorm.
    o_ref[0] = _layer_norm(xf, fin_a, fin_b)


# ----------------------------- Host-side wrappers -----------------------------

def pack_params(p, norm_a, norm_b):
    """Pack weights into kernel-friendly, leading-axis-indexable stacks (done once)."""
    def split_heads_w(w):   # (D, D) -> (H, D, D_K)
        return w.reshape(D_MODEL, N_HEADS, D_K).transpose(1, 0, 2)

    def split_heads_b(b):   # (1, D) -> (H, 1, D_K)
        return b.reshape(1, N_HEADS, D_K).transpose(1, 0, 2)

    w_qkv = jnp.stack([split_heads_w(p["wq"]),
                       split_heads_w(p["wk"]),
                       split_heads_w(p["wv"])])                   # (3, H, D, D_K)
    b_qkv = jnp.stack([split_heads_b(p["bq"]),
                       split_heads_b(p["bk"]),
                       split_heads_b(p["bv"])])                   # (3, H, 1, D_K)
    ln_a = jnp.stack([p["ln1_a"], p["ln2_a"], norm_a])            # (3, 1, D)
    ln_b = jnp.stack([p["ln1_b"], p["ln2_b"], norm_b])            # (3, 1, D)

    return {
        "w_qkv": w_qkv, "b_qkv": b_qkv,
        "wo": p["wo"], "bo": p["bo"],
        "w1": p["w1"], "b1": p["b1"],
        "w2": p["w2"], "b2": p["b2"],
        "ln_a": ln_a, "ln_b": ln_b,
    }


def _replicated_spec(arr):
    shape = arr.shape
    return pl.BlockSpec(shape, lambda b, _n=len(shape): (0,) * _n)


def encoder_forward(x, mask, packed):
    """Whole Encoder.forward in a single fused pallas_call."""
    B, S, D = x.shape
    assert D == D_MODEL

    # Additive mask bias, computed once (layer-invariant): -1e9 where mask == 0.
    mask_bias = jnp.where(mask == 0, jnp.float32(-1e9), jnp.float32(0.0))   # (B, 1, S)

    in_specs = [
        pl.BlockSpec((1, S, D_MODEL), lambda b: (b, 0, 0)),     # x
        pl.BlockSpec((1, 1, S), lambda b: (b, 0, 0)),           # mask bias
        _replicated_spec(packed["w_qkv"]),
        _replicated_spec(packed["b_qkv"]),
        _replicated_spec(packed["wo"]),
        _replicated_spec(packed["bo"]),
        _replicated_spec(packed["w1"]),
        _replicated_spec(packed["b1"]),
        _replicated_spec(packed["w2"]),
        _replicated_spec(packed["b2"]),
        _replicated_spec(packed["ln_a"]),
        _replicated_spec(packed["ln_b"]),
    ]

    out = pl.pallas_call(
        _encoder_kernel,
        out_shape=jax.ShapeDtypeStruct((B, S, D_MODEL), jnp.float32),
        grid=(B,),
        in_specs=in_specs,
        out_specs=pl.BlockSpec((1, S, D_MODEL), lambda b: (b, 0, 0)),
        compiler_params=pltpu.CompilerParams(
            dimension_semantics=("parallel",)),     # lets v7x's 2 TCs split the batch
    )(x, mask_bias,
      packed["w_qkv"], packed["b_qkv"],
      packed["wo"], packed["bo"],
      packed["w1"], packed["b1"],
      packed["w2"], packed["b2"],
      packed["ln_a"], packed["ln_b"])
    return out


# ----------------------------- Parameter construction -----------------------------

def make_params(key):
    ks = jax.random.split(key, 12)

    def w(k, shape, scale=0.1):
        return (scale * jax.random.normal(k, shape)).astype(jnp.float32)

    # clones() deepcopies one freshly initialized layer => all N layers share these.
    return {
        "wq": w(ks[0], (D_MODEL, D_MODEL)), "bq": w(ks[1], (1, D_MODEL), 0.01),
        "wk": w(ks[2], (D_MODEL, D_MODEL)), "bk": w(ks[3], (1, D_MODEL), 0.01),
        "wv": w(ks[4], (D_MODEL, D_MODEL)), "bv": w(ks[5], (1, D_MODEL), 0.01),
        "wo": w(ks[6], (D_MODEL, D_MODEL)), "bo": w(ks[7], (1, D_MODEL), 0.01),
        "w1": w(ks[8], (D_MODEL, D_FF)),    "b1": w(ks[9], (1, D_FF), 0.01),
        "w2": w(ks[10], (D_FF, D_MODEL)),   "b2": w(ks[11], (1, D_MODEL), 0.01),
        # LayerNorm params init like nn.Parameter(torch.ones/zeros)
        "ln1_a": jnp.ones((1, D_MODEL), jnp.float32),
        "ln1_b": jnp.zeros((1, D_MODEL), jnp.float32),
        "ln2_a": jnp.ones((1, D_MODEL), jnp.float32),
        "ln2_b": jnp.zeros((1, D_MODEL), jnp.float32),
    }


# ----------------------------- Main -----------------------------

if __name__ == "__main__":
    B, S = 2, 8
    key = jax.random.PRNGKey(0)
    k_param, k_x = jax.random.split(key)

    layer_params = make_params(k_param)
    norm_a = jnp.ones((1, D_MODEL), jnp.float32)    # Encoder.norm.a2
    norm_b = jnp.zeros((1, D_MODEL), jnp.float32)   # Encoder.norm.b2
    packed = pack_params(layer_params, norm_a, norm_b)   # packed once, VMEM-resident in kernel

    x = jax.random.normal(k_x, (B, S, D_MODEL), dtype=jnp.float32)
    # mask: keep everything in batch 0; mask out last 2 key positions of batch 1
    mask = jnp.ones((B, 1, S), dtype=jnp.float32).at[1, 0, 6:].set(0.0)

    fwd = jax.jit(encoder_forward)
    out = fwd(x, mask, packed)
    out = jax.block_until_ready(out)
    assert out.shape == (B, S, D_MODEL)
    assert bool(jnp.all(jnp.isfinite(out)))
    print("KERNEL_OK")
</pallas_src>

<mosaic_0001>
module attributes {stable_mosaic.version = 11 : i64} {
  func.func @_encoder_kernel(%arg0: i32, %arg1: memref<1x8x32xf32, #tpu.memory_space<vmem>>, %arg2: memref<1x1x8xf32, #tpu.memory_space<vmem>>, %arg3: memref<3x4x32x8xf32, #tpu.memory_space<vmem>>, %arg4: memref<3x4x1x8xf32, #tpu.memory_space<vmem>>, %arg5: memref<32x32xf32, #tpu.memory_space<vmem>>, %arg6: memref<1x32xf32, #tpu.memory_space<vmem>>, %arg7: memref<32x64xf32, #tpu.memory_space<vmem>>, %arg8: memref<1x64xf32, #tpu.memory_space<vmem>>, %arg9: memref<64x32xf32, #tpu.memory_space<vmem>>, %arg10: memref<1x32xf32, #tpu.memory_space<vmem>>, %arg11: memref<3x1x32xf32, #tpu.memory_space<vmem>>, %arg12: memref<3x1x32xf32, #tpu.memory_space<vmem>>, %arg13: memref<1x8x32xf32, #tpu.memory_space<vmem>>) attributes {dimension_semantics = [#tpu.dimension_semantics<parallel>], iteration_bounds = array<i64: 2>, scalar_prefetch = 0 : i64, scratch_operands = 0 : i64, tpu.core_type = #tpu.core_type<tc>, window_params = [{transform_indices = @transform_0, window_bounds = array<i64: 1, 8, 32>}, {transform_indices = @transform_1, window_bounds = array<i64: 1, 1, 8>}, {pipeline_mode = #tpu.pipeline_mode<synchronous>, transform_indices = @transform_2, window_bounds = array<i64: 3, 4, 32, 8>}, {pipeline_mode = #tpu.pipeline_mode<synchronous>, transform_indices = @transform_3, window_bounds = array<i64: 3, 4, 1, 8>}, {pipeline_mode = #tpu.pipeline_mode<synchronous>, transform_indices = @transform_4, window_bounds = array<i64: 32, 32>}, {pipeline_mode = #tpu.pipeline_mode<synchronous>, transform_indices = @transform_5, window_bounds = array<i64: 1, 32>}, {pipeline_mode = #tpu.pipeline_mode<synchronous>, transform_indices = @transform_6, window_bounds = array<i64: 32, 64>}, {pipeline_mode = #tpu.pipeline_mode<synchronous>, transform_indices = @transform_7, window_bounds = array<i64: 1, 64>}, {pipeline_mode = #tpu.pipeline_mode<synchronous>, transform_indices = @transform_8, window_bounds = array<i64: 64, 32>}, {pipeline_mode = #tpu.pipeline_mode<synchronous>, transform_indices = @transform_9, window_bounds = array<i64: 1, 32>}, {pipeline_mode = #tpu.pipeline_mode<synchronous>, transform_indices = @transform_10, window_bounds = array<i64: 3, 1, 32>}, {pipeline_mode = #tpu.pipeline_mode<synchronous>, transform_indices = @transform_11, window_bounds = array<i64: 3, 1, 32>}, {transform_indices = @transform_12, window_bounds = array<i64: 1, 8, 32>}]} {
    %c0 = arith.constant 0 : index
    %c0_0 = arith.constant 0 : index
    %c0_1 = arith.constant 0 : index
    %0 = vector.load %arg1[%c0, %c0_0, %c0_1] : memref<1x8x32xf32, #tpu.memory_space<vmem>>, vector<1x8x32xf32>
    %1 = vector.shape_cast %0 : vector<1x8x32xf32> to vector<8x32xf32>
    %c0_2 = arith.constant 0 : index
    %c0_3 = arith.constant 0 : index
    %c0_4 = arith.constant 0 : index
    %2 = vector.load %arg2[%c0_2, %c0_3, %c0_4] : memref<1x1x8xf32, #tpu.memory_space<vmem>>, vector<1x1x8xf32>
    %3 = vector.shape_cast %2 : vector<1x1x8xf32> to vector<1x8xf32>
    %c0_5 = arith.constant 0 : index
    %c0_6 = arith.constant 0 : index
    %4 = vector.load %arg5[%c0_5, %c0_6] : memref<32x32xf32, #tpu.memory_space<vmem>>, vector<32x32xf32>
    %c0_7 = arith.constant 0 : index
    %c0_8 = arith.constant 0 : index
    %5 = vector.load %arg6[%c0_7, %c0_8] : memref<1x32xf32, #tpu.memory_space<vmem>>, vector<1x32xf32>
    %c0_9 = arith.constant 0 : index
    %c0_10 = arith.constant 0 : index
    %6 = vector.load %arg7[%c0_9, %c0_10] : memref<32x64xf32, #tpu.memory_space<vmem>>, vector<32x64xf32>
    %c0_11 = arith.constant 0 : index
    %c0_12 = arith.constant 0 : index
    %7 = vector.load %arg8[%c0_11, %c0_12] : memref<1x64xf32, #tpu.memory_space<vmem>>, vector<1x64xf32>
    %c0_13 = arith.constant 0 : index
    %c0_14 = arith.constant 0 : index
    %8 = vector.load %arg9[%c0_13, %c0_14] : memref<64x32xf32, #tpu.memory_space<vmem>>, vector<64x32xf32>
    %c0_15 = arith.constant 0 : index
    %c0_16 = arith.constant 0 : index
    %9 = vector.load %arg10[%c0_15, %c0_16] : memref<1x32xf32, #tpu.memory_space<vmem>>, vector<1x32xf32>
    %c0_17 = arith.constant 0 : index
    %c0_18 = arith.constant 0 : index
    %c0_19 = arith.constant 0 : index
    %10 = vector.load %arg11[%c0_17, %c0_18, %c0_19] : memref<3x1x32xf32, #tpu.memory_space<vmem>>, vector<1x1x32xf32>
    %11 = vector.shape_cast %10 : vector<1x1x32xf32> to vector<1x32xf32>
    %c0_20 = arith.constant 0 : index
    %c0_21 = arith.constant 0 : index
    %c0_22 = arith.constant 0 : index
    %12 = vector.load %arg12[%c0_20, %c0_21, %c0_22] : memref<3x1x32xf32, #tpu.memory_space<vmem>>, vector<1x1x32xf32>
    %13 = vector.shape_cast %12 : vector<1x1x32xf32> to vector<1x32xf32>
    %c1 = arith.constant 1 : index
    %c0_23 = arith.constant 0 : index
    %c0_24 = arith.constant 0 : index
    %14 = vector.load %arg11[%c1, %c0_23, %c0_24] : memref<3x1x32xf32, #tpu.memory_space<vmem>>, vector<1x1x32xf32>
    %15 = vector.shape_cast %14 : vector<1x1x32xf32> to vector<1x32xf32>
    %c1_25 = arith.constant 1 : index
    %c0_26 = arith.constant 0 : index
    %c0_27 = arith.constant 0 : index
    %16 = vector.load %arg12[%c1_25, %c0_26, %c0_27] : memref<3x1x32xf32, #tpu.memory_space<vmem>>, vector<1x1x32xf32>
    %17 = vector.shape_cast %16 : vector<1x1x32xf32> to vector<1x32xf32>
    %c2 = arith.constant 2 : index
    %c0_28 = arith.constant 0 : index
    %c0_29 = arith.constant 0 : index
    %18 = vector.load %arg11[%c2, %c0_28, %c0_29] : memref<3x1x32xf32, #tpu.memory_space<vmem>>, vector<1x1x32xf32>
    %19 = vector.shape_cast %18 : vector<1x1x32xf32> to vector<1x32xf32>
    %c2_30 = arith.constant 2 : index
    %c0_31 = arith.constant 0 : index
    %c0_32 = arith.constant 0 : index
    %20 = vector.load %arg12[%c2_30, %c0_31, %c0_32] : memref<3x1x32xf32, #tpu.memory_space<vmem>>, vector<1x1x32xf32>
    %21 = vector.shape_cast %20 : vector<1x1x32xf32> to vector<1x32xf32>
    %c0_i32 = arith.constant 0 : i32
    %c2_i32 = arith.constant 2 : i32
    %22 = arith.addi %c0_i32, %c2_i32 : i32
    %c1_i32 = arith.constant 1 : i32
    %23 = scf.for %arg14 = %c0_i32 to %22 step %c1_i32 iter_args(%arg15 = %1) -> (vector<8x32xf32>)  : i32 {
      %cst_40 = arith.constant dense<0.000000e+00> : vector<8xf32>
      %48 = vector.multi_reduction <add>, %arg15, %cst_40 [1] : vector<8x32xf32> to vector<8xf32>
      %49 = vector.shape_cast %48 : vector<8xf32> to vector<8x1xf32>
      %cst_41 = arith.constant 3.200000e+01 : f32
      %50 = vector.broadcast %cst_41 : f32 to vector<8x1xf32>
      %51 = arith.divf %49, %50 : vector<8x1xf32>
      %52 = vector.broadcast %51 : vector<8x1xf32> to vector<8x32xf32>
      %53 = arith.subf %arg15, %52 : vector<8x32xf32>
      %54 = arith.mulf %53, %53 : vector<8x32xf32>
      %cst_42 = arith.constant dense<0.000000e+00> : vector<8xf32>
      %55 = vector.multi_reduction <add>, %54, %cst_42 [1] : vector<8x32xf32> to vector<8xf32>
      %56 = vector.shape_cast %55 : vector<8xf32> to vector<8x1xf32>
      %cst_43 = arith.constant 0.0322580636 : f32
      %57 = vector.broadcast %cst_43 : f32 to vector<8x1xf32>
      %58 = arith.mulf %56, %57 : vector<8x1xf32>
      %59 = math.sqrt %58 : vector<8x1xf32>
      %cst_44 = arith.constant 9.99999997E-7 : f32
      %60 = vector.broadcast %cst_44 : f32 to vector<8x1xf32>
      %61 = arith.addf %59, %60 : vector<8x1xf32>
      %62 = tpu.reciprocal %61 {approx = true} : vector<8x1xf32> -> vector<8x1xf32>
      %63 = vector.broadcast %11 : vector<1x32xf32> to vector<8x32xf32>
      %64 = arith.mulf %63, %53 : vector<8x32xf32>
      %65 = vector.broadcast %62 : vector<8x1xf32> to vector<8x32xf32>
      %66 = arith.mulf %64, %65 : vector<8x32xf32>
      %67 = vector.broadcast %13 : vector<1x32xf32> to vector<8x32xf32>
      %68 = arith.addf %66, %67 : vector<8x32xf32>
      %c0_45 = arith.constant 0 : index
      %c0_46 = arith.constant 0 : index
      %c0_47 = arith.constant 0 : index
      %c0_48 = arith.constant 0 : index
      %69 = vector.load %arg3[%c0_45, %c0_46, %c0_47, %c0_48] : memref<3x4x32x8xf32, #tpu.memory_space<vmem>>, vector<1x1x32x8xf32>
      %70 = vector.shape_cast %69 : vector<1x1x32x8xf32> to vector<32x8xf32>
      %c1_49 = arith.constant 1 : index
      %c0_50 = arith.constant 0 : index
      %c0_51 = arith.constant 0 : index
      %c0_52 = arith.constant 0 : index
      %71 = vector.load %arg3[%c1_49, %c0_50, %c0_51, %c0_52] : memref<3x4x32x8xf32, #tpu.memory_space<vmem>>, vector<1x1x32x8xf32>
      %72 = vector.shape_cast %71 : vector<1x1x32x8xf32> to vector<32x8xf32>
      %c2_53 = arith.constant 2 : index
      %c0_54 = arith.constant 0 : index
      %c0_55 = arith.constant 0 : index
      %c0_56 = arith.constant 0 : index
      %73 = vector.load %arg3[%c2_53, %c0_54, %c0_55, %c0_56] : memref<3x4x32x8xf32, #tpu.memory_space<vmem>>, vector<1x1x32x8xf32>
      %74 = vector.shape_cast %73 : vector<1x1x32x8xf32> to vector<32x8xf32>
      %c0_57 = arith.constant 0 : index
      %c0_58 = arith.constant 0 : index
      %c0_59 = arith.constant 0 : index
      %c0_60 = arith.constant 0 : index
      %75 = vector.load %arg4[%c0_57, %c0_58, %c0_59, %c0_60] : memref<3x4x1x8xf32, #tpu.memory_space<vmem>>, vector<1x1x1x8xf32>
      %76 = vector.shape_cast %75 : vector<1x1x1x8xf32> to vector<1x8xf32>
      %c1_61 = arith.constant 1 : index
      %c0_62 = arith.constant 0 : index
      %c0_63 = arith.constant 0 : index
      %c0_64 = arith.constant 0 : index
      %77 = vector.load %arg4[%c1_61, %c0_62, %c0_63, %c0_64] : memref<3x4x1x8xf32, #tpu.memory_space<vmem>>, vector<1x1x1x8xf32>
      %78 = vector.shape_cast %77 : vector<1x1x1x8xf32> to vector<1x8xf32>
      %c2_65 = arith.constant 2 : index
      %c0_66 = arith.constant 0 : index
      %c0_67 = arith.constant 0 : index
      %c0_68 = arith.constant 0 : index
      %79 = vector.load %arg4[%c2_65, %c0_66, %c0_67, %c0_68] : memref<3x4x1x8xf32, #tpu.memory_space<vmem>>, vector<1x1x1x8xf32>
      %80 = vector.shape_cast %79 : vector<1x1x1x8xf32> to vector<1x8xf32>
      %cst_69 = arith.constant dense<0.000000e+00> : vector<8x8xf32>
      %81 = tpu.matmul %68, %70, %cst_69 {dimension_numbers = #tpu.dot_dimension_numbers<[1], [0], [0], [1], [0, 0, 1, 1], [], []>} : vector<8x32xf32>, vector<32x8xf32>, vector<8x8xf32> -> vector<8x8xf32>
      %82 = vector.broadcast %76 : vector<1x8xf32> to vector<8x8xf32>
      %83 = arith.addf %81, %82 : vector<8x8xf32>
      %cst_70 = arith.constant dense<0.000000e+00> : vector<8x8xf32>
      %84 = tpu.matmul %68, %72, %cst_70 {dimension_numbers = #tpu.dot_dimension_numbers<[1], [0], [0], [1], [0, 0, 1, 1], [], []>} : vector<8x32xf32>, vector<32x8xf32>, vector<8x8xf32> -> vector<8x8xf32>
      %85 = vector.broadcast %78 : vector<1x8xf32> to vector<8x8xf32>
      %86 = arith.addf %84, %85 : vector<8x8xf32>
      %cst_71 = arith.constant dense<0.000000e+00> : vector<8x8xf32>
      %87 = tpu.matmul %68, %74, %cst_71 {dimension_numbers = #tpu.dot_dimension_numbers<[1], [0], [0], [1], [0, 0, 1, 1], [], []>} : vector<8x32xf32>, vector<32x8xf32>, vector<8x8xf32> -> vector<8x8xf32>
      %88 = vector.broadcast %80 : vector<1x8xf32> to vector<8x8xf32>
      %89 = arith.addf %87, %88 : vector<8x8xf32>
      %90 = tpu.transpose %86, [1, 0] : vector<8x8xf32> -> vector<8x8xf32>
      %cst_72 = arith.constant dense<0.000000e+00> : vector<8x8xf32>
      %91 = tpu.matmul %83, %90, %cst_72 {dimension_numbers = #tpu.dot_dimension_numbers<[1], [0], [0], [1], [0, 0, 1, 1], [], []>} : vector<8x8xf32>, vector<8x8xf32>, vector<8x8xf32> -> vector<8x8xf32>
      %cst_73 = arith.constant 0.353553385 : f32
      %92 = vector.broadcast %cst_73 : f32 to vector<8x8xf32>
      %93 = arith.mulf %91, %92 : vector<8x8xf32>
      %94 = vector.broadcast %3 : vector<1x8xf32> to vector<8x8xf32>
      %95 = arith.addf %93, %94 : vector<8x8xf32>
      %cst_74 = arith.constant dense<0xFF800000> : vector<8xf32>
      %96 = vector.multi_reduction <maximumf>, %95, %cst_74 [1] : vector<8x8xf32> to vector<8xf32>
      %97 = vector.shape_cast %96 : vector<8xf32> to vector<8x1xf32>
      %98 = vector.broadcast %97 : vector<8x1xf32> to vector<8x8xf32>
      %99 = arith.subf %95, %98 : vector<8x8xf32>
      %100 = math.exp %99 : vector<8x8xf32>
      %cst_75 = arith.constant dense<0.000000e+00> : vector<8xf32>
      %101 = vector.multi_reduction <add>, %100, %cst_75 [1] : vector<8x8xf32> to vector<8xf32>
      %102 = vector.shape_cast %101 : vector<8xf32> to vector<8x1xf32>
      %103 = tpu.reciprocal %102 {approx = true} : vector<8x1xf32> -> vector<8x1xf32>
      %104 = vector.broadcast %103 : vector<8x1xf32> to vector<8x8xf32>
      %105 = arith.mulf %100, %104 : vector<8x8xf32>
      %cst_76 = arith.constant dense<0.000000e+00> : vector<8x8xf32>
      %106 = tpu.matmul %105, %89, %cst_76 {dimension_numbers = #tpu.dot_dimension_numbers<[1], [0], [0], [1], [0, 0, 1, 1], [], []>} : vector<8x8xf32>, vector<8x8xf32>, vector<8x8xf32> -> vector<8x8xf32>
      %107 = vector.extract_strided_slice %4 {offsets = [0, 0], sizes = [8, 32], strides = [1, 1]} : vector<32x32xf32> to vector<8x32xf32>
      %cst_77 = arith.constant dense<0.000000e+00> : vector<8x32xf32>
      %108 = tpu.matmul %106, %107, %cst_77 {dimension_numbers = #tpu.dot_dimension_numbers<[1], [0], [0], [1], [0, 0, 1, 1], [], []>} : vector<8x8xf32>, vector<8x32xf32>, vector<8x32xf32> -> vector<8x32xf32>
      %c0_78 = arith.constant 0 : index
      %c1_79 = arith.constant 1 : index
      %c0_80 = arith.constant 0 : index
      %c0_81 = arith.constant 0 : index
      %109 = vector.load %arg3[%c0_78, %c1_79, %c0_80, %c0_81] : memref<3x4x32x8xf32, #tpu.memory_space<vmem>>, vector<1x1x32x8xf32>
      %110 = vector.shape_cast %109 : vector<1x1x32x8xf32> to vector<32x8xf32>
      %c1_82 = arith.constant 1 : index
      %c1_83 = arith.constant 1 : index
      %c0_84 = arith.constant 0 : index
      %c0_85 = arith.constant 0 : index
      %111 = vector.load %arg3[%c1_82, %c1_83, %c0_84, %c0_85] : memref<3x4x32x8xf32, #tpu.memory_space<vmem>>, vector<1x1x32x8xf32>
      %112 = vector.shape_cast %111 : vector<1x1x32x8xf32> to vector<32x8xf32>
      %c2_86 = arith.constant 2 : index
      %c1_87 = arith.constant 1 : index
      %c0_88 = arith.constant 0 : index
      %c0_89 = arith.constant 0 : index
      %113 = vector.load %arg3[%c2_86, %c1_87, %c0_88, %c0_89] : memref<3x4x32x8xf32, #tpu.memory_space<vmem>>, vector<1x1x32x8xf32>
      %114 = vector.shape_cast %113 : vector<1x1x32x8xf32> to vector<32x8xf32>
      %c0_90 = arith.constant 0 : index
      %c1_91 = arith.constant 1 : index
      %c0_92 = arith.constant 0 : index
      %c0_93 = arith.constant 0 : index
      %115 = vector.load %arg4[%c0_90, %c1_91, %c0_92, %c0_93] : memref<3x4x1x8xf32, #tpu.memory_space<vmem>>, vector<1x1x1x8xf32>
      %116 = vector.shape_cast %115 : vector<1x1x1x8xf32> to vector<1x8xf32>
      %c1_94 = arith.constant 1 : index
      %c1_95 = arith.constant 1 : index
      %c0_96 = arith.constant 0 : index
      %c0_97 = arith.constant 0 : index
      %117 = vector.load %arg4[%c1_94, %c1_95, %c0_96, %c0_97] : memref<3x4x1x8xf32, #tpu.memory_space<vmem>>, vector<1x1x1x8xf32>
      %118 = vector.shape_cast %117 : vector<1x1x1x8xf32> to vector<1x8xf32>
      %c2_98 = arith.constant 2 : index
      %c1_99 = arith.constant 1 : index
      %c0_100 = arith.constant 0 : index
      %c0_101 = arith.constant 0 : index
      %119 = vector.load %arg4[%c2_98, %c1_99, %c0_100, %c0_101] : memref<3x4x1x8xf32, #tpu.memory_space<vmem>>, vector<1x1x1x8xf32>
      %120 = vector.shape_cast %119 : vector<1x1x1x8xf32> to vector<1x8xf32>
      %cst_102 = arith.constant dense<0.000000e+00> : vector<8x8xf32>
      %121 = tpu.matmul %68, %110, %cst_102 {dimension_numbers = #tpu.dot_dimension_numbers<[1], [0], [0], [1], [0, 0, 1, 1], [], []>} : vector<8x32xf32>, vector<32x8xf32>, vector<8x8xf32> -> vector<8x8xf32>
      %122 = vector.broadcast %116 : vector<1x8xf32> to vector<8x8xf32>
      %123 = arith.addf %121, %122 : vector<8x8xf32>
      %cst_103 = arith.constant dense<0.000000e+00> : vector<8x8xf32>
      %124 = tpu.matmul %68, %112, %cst_103 {dimension_numbers = #tpu.dot_dimension_numbers<[1], [0], [0], [1], [0, 0, 1, 1], [], []>} : vector<8x32xf32>, vector<32x8xf32>, vector<8x8xf32> -> vector<8x8xf32>
      %125 = vector.broadcast %118 : vector<1x8xf32> to vector<8x8xf32>
      %126 = arith.addf %124, %125 : vector<8x8xf32>
      %cst_104 = arith.constant dense<0.000000e+00> : vector<8x8xf32>
      %127 = tpu.matmul %68, %114, %cst_104 {dimension_numbers = #tpu.dot_dimension_numbers<[1], [0], [0], [1], [0, 0, 1, 1], [], []>} : vector<8x32xf32>, vector<32x8xf32>, vector<8x8xf32> -> vector<8x8xf32>
      %128 = vector.broadcast %120 : vector<1x8xf32> to vector<8x8xf32>
      %129 = arith.addf %127, %128 : vector<8x8xf32>
      %130 = tpu.transpose %126, [1, 0] : vector<8x8xf32> -> vector<8x8xf32>
      %cst_105 = arith.constant dense<0.000000e+00> : vector<8x8xf32>
      %131 = tpu.matmul %123, %130, %cst_105 {dimension_numbers = #tpu.dot_dimension_numbers<[1], [0], [0], [1], [0, 0, 1, 1], [], []>} : vector<8x8xf32>, vector<8x8xf32>, vector<8x8xf32> -> vector<8x8xf32>
      %cst_106 = arith.constant 0.353553385 : f32
      %132 = vector.broadcast %cst_106 : f32 to vector<8x8xf32>
      %133 = arith.mulf %131, %132 : vector<8x8xf32>
      %134 = vector.broadcast %3 : vector<1x8xf32> to vector<8x8xf32>
      %135 = arith.addf %133, %134 : vector<8x8xf32>
      %cst_107 = arith.constant dense<0xFF800000> : vector<8xf32>
      %136 = vector.multi_reduction <maximumf>, %135, %cst_107 [1] : vector<8x8xf32> to vector<8xf32>
      %137 = vector.shape_cast %136 : vector<8xf32> to vector<8x1xf32>
      %138 = vector.broadcast %137 : vector<8x1xf32> to vector<8x8xf32>
      %139 = arith.subf %135, %138 : vector<8x8xf32>
      %140 = math.exp %139 : vector<8x8xf32>
      %cst_108 = arith.constant dense<0.000000e+00> : vector<8xf32>
      %141 = vector.multi_reduction <add>, %140, %cst_108 [1] : vector<8x8xf32> to vector<8xf32>
      %142 = vector.shape_cast %141 : vector<8xf32> to vector<8x1xf32>
      %143 = tpu.reciprocal %142 {approx = true} : vector<8x1xf32> -> vector<8x1xf32>
      %144 = vector.broadcast %143 : vector<8x1xf32> to vector<8x8xf32>
      %145 = arith.mulf %140, %144 : vector<8x8xf32>
      %cst_109 = arith.constant dense<0.000000e+00> : vector<8x8xf32>
      %146 = tpu.matmul %145, %129, %cst_109 {dimension_numbers = #tpu.dot_dimension_numbers<[1], [0], [0], [1], [0, 0, 1, 1], [], []>} : vector<8x8xf32>, vector<8x8xf32>, vector<8x8xf32> -> vector<8x8xf32>
      %147 = vector.extract_strided_slice %4 {offsets = [8, 0], sizes = [8, 32], strides = [1, 1]} : vector<32x32xf32> to vector<8x32xf32>
      %cst_110 = arith.constant dense<0.000000e+00> : vector<8x32xf32>
      %148 = tpu.matmul %146, %147, %cst_110 {dimension_numbers = #tpu.dot_dimension_numbers<[1], [0], [0], [1], [0, 0, 1, 1], [], []>} : vector<8x8xf32>, vector<8x32xf32>, vector<8x32xf32> -> vector<8x32xf32>
      %149 = arith.addf %108, %148 : vector<8x32xf32>
      %c0_111 = arith.constant 0 : index
      %c2_112 = arith.constant 2 : index
      %c0_113 = arith.constant 0 : index
      %c0_114 = arith.constant 0 : index
      %150 = vector.load %arg3[%c0_111, %c2_112, %c0_113, %c0_114] : memref<3x4x32x8xf32, #tpu.memory_space<vmem>>, vector<1x1x32x8xf32>
      %151 = vector.shape_cast %150 : vector<1x1x32x8xf32> to vector<32x8xf32>
      %c1_115 = arith.constant 1 : index
      %c2_116 = arith.constant 2 : index
      %c0_117 = arith.constant 0 : index
      %c0_118 = arith.constant 0 : index
      %152 = vector.load %arg3[%c1_115, %c2_116, %c0_117, %c0_118] : memref<3x4x32x8xf32, #tpu.memory_space<vmem>>, vector<1x1x32x8xf32>
      %153 = vector.shape_cast %152 : vector<1x1x32x8xf32> to vector<32x8xf32>
      %c2_119 = arith.constant 2 : index
      %c2_120 = arith.constant 2 : index
      %c0_121 = arith.constant 0 : index
      %c0_122 = arith.constant 0 : index
      %154 = vector.load %arg3[%c2_119, %c2_120, %c0_121, %c0_122] : memref<3x4x32x8xf32, #tpu.memory_space<vmem>>, vector<1x1x32x8xf32>
      %155 = vector.shape_cast %154 : vector<1x1x32x8xf32> to vector<32x8xf32>
      %c0_123 = arith.constant 0 : index
      %c2_124 = arith.constant 2 : index
      %c0_125 = arith.constant 0 : index
      %c0_126 = arith.constant 0 : index
      %156 = vector.load %arg4[%c0_123, %c2_124, %c0_125, %c0_126] : memref<3x4x1x8xf32, #tpu.memory_space<vmem>>, vector<1x1x1x8xf32>
      %157 = vector.shape_cast %156 : vector<1x1x1x8xf32> to vector<1x8xf32>
      %c1_127 = arith.constant 1 : index
      %c2_128 = arith.constant 2 : index
      %c0_129 = arith.constant 0 : index
      %c0_130 = arith.constant 0 : index
      %158 = vector.load %arg4[%c1_127, %c2_128, %c0_129, %c0_130] : memref<3x4x1x8xf32, #tpu.memory_space<vmem>>, vector<1x1x1x8xf32>
      %159 = vector.shape_cast %158 : vector<1x1x1x8xf32> to vector<1x8xf32>
      %c2_131 = arith.constant 2 : index
      %c2_132 = arith.constant 2 : index
      %c0_133 = arith.constant 0 : index
      %c0_134 = arith.constant 0 : index
      %160 = vector.load %arg4[%c2_131, %c2_132, %c0_133, %c0_134] : memref<3x4x1x8xf32, #tpu.memory_space<vmem>>, vector<1x1x1x8xf32>
      %161 = vector.shape_cast %160 : vector<1x1x1x8xf32> to vector<1x8xf32>
      %cst_135 = arith.constant dense<0.000000e+00> : vector<8x8xf32>
      %162 = tpu.matmul %68, %151, %cst_135 {dimension_numbers = #tpu.dot_dimension_numbers<[1], [0], [0], [1], [0, 0, 1, 1], [], []>} : vector<8x32xf32>, vector<32x8xf32>, vector<8x8xf32> -> vector<8x8xf32>
      %163 = vector.broadcast %157 : vector<1x8xf32> to vector<8x8xf32>
      %164 = arith.addf %162, %163 : vector<8x8xf32>
      %cst_136 = arith.constant dense<0.000000e+00> : vector<8x8xf32>
      %165 = tpu.matmul %68, %153, %cst_136 {dimension_numbers = #tpu.dot_dimension_numbers<[1], [0], [0], [1], [0, 0, 1, 1], [], []>} : vector<8x32xf32>, vector<32x8xf32>, vector<8x8xf32> -> vector<8x8xf32>
      %166 = vector.broadcast %159 : vector<1x8xf32> to vector<8x8xf32>
      %167 = arith.addf %165, %166 : vector<8x8xf32>
      %cst_137 = arith.constant dense<0.000000e+00> : vector<8x8xf32>
      %168 = tpu.matmul %68, %155, %cst_137 {dimension_numbers = #tpu.dot_dimension_numbers<[1], [0], [0], [1], [0, 0, 1, 1], [], []>} : vector<8x32xf32>, vector<32x8xf32>, vector<8x8xf32> -> vector<8x8xf32>
      %169 = vector.broadcast %161 : vector<1x8xf32> to vector<8x8xf32>
      %170 = arith.addf %168, %169 : vector<8x8xf32>
      %171 = tpu.transpose %167, [1, 0] : vector<8x8xf32> -> vector<8x8xf32>
      %cst_138 = arith.constant dense<0.000000e+00> : vector<8x8xf32>
      %172 = tpu.matmul %164, %171, %cst_138 {dimension_numbers = #tpu.dot_dimension_numbers<[1], [0], [0], [1], [0, 0, 1, 1], [], []>} : vector<8x8xf32>, vector<8x8xf32>, vector<8x8xf32> -> vector<8x8xf32>
      %cst_139 = arith.constant 0.353553385 : f32
      %173 = vector.broadcast %cst_139 : f32 to vector<8x8xf32>
      %174 = arith.mulf %172, %173 : vector<8x8xf32>
      %175 = vector.broadcast %3 : vector<1x8xf32> to vector<8x8xf32>
      %176 = arith.addf %174, %175 : vector<8x8xf32>
      %cst_140 = arith.constant dense<0xFF800000> : vector<8xf32>
      %177 = vector.multi_reduction <maximumf>, %176, %cst_140 [1] : vector<8x8xf32> to vector<8xf32>
      %178 = vector.shape_cast %177 : vector<8xf32> to vector<8x1xf32>
      %179 = vector.broadcast %178 : vector<8x1xf32> to vector<8x8xf32>
      %180 = arith.subf %176, %179 : vector<8x8xf32>
      %181 = math.exp %180 : vector<8x8xf32>
      %cst_141 = arith.constant dense<0.000000e+00> : vector<8xf32>
      %182 = vector.multi_reduction <add>, %181, %cst_141 [1] : vector<8x8xf32> to vector<8xf32>
      %183 = vector.shape_cast %182 : vector<8xf32> to vector<8x1xf32>
      %184 = tpu.reciprocal %183 {approx = true} : vector<8x1xf32> -> vector<8x1xf32>
      %185 = vector.broadcast %184 : vector<8x1xf32> to vector<8x8xf32>
      %186 = arith.mulf %181, %185 : vector<8x8xf32>
      %cst_142 = arith.constant dense<0.000000e+00> : vector<8x8xf32>
      %187 = tpu.matmul %186, %170, %cst_142 {dimension_numbers = #tpu.dot_dimension_numbers<[1], [0], [0], [1], [0, 0, 1, 1], [], []>} : vector<8x8xf32>, vector<8x8xf32>, vector<8x8xf32> -> vector<8x8xf32>
      %188 = vector.extract_strided_slice %4 {offsets = [16, 0], sizes = [8, 32], strides = [1, 1]} : vector<32x32xf32> to vector<8x32xf32>
      %cst_143 = arith.constant dense<0.000000e+00> : vector<8x32xf32>
      %189 = tpu.matmul %187, %188, %cst_143 {dimension_numbers = #tpu.dot_dimension_numbers<[1], [0], [0], [1], [0, 0, 1, 1], [], []>} : vector<8x8xf32>, vector<8x32xf32>, vector<8x32xf32> -> vector<8x32xf32>
      %190 = arith.addf %149, %189 : vector<8x32xf32>
      %c0_144 = arith.constant 0 : index
      %c3 = arith.constant 3 : index
      %c0_145 = arith.constant 0 : index
      %c0_146 = arith.constant 0 : index
      %191 = vector.load %arg3[%c0_144, %c3, %c0_145, %c0_146] : memref<3x4x32x8xf32, #tpu.memory_space<vmem>>, vector<1x1x32x8xf32>
      %192 = vector.shape_cast %191 : vector<1x1x32x8xf32> to vector<32x8xf32>
      %c1_147 = arith.constant 1 : index
      %c3_148 = arith.constant 3 : index
      %c0_149 = arith.constant 0 : index
      %c0_150 = arith.constant 0 : index
      %193 = vector.load %arg3[%c1_147, %c3_148, %c0_149, %c0_150] : memref<3x4x32x8xf32, #tpu.memory_space<vmem>>, vector<1x1x32x8xf32>
      %194 = vector.shape_cast %193 : vector<1x1x32x8xf32> to vector<32x8xf32>
      %c2_151 = arith.constant 2 : index
      %c3_152 = arith.constant 3 : index
      %c0_153 = arith.constant 0 : index
      %c0_154 = arith.constant 0 : index
      %195 = vector.load %arg3[%c2_151, %c3_152, %c0_153, %c0_154] : memref<3x4x32x8xf32, #tpu.memory_space<vmem>>, vector<1x1x32x8xf32>
      %196 = vector.shape_cast %195 : vector<1x1x32x8xf32> to vector<32x8xf32>
      %c0_155 = arith.constant 0 : index
      %c3_156 = arith.constant 3 : index
      %c0_157 = arith.constant 0 : index
      %c0_158 = arith.constant 0 : index
      %197 = vector.load %arg4[%c0_155, %c3_156, %c0_157, %c0_158] : memref<3x4x1x8xf32, #tpu.memory_space<vmem>>, vector<1x1x1x8xf32>
      %198 = vector.shape_cast %197 : vector<1x1x1x8xf32> to vector<1x8xf32>
      %c1_159 = arith.constant 1 : index
      %c3_160 = arith.constant 3 : index
      %c0_161 = arith.constant 0 : index
      %c0_162 = arith.constant 0 : index
      %199 = vector.load %arg4[%c1_159, %c3_160, %c0_161, %c0_162] : memref<3x4x1x8xf32, #tpu.memory_space<vmem>>, vector<1x1x1x8xf32>
      %200 = vector.shape_cast %199 : vector<1x1x1x8xf32> to vector<1x8xf32>
      %c2_163 = arith.constant 2 : index
      %c3_164 = arith.constant 3 : index
      %c0_165 = arith.constant 0 : index
      %c0_166 = arith.constant 0 : index
      %201 = vector.load %arg4[%c2_163, %c3_164, %c0_165, %c0_166] : memref<3x4x1x8xf32, #tpu.memory_space<vmem>>, vector<1x1x1x8xf32>
      %202 = vector.shape_cast %201 : vector<1x1x1x8xf32> to vector<1x8xf32>
      %cst_167 = arith.constant dense<0.000000e+00> : vector<8x8xf32>
      %203 = tpu.matmul %68, %192, %cst_167 {dimension_numbers = #tpu.dot_dimension_numbers<[1], [0], [0], [1], [0, 0, 1, 1], [], []>} : vector<8x32xf32>, vector<32x8xf32>, vector<8x8xf32> -> vector<8x8xf32>
      %204 = vector.broadcast %198 : vector<1x8xf32> to vector<8x8xf32>
      %205 = arith.addf %203, %204 : vector<8x8xf32>
      %cst_168 = arith.constant dense<0.000000e+00> : vector<8x8xf32>
      %206 = tpu.matmul %68, %194, %cst_168 {dimension_numbers = #tpu.dot_dimension_numbers<[1], [0], [0], [1], [0, 0, 1, 1], [], []>} : vector<8x32xf32>, vector<32x8xf32>, vector<8x8xf32> -> vector<8x8xf32>
      %207 = vector.broadcast %200 : vector<1x8xf32> to vector<8x8xf32>
      %208 = arith.addf %206, %207 : vector<8x8xf32>
      %cst_169 = arith.constant dense<0.000000e+00> : vector<8x8xf32>
      %209 = tpu.matmul %68, %196, %cst_169 {dimension_numbers = #tpu.dot_dimension_numbers<[1], [0], [0], [1], [0, 0, 1, 1], [], []>} : vector<8x32xf32>, vector<32x8xf32>, vector<8x8xf32> -> vector<8x8xf32>
      %210 = vector.broadcast %202 : vector<1x8xf32> to vector<8x8xf32>
      %211 = arith.addf %209, %210 : vector<8x8xf32>
      %212 = tpu.transpose %208, [1, 0] : vector<8x8xf32> -> vector<8x8xf32>
      %cst_170 = arith.constant dense<0.000000e+00> : vector<8x8xf32>
      %213 = tpu.matmul %205, %212, %cst_170 {dimension_numbers = #tpu.dot_dimension_numbers<[1], [0], [0], [1], [0, 0, 1, 1], [], []>} : vector<8x8xf32>, vector<8x8xf32>, vector<8x8xf32> -> vector<8x8xf32>
      %cst_171 = arith.constant 0.353553385 : f32
      %214 = vector.broadcast %cst_171 : f32 to vector<8x8xf32>
      %215 = arith.mulf %213, %214 : vector<8x8xf32>
      %216 = vector.broadcast %3 : vector<1x8xf32> to vector<8x8xf32>
      %217 = arith.addf %215, %216 : vector<8x8xf32>
      %cst_172 = arith.constant dense<0xFF800000> : vector<8xf32>
      %218 = vector.multi_reduction <maximumf>, %217, %cst_172 [1] : vector<8x8xf32> to vector<8xf32>
      %219 = vector.shape_cast %218 : vector<8xf32> to vector<8x1xf32>
      %220 = vector.broadcast %219 : vector<8x1xf32> to vector<8x8xf32>
      %221 = arith.subf %217, %220 : vector<8x8xf32>
      %222 = math.exp %221 : vector<8x8xf32>
      %cst_173 = arith.constant dense<0.000000e+00> : vector<8xf32>
      %223 = vector.multi_reduction <add>, %222, %cst_173 [1] : vector<8x8xf32> to vector<8xf32>
      %224 = vector.shape_cast %223 : vector<8xf32> to vector<8x1xf32>
      %225 = tpu.reciprocal %224 {approx = true} : vector<8x1xf32> -> vector<8x1xf32>
      %226 = vector.broadcast %225 : vector<8x1xf32> to vector<8x8xf32>
      %227 = arith.mulf %222, %226 : vector<8x8xf32>
      %cst_174 = arith.constant dense<0.000000e+00> : vector<8x8xf32>
      %228 = tpu.matmul %227, %211, %cst_174 {dimension_numbers = #tpu.dot_dimension_numbers<[1], [0], [0], [1], [0, 0, 1, 1], [], []>} : vector<8x8xf32>, vector<8x8xf32>, vector<8x8xf32> -> vector<8x8xf32>
      %229 = vector.extract_strided_slice %4 {offsets = [24, 0], sizes = [8, 32], strides = [1, 1]} : vector<32x32xf32> to vector<8x32xf32>
      %cst_175 = arith.constant dense<0.000000e+00> : vector<8x32xf32>
      %230 = tpu.matmul %228, %229, %cst_175 {dimension_numbers = #tpu.dot_dimension_numbers<[1], [0], [0], [1], [0, 0, 1, 1], [], []>} : vector<8x8xf32>, vector<8x32xf32>, vector<8x32xf32> -> vector<8x32xf32>
      %231 = arith.addf %190, %230 : vector<8x32xf32>
      %232 = arith.addf %arg15, %231 : vector<8x32xf32>
      %233 = vector.broadcast %5 : vector<1x32xf32> to vector<8x32xf32>
      %234 = arith.addf %232, %233 : vector<8x32xf32>
      %cst_176 = arith.constant dense<0.000000e+00> : vector<8xf32>
      %235 = vector.multi_reduction <add>, %234, %cst_176 [1] : vector<8x32xf32> to vector<8xf32>
      %236 = vector.shape_cast %235 : vector<8xf32> to vector<8x1xf32>
      %cst_177 = arith.constant 3.200000e+01 : f32
      %237 = vector.broadcast %cst_177 : f32 to vector<8x1xf32>
      %238 = arith.divf %236, %237 : vector<8x1xf32>
      %239 = vector.broadcast %238 : vector<8x1xf32> to vector<8x32xf32>
      %240 = arith.subf %234, %239 : vector<8x32xf32>
      %241 = arith.mulf %240, %240 : vector<8x32xf32>
      %cst_178 = arith.constant dense<0.000000e+00> : vector<8xf32>
      %242 = vector.multi_reduction <add>, %241, %cst_178 [1] : vector<8x32xf32> to vector<8xf32>
      %243 = vector.shape_cast %242 : vector<8xf32> to vector<8x1xf32>
      %cst_179 = arith.constant 0.0322580636 : f32
      %244 = vector.broadcast %cst_179 : f32 to vector<8x1xf32>
      %245 = arith.mulf %243, %244 : vector<8x1xf32>
      %246 = math.sqrt %245 : vector<8x1xf32>
      %cst_180 = arith.constant 9.99999997E-7 : f32
      %247 = vector.broadcast %cst_180 : f32 to vector<8x1xf32>
      %248 = arith.addf %246, %247 : vector<8x1xf32>
      %249 = tpu.reciprocal %248 {approx = true} : vector<8x1xf32> -> vector<8x1xf32>
      %250 = vector.broadcast %15 : vector<1x32xf32> to vector<8x32xf32>
      %251 = arith.mulf %250, %240 : vector<8x32xf32>
      %252 = vector.broadcast %249 : vector<8x1xf32> to vector<8x32xf32>
      %253 = arith.mulf %251, %252 : vector<8x32xf32>
      %254 = vector.broadcast %17 : vector<1x32xf32> to vector<8x32xf32>
      %255 = arith.addf %253, %254 : vector<8x32xf32>
      %cst_181 = arith.constant dense<0.000000e+00> : vector<8x64xf32>
      %256 = tpu.matmul %255, %6, %cst_181 {dimension_numbers = #tpu.dot_dimension_numbers<[1], [0], [0], [1], [0, 0, 1, 1], [], []>} : vector<8x32xf32>, vector<32x64xf32>, vector<8x64xf32> -> vector<8x64xf32>
      %257 = vector.broadcast %7 : vector<1x64xf32> to vector<8x64xf32>
      %258 = arith.addf %256, %257 : vector<8x64xf32>
      %cst_182 = arith.constant 0.000000e+00 : f32
      %259 = vector.broadcast %cst_182 : f32 to vector<8x64xf32>
      %260 = arith.maximumf %258, %259 : vector<8x64xf32>
      %cst_183 = arith.constant dense<0.000000e+00> : vector<8x32xf32>
      %261 = tpu.matmul %260, %8, %cst_183 {dimension_numbers = #tpu.dot_dimension_numbers<[1], [0], [0], [1], [0, 0, 1, 1], [], []>} : vector<8x64xf32>, vector<64x32xf32>, vector<8x32xf32> -> vector<8x32xf32>
      %262 = vector.broadcast %9 : vector<1x32xf32> to vector<8x32xf32>
      %263 = arith.addf %261, %262 : vector<8x32xf32>
      %264 = arith.addf %234, %263 : vector<8x32xf32>
      scf.yield %264 : vector<8x32xf32>
    }
    %cst = arith.constant dense<0.000000e+00> : vector<8xf32>
    %24 = vector.multi_reduction <add>, %23, %cst [1] : vector<8x32xf32> to vector<8xf32>
    %25 = vector.shape_cast %24 : vector<8xf32> to vector<8x1xf32>
    %cst_33 = arith.constant 3.200000e+01 : f32
    %26 = vector.broadcast %cst_33 : f32 to vector<8x1xf32>
    %27 = arith.divf %25, %26 : vector<8x1xf32>
    %28 = vector.broadcast %27 : vector<8x1xf32> to vector<8x32xf32>
    %29 = arith.subf %23, %28 : vector<8x32xf32>
    %30 = arith.mulf %29, %29 : vector<8x32xf32>
    %cst_34 = arith.constant dense<0.000000e+00> : vector<8xf32>
    %31 = vector.multi_reduction <add>, %30, %cst_34 [1] : vector<8x32xf32> to vector<8xf32>
    %32 = vector.shape_cast %31 : vector<8xf32> to vector<8x1xf32>
    %cst_35 = arith.constant 0.0322580636 : f32
    %33 = vector.broadcast %cst_35 : f32 to vector<8x1xf32>
    %34 = arith.mulf %32, %33 : vector<8x1xf32>
    %35 = math.sqrt %34 : vector<8x1xf32>
    %cst_36 = arith.constant 9.99999997E-7 : f32
    %36 = vector.broadcast %cst_36 : f32 to vector<8x1xf32>
    %37 = arith.addf %35, %36 : vector<8x1xf32>
    %38 = tpu.reciprocal %37 {approx = true} : vector<8x1xf32> -> vector<8x1xf32>
    %39 = vector.broadcast %19 : vector<1x32xf32> to vector<8x32xf32>
    %40 = arith.mulf %39, %29 : vector<8x32xf32>
    %41 = vector.broadcast %38 : vector<8x1xf32> to vector<8x32xf32>
    %42 = arith.mulf %40, %41 : vector<8x32xf32>
    %43 = vector.broadcast %21 : vector<1x32xf32> to vector<8x32xf32>
    %44 = arith.addf %42, %43 : vector<8x32xf32>
    %c0_37 = arith.constant 0 : index
    %c0_38 = arith.constant 0 : index
    %c0_39 = arith.constant 0 : index
    %45 = vector.load %arg13[%c0_37, %c0_38, %c0_39] : memref<1x8x32xf32, #tpu.memory_space<vmem>>, vector<1x8x32xf32>
    %46 = vector.shape_cast %45 : vector<1x8x32xf32> to vector<8x32xf32>
    %47 = vector.shape_cast %44 : vector<8x32xf32> to vector<1x8x32xf32>
    tpu.vector_store %arg13[%c0_37, %c0_38, %c0_39], %47 {strides = array<i32>} : memref<1x8x32xf32, #tpu.memory_space<vmem>>, vector<1x8x32xf32>,
    return
  }
  func.func @transform_0(%arg0: i32) -> (i32, i32, i32) {
    %c0_i32 = arith.constant 0 : i32
    %c0_i32_0 = arith.constant 0 : i32
    %c0_i32_1 = arith.constant 0 : i32
    return %arg0, %c0_i32, %c0_i32_0 : i32, i32, i32
  }
  func.func @transform_1(%arg0: i32) -> (i32, i32, i32) {
    %c0_i32 = arith.constant 0 : i32
    %c0_i32_0 = arith.constant 0 : i32
    %c0_i32_1 = arith.constant 0 : i32
    return %arg0, %c0_i32, %c0_i32_0 : i32, i32, i32
  }
  func.func @transform_2(%arg0: i32) -> (i32, i32, i32, i32) {
    %c0_i32 = arith.constant 0 : i32
    %c0_i32_0 = arith.constant 0 : i32
    %c0_i32_1 = arith.constant 0 : i32
    %c0_i32_2 = arith.constant 0 : i32
    %c0_i32_3 = arith.constant 0 : i32
    return %c0_i32, %c0_i32_0, %c0_i32_1, %c0_i32_2 : i32, i32, i32, i32
  }
  func.func @transform_3(%arg0: i32) -> (i32, i32, i32, i32) {
    %c0_i32 = arith.constant 0 : i32
    %c0_i32_0 = arith.constant 0 : i32
    %c0_i32_1 = arith.constant 0 : i32
    %c0_i32_2 = arith.constant 0 : i32
    %c0_i32_3 = arith.constant 0 : i32
    return %c0_i32, %c0_i32_0, %c0_i32_1, %c0_i32_2 : i32, i32, i32, i32
  }
  func.func @transform_4(%arg0: i32) -> (i32, i32) {
    %c0_i32 = arith.constant 0 : i32
    %c0_i32_0 = arith.constant 0 : i32
    %c0_i32_1 = arith.constant 0 : i32
    return %c0_i32, %c0_i32_0 : i32, i32
  }
  func.func @transform_5(%arg0: i32) -> (i32, i32) {
    %c0_i32 = arith.constant 0 : i32
    %c0_i32_0 = arith.constant 0 : i32
    %c0_i32_1 = arith.constant 0 : i32
    return %c0_i32, %c0_i32_0 : i32, i32
  }
  func.func @transform_6(%arg0: i32) -> (i32, i32) {
    %c0_i32 = arith.constant 0 : i32
    %c0_i32_0 = arith.constant 0 : i32
    %c0_i32_1 = arith.constant 0 : i32
    return %c0_i32, %c0_i32_0 : i32, i32
  }
  func.func @transform_7(%arg0: i32) -> (i32, i32) {
    %c0_i32 = arith.constant 0 : i32
    %c0_i32_0 = arith.constant 0 : i32
    %c0_i32_1 = arith.constant 0 : i32
    return %c0_i32, %c0_i32_0 : i32, i32
  }
  func.func @transform_8(%arg0: i32) -> (i32, i32) {
    %c0_i32 = arith.constant 0 : i32
    %c0_i32_0 = arith.constant 0 : i32
    %c0_i32_1 = arith.constant 0 : i32
    return %c0_i32, %c0_i32_0 : i32, i32
  }
  func.func @transform_9(%arg0: i32) -> (i32, i32) {
    %c0_i32 = arith.constant 0 : i32
    %c0_i32_0 = arith.constant 0 : i32
    %c0_i32_1 = arith.constant 0 : i32
    return %c0_i32, %c0_i32_0 : i32, i32
  }
  func.func @transform_10(%arg0: i32) -> (i32, i32, i32) {
    %c0_i32 = arith.constant 0 : i32
    %c0_i32_0 = arith.constant 0 : i32
    %c0_i32_1 = arith.constant 0 : i32
    %c0_i32_2 = arith.constant 0 : i32
    return %c0_i32, %c0_i32_0, %c0_i32_1 : i32, i32, i32
  }
  func.func @transform_11(%arg0: i32) -> (i32, i32, i32) {
    %c0_i32 = arith.constant 0 : i32
    %c0_i32_0 = arith.constant 0 : i32
    %c0_i32_1 = arith.constant 0 : i32
    %c0_i32_2 = arith.constant 0 : i32
    return %c0_i32, %c0_i32_0, %c0_i32_1 : i32, i32, i32
  }
  func.func @transform_12(%arg0: i32) -> (i32, i32, i32) {
    %c0_i32 = arith.constant 0 : i32
    %c0_i32_0 = arith.constant 0 : i32
    %c0_i32_1 = arith.constant 0 : i32
    return %arg0, %c0_i32, %c0_i32_0 : i32, i32, i32
  }
}

</mosaic_0001>

<llo_original>
// kernel: encoder_forward.1
$region0: #{encoder_forward.1}
  #allocation0 [shape = 'u32[]', space=smem, size = 0x4, offset = 0x4, fixed_abs, tag = 'smem constant byte address 0x4 - core index']
  #allocation1 [shape = 'u32[144,128]{1,0:T(1,128)}', space=vmem, size = 0x12000, scoped, tag = 'internal scratch']
  %s0 = inlined_call_operand.vmem [shape: f32[2,8,32], index: 0, kind: input, shape index: {}]
  %s1 = inlined_call_operand.vmem [shape: f32[2,1,8], index: 1, kind: input, shape index: {}]
  %s2 = inlined_call_operand.vmem [shape: f32[3,4,32,8], index: 2, kind: input, shape index: {}]
  %s3 = inlined_call_operand.vmem [shape: f32[3,4,1,8], index: 3, kind: input, shape index: {}]
  %s4 = inlined_call_operand.vmem [shape: f32[32,32], index: 4, kind: input, shape index: {}]
  %s5 = inlined_call_operand.vmem [shape: f32[1,32], index: 5, kind: input, shape index: {}]
  %s6 = inlined_call_operand.vmem [shape: f32[32,64], index: 6, kind: input, shape index: {}]
  %s7 = inlined_call_operand.vmem [shape: f32[1,64], index: 7, kind: input, shape index: {}]
  %s8 = inlined_call_operand.vmem [shape: f32[64,32], index: 8, kind: input, shape index: {}]
  %s9 = inlined_call_operand.vmem [shape: f32[1,32], index: 9, kind: input, shape index: {}]
  %s10 = inlined_call_operand.vmem [shape: f32[3,1,32], index: 10, kind: input, shape index: {}]
  %s11 = inlined_call_operand.vmem [shape: f32[3,1,32], index: 11, kind: input, shape index: {}]
  %s12 = inlined_call_operand.hbm [shape: f32[2,8,32], index: 12, kind: output, shape index: {}]
  %s13 = sld [smem:[#allocation0]]
  $region88: #{encoder_forward.1} parent=0
    _
  %s15 = ssub.s32 1, %s13
  %s16 = scalar_select 0, %s15, %s13
  $region1: #{encoder_forward.1} parent=0
    #allocation2 [shape = 'u8[8192]{0}', space=vmem, size = 0x2000, scoped, tag = 'output window, operand 0']
    #allocation3 [shape = 's32[2]{0}', space=sflag, size = 0x8, scoped, tag = 'scoped memory for encoder_forward.1']
    %17 = vsyncpa [#allocation3], 0
    %s18 = scalar_lea.sflag [#allocation3], 1
    %19 = vsyncpa %s18, 0
    loop: start=0, step=1, limit=4
    $region2: #{encoder_forward.1} parent=1 // loop_pre_header
      _
    $region3: #{encoder_forward.1} parent=1 // loop_header
      %s21 = sphi 0, %s25
      %p22 = scmp.ge.s32.totalorder %s21, 4
      %s31 = sphi 0, %s33
      %s34 = sphi 0, %s31
      %s35 = sphi 0, %s34
      %s51 = sphi 0, %s35
      %s57 = sphi 0, %s59
      %s60 = sphi 0, %s57
      %s61 = sphi 0, %s60
      %s77 = sphi 0, %s61
      %s81 = sphi 0, %s81
      %s83 = sphi 0, %s81
      %s84 = sphi 0, %s83
      %s98 = sphi 0, %s84
      %s102 = sphi 0, %s102
      %s104 = sphi 0, %s102
      %s105 = sphi 0, %s104
      %s119 = sphi 0, %s105
      %s123 = sphi 0, %s123
      %s125 = sphi 0, %s123
      %s126 = sphi 0, %s125
      %s140 = sphi 0, %s126
      %s144 = sphi 0, %s144
      %s146 = sphi 0, %s144
      %s147 = sphi 0, %s146
      %s161 = sphi 0, %s147
      %s165 = sphi 0, %s165
      %s167 = sphi 0, %s165
      %s168 = sphi 0, %s167
      %s182 = sphi 0, %s168
      %s186 = sphi 0, %s186
      %s188 = sphi 0, %s186
      %s189 = sphi 0, %s188
      %s203 = sphi 0, %s189
      %s207 = sphi 0, %s207
      %s209 = sphi 0, %s207
      %s210 = sphi 0, %s209
      %s224 = sphi 0, %s210
      %s228 = sphi 0, %s228
      %s230 = sphi 0, %s228
      %s231 = sphi 0, %s230
      %s245 = sphi 0, %s231
      %s249 = sphi 0, %s249
      %s251 = sphi 0, %s249
      %s252 = sphi 0, %s251
      %s266 = sphi 0, %s252
      %s270 = sphi 0, %s270
      %s272 = sphi 0, %s270
      %s273 = sphi 0, %s272
      %s287 = sphi 0, %s273
      %s293 = sphi 0, %s295
      %s296 = sphi 0, %s293
      %s297 = sphi 0, %s296
      %s313 = sphi 0, %s297
    $region4: #{encoder_forward.1} parent=1 // loop_header_branch
      %24 = sbr.rel (%p22) target = $region8
    $region5: #{encoder_forward.1} parent=1 // loop_body
      %s26 = ssub.s32 %s21, 1
      %s27 = ssub.s32 %s21, 2
      %s28 = sadd.s32 %s21, 1
      %s29 = ssub.s32 %s21, %s28
      %p30 = scmp.eq.s32.totalorder %s29, 0
      %s32 = sadd.s32 %s31, 1
      %s33 = scalar_select %p30, %s31, %s32
      %p36 = pneg %p30
      %p37 = scmp.eq.s32.totalorder %s21, 1
      %p38 = por %p36, %p37
      %p39 = scmp.ne.s32.totalorder %s31, %s34
      %p40 = scmp.eq.s32.totalorder %s21, 0
      %p41 = por %p39, %p40
      %p42 = scmp.ne.s32.totalorder %s31, %s34
      %p43 = scmp.eq.s32.totalorder %s26, 1
      %p44 = por %p42, %p43
      %p45 = scmp.ne.s32.totalorder %s34, %s35
      %p46 = scmp.eq.s32.totalorder %s26, 0
      %p47 = por %p45, %p46
      %p48 = scmp.ne.s32.totalorder %s34, %s35
      %p49 = scmp.eq.s32.totalorder %s27, 1
      %p50 = por %p48, %p49
      %p52 = scmp.ne.s32.totalorder %s35, %s51
      %p53 = scmp.eq.s32.totalorder %s27, 0
      %p54 = por %p52, %p53
      %s55 = ssub.s32 %s21, %s28
      %p56 = scmp.eq.s32.totalorder %s55, 0
      %s58 = sadd.s32 %s57, 1
      %s59 = scalar_select %p56, %s57, %s58
      %p62 = pneg %p56
      %p63 = scmp.eq.s32.totalorder %s21, 1
      %p64 = por %p62, %p63
      %p65 = scmp.ne.s32.totalorder %s57, %s60
      %p66 = scmp.eq.s32.totalorder %s21, 0
      %p67 = por %p65, %p66
      %p68 = scmp.ne.s32.totalorder %s57, %s60
      %p69 = scmp.eq.s32.totalorder %s26, 1
      %p70 = por %p68, %p69
      %p71 = scmp.ne.s32.totalorder %s60, %s61
      %p72 = scmp.eq.s32.totalorder %s26, 0
      %p73 = por %p71, %p72
      %p74 = scmp.ne.s32.totalorder %s60, %s61
      %p75 = scmp.eq.s32.totalorder %s27, 1
      %p76 = por %p74, %p75
      %p78 = scmp.ne.s32.totalorder %s61, %s77
      %p79 = scmp.eq.s32.totalorder %s27, 0
      %p80 = por %p78, %p79
      %s82 = sadd.s32 %s81, 1
      %p85 = scmp.eq.s32.totalorder %s21, 1
      %p86 = scmp.ne.s32.totalorder %s81, %s83
      %p87 = scmp.eq.s32.totalorder %s21, 0
      %p88 = por %p86, %p87
      %p89 = scmp.ne.s32.totalorder %s81, %s83
      %p90 = scmp.eq.s32.totalorder %s26, 1
      %p91 = por %p89, %p90
      %p92 = scmp.ne.s32.totalorder %s83, %s84
      %p93 = scmp.eq.s32.totalorder %s26, 0
      %p94 = por %p92, %p93
      %p95 = scmp.ne.s32.totalorder %s83, %s84
      %p96 = scmp.eq.s32.totalorder %s27, 1
      %p97 = por %p95, %p96
      %p99 = scmp.ne.s32.totalorder %s84, %s98
      %p100 = scmp.eq.s32.totalorder %s27, 0
      %p101 = por %p99, %p100
      %s103 = sadd.s32 %s102, 1
      %p106 = scmp.eq.s32.totalorder %s21, 1
      %p107 = scmp.ne.s32.totalorder %s102, %s104
      %p108 = scmp.eq.s32.totalorder %s21, 0
      %p109 = por %p107, %p108
      %p110 = scmp.ne.s32.totalorder %s102, %s104
      %p111 = scmp.eq.s32.totalorder %s26, 1
      %p112 = por %p110, %p111
      %p113 = scmp.ne.s32.totalorder %s104, %s105
      %p114 = scmp.eq.s32.totalorder %s26, 0
      %p115 = por %p113, %p114
      %p116 = scmp.ne.s32.totalorder %s104, %s105
      %p117 = scmp.eq.s32.totalorder %s27, 1
      %p118 = por %p116, %p117
      %p120 = scmp.ne.s32.totalorder %s105, %s119
      %p121 = scmp.eq.s32.totalorder %s27, 0
      %p122 = por %p120, %p121
      %s124 = sadd.s32 %s123, 1
      %p127 = scmp.eq.s32.totalorder %s21, 1
      %p128 = scmp.ne.s32.totalorder %s123, %s125
      %p129 = scmp.eq.s32.totalorder %s21, 0
      %p130 = por %p128, %p129
      %p131 = scmp.ne.s32.totalorder %s123, %s125
      %p132 = scmp.eq.s32.totalorder %s26, 1
      %p133 = por %p131, %p132
      %p134 = scmp.ne.s32.totalorder %s125, %s126
      %p135 = scmp.eq.s32.totalorder %s26, 0
      %p136 = por %p134, %p135
      %p137 = scmp.ne.s32.totalorder %s125, %s126
      %p138 = scmp.eq.s32.totalorder %s27, 1
      %p139 = por %p137, %p138
      %p141 = scmp.ne.s32.totalorder %s126, %s140
      %p142 = scmp.eq.s32.totalorder %s27, 0
      %p143 = por %p141, %p142
      %s145 = sadd.s32 %s144, 1
      %p148 = scmp.eq.s32.totalorder %s21, 1
      %p149 = scmp.ne.s32.totalorder %s144, %s146
      %p150 = scmp.eq.s32.totalorder %s21, 0
      %p151 = por %p149, %p150
      %p152 = scmp.ne.s32.totalorder %s144, %s146
      %p153 = scmp.eq.s32.totalorder %s26, 1
      %p154 = por %p152, %p153
      %p155 = scmp.ne.s32.totalorder %s146, %s147
      %p156 = scmp.eq.s32.totalorder %s26, 0
      %p157 = por %p155, %p156
      %p158 = scmp.ne.s32.totalorder %s146, %s147
      %p159 = scmp.eq.s32.totalorder %s27, 1
      %p160 = por %p158, %p159
      %p162 = scmp.ne.s32.totalorder %s147, %s161
      %p163 = scmp.eq.s32.totalorder %s27, 0
      %p164 = por %p162, %p163
      %s166 = sadd.s32 %s165, 1
      %p169 = scmp.eq.s32.totalorder %s21, 1
      %p170 = scmp.ne.s32.totalorder %s165, %s167
      %p171 = scmp.eq.s32.totalorder %s21, 0
      %p172 = por %p170, %p171
      %p173 = scmp.ne.s32.totalorder %s165, %s167
      %p174 = scmp.eq.s32.totalorder %s26, 1
      %p175 = por %p173, %p174
      %p176 = scmp.ne.s32.totalorder %s167, %s168
      %p177 = scmp.eq.s32.totalorder %s26, 0
      %p178 = por %p176, %p177
      %p179 = scmp.ne.s32.totalorder %s167, %s168
      %p180 = scmp.eq.s32.totalorder %s27, 1
      %p181 = por %p179, %p180
      %p183 = scmp.ne.s32.totalorder %s168, %s182
      %p184 = scmp.eq.s32.totalorder %s27, 0
      %p185 = por %p183, %p184
      %s187 = sadd.s32 %s186, 1
      %p190 = scmp.eq.s32.totalorder %s21, 1
      %p191 = scmp.ne.s32.totalorder %s186, %s188
      %p192 = scmp.eq.s32.totalorder %s21, 0
      %p193 = por %p191, %p192
      %p194 = scmp.ne.s32.totalorder %s186, %s188
      %p195 = scmp.eq.s32.totalorder %s26, 1
      %p196 = por %p194, %p195
      %p197 = scmp.ne.s32.totalorder %s188, %s189
      %p198 = scmp.eq.s32.totalorder %s26, 0
      %p199 = por %p197, %p198
      %p200 = scmp.ne.s32.totalorder %s188, %s189
      %p201 = scmp.eq.s32.totalorder %s27, 1
      %p202 = por %p200, %p201
      %p204 = scmp.ne.s32.totalorder %s189, %s203
      %p205 = scmp.eq.s32.totalorder %s27, 0
      %p206 = por %p204, %p205
      %s208 = sadd.s32 %s207, 1
      %p211 = scmp.eq.s32.totalorder %s21, 1
      %p212 = scmp.ne.s32.totalorder %s207, %s209
      %p213 = scmp.eq.s32.totalorder %s21, 0
      %p214 = por %p212, %p213
      %p215 = scmp.ne.s32.totalorder %s207, %s209
      %p216 = scmp.eq.s32.totalorder %s26, 1
      %p217 = por %p215, %p216
      %p218 = scmp.ne.s32.totalorder %s209, %s210
      %p219 = scmp.eq.s32.totalorder %s26, 0
      %p220 = por %p218, %p219
      %p221 = scmp.ne.s32.totalorder %s209, %s210
      %p222 = scmp.eq.s32.totalorder %s27, 1
      %p223 = por %p221, %p222
      %p225 = scmp.ne.s32.totalorder %s210, %s224
      %p226 = scmp.eq.s32.totalorder %s27, 0
      %p227 = por %p225, %p226
      %s229 = sadd.s32 %s228, 1
      %p232 = scmp.eq.s32.totalorder %s21, 1
      %p233 = scmp.ne.s32.totalorder %s228, %s230
      %p234 = scmp.eq.s32.totalorder %s21, 0
      %p235 = por %p233, %p234
      %p236 = scmp.ne.s32.totalorder %s228, %s230
      %p237 = scmp.eq.s32.totalorder %s26, 1
      %p238 = por %p236, %p237
      %p239 = scmp.ne.s32.totalorder %s230, %s231
      %p240 = scmp.eq.s32.totalorder %s26, 0
      %p241 = por %p239, %p240
      %p242 = scmp.ne.s32.totalorder %s230, %s231
      %p243 = scmp.eq.s32.totalorder %s27, 1
      %p244 = por %p242, %p243
      %p246 = scmp.ne.s32.totalorder %s231, %s245
      %p247 = scmp.eq.s32.totalorder %s27, 0
      %p248 = por %p246, %p247
      %s250 = sadd.s32 %s249, 1
      %p253 = scmp.eq.s32.totalorder %s21, 1
      %p254 = scmp.ne.s32.totalorder %s249, %s251
      %p255 = scmp.eq.s32.totalorder %s21, 0
      %p256 = por %p254, %p255
      %p257 = scmp.ne.s32.totalorder %s249, %s251
      %p258 = scmp.eq.s32.totalorder %s26, 1
      %p259 = por %p257, %p258
      %p260 = scmp.ne.s32.totalorder %s251, %s252
      %p261 = scmp.eq.s32.totalorder %s26, 0
      %p262 = por %p260, %p261
      %p263 = scmp.ne.s32.totalorder %s251, %s252
      %p264 = scmp.eq.s32.totalorder %s27, 1
      %p265 = por %p263, %p264
      %p267 = scmp.ne.s32.totalorder %s252, %s266
      %p268 = scmp.eq.s32.totalorder %s27, 0
      %p269 = por %p267, %p268
      %s271 = sadd.s32 %s270, 1
      %p274 = scmp.eq.s32.totalorder %s21, 1
      %p275 = scmp.ne.s32.totalorder %s270, %s272
      %p276 = scmp.eq.s32.totalorder %s21, 0
      %p277 = por %p275, %p276
      %p278 = scmp.ne.s32.totalorder %s270, %s272
      %p279 = scmp.eq.s32.totalorder %s26, 1
      %p280 = por %p278, %p279
      %p281 = scmp.ne.s32.totalorder %s272, %s273
      %p282 = scmp.eq.s32.totalorder %s26, 0
      %p283 = por %p281, %p282
      %p284 = scmp.ne.s32.totalorder %s272, %s273
      %p285 = scmp.eq.s32.totalorder %s27, 1
      %p286 = por %p284, %p285
      %p288 = scmp.ne.s32.totalorder %s273, %s287
      %p289 = scmp.eq.s32.totalorder %s27, 0
      %p290 = por %p288, %p289
      %s291 = ssub.s32 %s21, %s28
      %p292 = scmp.eq.s32.totalorder %s291, 0
      %s294 = sadd.s32 %s293, 1
      %s295 = scalar_select %p292, %s293, %s294
      %p298 = pneg %p292
      %p299 = scmp.eq.s32.totalorder %s21, 1
      %p300 = por %p298, %p299
      %p301 = scmp.ne.s32.totalorder %s293, %s296
      %p302 = scmp.eq.s32.totalorder %s21, 0
      %p303 = por %p301, %p302
      %p304 = scmp.ne.s32.totalorder %s293, %s296
      %p305 = scmp.eq.s32.totalorder %s26, 1
      %p306 = por %p304, %p305
      %p307 = scmp.ne.s32.totalorder %s296, %s297
      %p308 = scmp.eq.s32.totalorder %s26, 0
      %p309 = por %p307, %p308
      %p310 = scmp.ne.s32.totalorder %s296, %s297
      %p311 = scmp.eq.s32.totalorder %s27, 1
      %p312 = por %p310, %p311
      %p314 = scmp.ne.s32.totalorder %s297, %s313
      %p315 = scmp.eq.s32.totalorder %s27, 0
      %p316 = por %p314, %p315
      %p317 = scmp.le.s32.totalorder 1, %s21
      %p318 = scmp.lt.s32.totalorder %s21, 3
      %p319 = pnand %p317, %p318
      %p320 = pneg %p319
      // Predicated region
      $region9: #{encoder_forward.1} parent=5 // pred_check
        _
      $region10: #{encoder_forward.1} parent=5 // pred_check_branch
        %322 = sbr.rel (%p319) target = $region12
      $region11: #{encoder_forward.1} parent=5 // pred_region
        %s323 = ssub.s32 %s21, 1
        // Predicated region
        $region13: #{encoder_forward.1} parent=11 // pred_check
          %p324 = pneg %p94
        $region14: #{encoder_forward.1} parent=11 // pred_check_branch
          %326 = sbr.rel (%p324) target = $region16
        $region15: #{encoder_forward.1} parent=11 // pred_region
          _
        $region16: #{encoder_forward.1} parent=11 // pred_fallthru
          _
        // Predicated region
        $region17: #{encoder_forward.1} parent=11 // pred_check
          %p327 = pneg %p115
        $region18: #{encoder_forward.1} parent=11 // pred_check_branch
          %329 = sbr.rel (%p327) target = $region20
        $region19: #{encoder_forward.1} parent=11 // pred_region
          _
        $region20: #{encoder_forward.1} parent=11 // pred_fallthru
          _
        // Predicated region
        $region21: #{encoder_forward.1} parent=11 // pred_check
          %p330 = pneg %p136
        $region22: #{encoder_forward.1} parent=11 // pred_check_branch
          %332 = sbr.rel (%p330) target = $region24
        $region23: #{encoder_forward.1} parent=11 // pred_region
          _
        $region24: #{encoder_forward.1} parent=11 // pred_fallthru
          _
        // Predicated region
        $region25: #{encoder_forward.1} parent=11 // pred_check
          %p333 = pneg %p157
        $region26: #{encoder_forward.1} parent=11 // pred_check_branch
          %335 = sbr.rel (%p333) target = $region28
        $region27: #{encoder_forward.1} parent=11 // pred_region
          _
        $region28: #{encoder_forward.1} parent=11 // pred_fallthru
          _
        // Predicated region
        $region29: #{encoder_forward.1} parent=11 // pred_check
          %p336 = pneg %p178
        $region30: #{encoder_forward.1} parent=11 // pred_check_branch
          %338 = sbr.rel (%p336) target = $region32
        $region31: #{encoder_forward.1} parent=11 // pred_region
          _
        $region32: #{encoder_forward.1} parent=11 // pred_fallthru
          _
        // Predicated region
        $region33: #{encoder_forward.1} parent=11 // pred_check
          %p339 = pneg %p199
        $region34: #{encoder_forward.1} parent=11 // pred_check_branch
          %341 = sbr.rel (%p339) target = $region36
        $region35: #{encoder_forward.1} parent=11 // pred_region
          _
        $region36: #{encoder_forward.1} parent=11 // pred_fallthru
          _
        // Predicated region
        $region37: #{encoder_forward.1} parent=11 // pred_check
          %p342 = pneg %p220
        $region38: #{encoder_forward.1} parent=11 // pred_check_branch
          %344 = sbr.rel (%p342) target = $region40
        $region39: #{encoder_forward.1} parent=11 // pred_region
          _
        $region40: #{encoder_forward.1} parent=11 // pred_fallthru
          _
        // Predicated region
        $region41: #{encoder_forward.1} parent=11 // pred_check
          %p345 = pneg %p241
        $region42: #{encoder_forward.1} parent=11 // pred_check_branch
          %347 = sbr.rel (%p345) target = $region44
        $region43: #{encoder_forward.1} parent=11 // pred_region
          _
        $region44: #{encoder_forward.1} parent=11 // pred_fallthru
          _
        // Predicated region
        $region45: #{encoder_forward.1} parent=11 // pred_check
          %p348 = pneg %p262
        $region46: #{encoder_forward.1} parent=11 // pred_check_branch
          %350 = sbr.rel (%p348) target = $region48
        $region47: #{encoder_forward.1} parent=11 // pred_region
          _
        $region48: #{encoder_forward.1} parent=11 // pred_fallthru
          _
        // Predicated region
        $region49: #{encoder_forward.1} parent=11 // pred_check
          %p351 = pneg %p283
        $region50: #{encoder_forward.1} parent=11 // pred_check_branch
          %353 = sbr.rel (%p351) target = $region52
        $region51: #{encoder_forward.1} parent=11 // pred_region
          _
        $region52: #{encoder_forward.1} parent=11 // pred_fallthru
          _
      $region12: #{encoder_forward.1} parent=5 // pred_fallthru
        _
      %p354 = scmp.lt.s32.totalorder %s21, 2
      // Predicated region
      $region53: #{encoder_forward.1} parent=5 // pred_check
        %p355 = pneg %p354
      $region54: #{encoder_forward.1} parent=5 // pred_check_branch
        %357 = sbr.rel (%p355) target = $region56
      $region55: #{encoder_forward.1} parent=5 // pred_region
        // Predicated region
        $region57: #{encoder_forward.1} parent=55 // pred_check
          %p358 = pneg %p41
        $region58: #{encoder_forward.1} parent=55 // pred_check_branch
          %360 = sbr.rel (%p358) target = $region60
        $region59: #{encoder_forward.1} parent=55 // pred_region
          %p361 = scmp.lt.s32.totalorder %s21, 1
          %s362 = scalar_select %p361, %s21, 1
          %s363 = smul.addr %s362, 8
          %s364 = scalar_lea.vmem %s0, %s363
        $region60: #{encoder_forward.1} parent=55 // pred_fallthru
          _
        // Predicated region
        $region61: #{encoder_forward.1} parent=55 // pred_check
          %p365 = pneg %p67
        $region62: #{encoder_forward.1} parent=55 // pred_check_branch
          %367 = sbr.rel (%p365) target = $region64
        $region63: #{encoder_forward.1} parent=55 // pred_region
          %p368 = scmp.lt.s32.totalorder %s21, 1
          %s369 = scalar_select %p368, %s21, 1
          %s370 = scalar_lea.vmem %s1, %s369
        $region64: #{encoder_forward.1} parent=55 // pred_fallthru
          _
      $region56: #{encoder_forward.1} parent=5 // pred_fallthru
        _
      %p371 = scmp.le.s32.totalorder 1, %s21
      %p372 = scmp.lt.s32.totalorder %s21, 3
      %p373 = pnand %p371, %p372
      %p374 = pneg %p373
      // Predicated region
      $region65: #{encoder_forward.1} parent=5 // pred_check
        _
      $region66: #{encoder_forward.1} parent=5 // pred_check_branch
        %376 = sbr.rel (%p373) target = $region68
      $region67: #{encoder_forward.1} parent=5 // pred_region
        %s377 = ssub.s32 %s21, 1
        %p378 = scmp.lt.s32.totalorder %s26, 1
        %s379 = scalar_select %p378, %s26, 1
        %s380 = smul.addr %s379, 8
        %s381 = scalar_lea.vmem %s0, %s380
        %p382 = pneg %p47
        %p383 = pneg %p44
        %p384 = scmp.lt.s32.totalorder %s26, 1
        %s385 = scalar_select %p384, %s26, 1
        %s386 = scalar_lea.vmem %s1, %s385
        %p387 = pneg %p73
        %p388 = pneg %p70
        %p389 = pneg %p94
        %p390 = pneg %p91
        %p391 = pneg %p115
        %p392 = pneg %p112
        %p393 = pneg %p136
        %p394 = pneg %p133
        %p395 = pneg %p157
        %p396 = pneg %p154
        %p397 = pneg %p178
        %p398 = pneg %p175
        %p399 = pneg %p199
        %p400 = pneg %p196
        %p401 = pneg %p220
        %p402 = pneg %p217
        %p403 = pneg %p241
        %p404 = pneg %p238
        %p405 = pneg %p262
        %p406 = pneg %p259
        %p407 = pneg %p283
        %p408 = pneg %p280
        %p409 = pneg %p309
        %p410 = pneg %p306
        %s411 = sand.u32 %s296, 1
        %s412 = scalar_lea.sflag [#allocation3], %s411
        %s413 = sand.u32 %s296, 1
        %s414 = smul.addr %s413, 8
        %s415 = scalar_lea.vmem [#allocation2], %s414
        %p416 = scmp.lt.s32.totalorder %s26, 1
        %s417 = scalar_select %p416, %s26, 1
        %s418 = smul.addr %s417, 8
        %s419 = scalar_lea.vmem %s0, %s418
        %p420 = scmp.lt.s32.totalorder %s26, 1
        %s421 = scalar_select %p420, %s26, 1
        %s422 = scalar_lea.vmem %s1, %s421
        %v423 = vld [vmem:[%s419] sm:$0xff]
        %v424 = vld [vmem:[%s422] sm:$0x1]
        %v425 = vld [vmem:[%s4] sm:$0xff]
        %v426 = vld [vmem:[%s4 + $0x8] sm:$0xff]
        %v427 = vld [vmem:[%s4 + $0x10] sm:$0xff]
        %v428 = vld [vmem:[%s4 + $0x18] sm:$0xff]
        %v429 = vld [vmem:[%s5] sm:$0x1]
        %v430 = vld [vmem:[%s6] sm:$0xff]
        %v431 = vld [vmem:[%s6 + $0x8] sm:$0xff]
        %v432 = vld [vmem:[%s6 + $0x10] sm:$0xff]
        %v433 = vld [vmem:[%s6 + $0x18] sm:$0xff]
        %v434 = vld [vmem:[%s7] sm:$0x1]
        %v435 = vld [vmem:[%s8] sm:$0xff]
        %v436 = vld [vmem:[%s8 + $0x8] sm:$0xff]
        %v437 = vld [vmem:[%s8 + $0x10] sm:$0xff]
        %v438 = vld [vmem:[%s8 + $0x18] sm:$0xff]
        %v439 = vld [vmem:[%s8 + $0x20] sm:$0xff]
        %v440 = vld [vmem:[%s8 + $0x28] sm:$0xff]
        %v441 = vld [vmem:[%s8 + $0x30] sm:$0xff]
        %v442 = vld [vmem:[%s8 + $0x38] sm:$0xff]
        %v443 = vld [vmem:[%s9] sm:$0x1]
        %v444 = vld [vmem:[%s10] sm:$0x1]
        %v445 = vld [vmem:[%s11] sm:$0x1]
        %s446 = scalar_lea.vmem %s10, 1
        %v447 = vld [vmem:[%s446] sm:$0x1]
        %s448 = scalar_lea.vmem %s11, 1
        %v449 = vld [vmem:[%s448] sm:$0x1]
        %s450 = scalar_lea.vmem %s10, 2
        %v451 = vld [vmem:[%s450] sm:$0x1]
        %s452 = scalar_lea.vmem %s11, 2
        %v453 = vld [vmem:[%s452] sm:$0x1]
        loop: start=0, step=1, limit=2
        $region69: #{encoder_forward.1} parent=67 // loop_pre_header
          _
        $region70: #{encoder_forward.1} parent=67 // loop_header
          %s455 = sphi 0, %s459
          %p456 = scmp.ge.s32.totalorder %s455, 2
          %v460 = vphi %v423, %v2645
        $region71: #{encoder_forward.1} parent=67 // loop_header_branch
          %458 = sbr.rel (%p456) target = $region75
        $region72: #{encoder_forward.1} parent=67 // loop_body
          %vm461 = vcmask 261120
          %v462 = vsel %vm461, %v460, 0.0
          %463 = vadd.xlane.f32.xlu0 %v462
          %v464 = vpop.xlane.xlu0 %463
          %v465 = vrcp.pop 32.0
          %v466 = vmul.f32 %v464, %v465
          %v467 = vsub.f32 %v460, %v466
          %v468 = vmul.f32 %v467, %v467
          %v469 = vsel %vm461, %v468, 0.0
          %470 = vadd.xlane.f32.xlu0 %v469
          %v471 = vpop.xlane.xlu0 %470
          %v472 = vmul.f32 %v471, 0.032258064
          %v473 = vrsqrt.pop %v472
          %v474 = vmul.f32 %v472, %v473
          %vm475 = vcmp.eq.f32.partialorder %v472, inf
          %v476 = vsel %vm475, %v472, %v474
          %vm477 = vcmp.eq.f32.partialorder %v472, 0.0
          %v478 = vand.u32 %v472, 2147483648
          %v479 = vsel %vm477, %v478, %v476
          %v480 = vadd.f32 %v479, 1e-06
          %v481 = vrcp.pop %v480
          %v483 = vlaneseq
          %v484 = vshrl.u32 %v483, 7
          %v485 = vsub.s32 0, %v484
          %v486 = vrot.slane %v444, %v485
          %v488 = vmul.f32 %v486, %v467
          %v489 = vmul.f32 %v488, %v481
          %v491 = vlaneseq
          %v492 = vshrl.u32 %v491, 7
          %v493 = vsub.s32 0, %v492
          %v494 = vrot.slane %v445, %v493
          %v496 = vadd.f32 %v489, %v494
          %v497 = vld [vmem:[%s2] sm:$0xff]
          %v498 = vld [vmem:[%s2 + $0x8] sm:$0xff]
          %v499 = vld [vmem:[%s2 + $0x10] sm:$0xff]
          %v500 = vld [vmem:[%s2 + $0x18] sm:$0xff]
          %s501 = scalar_lea.vmem %s2, 128
          %v502 = vld [vmem:[%s501] sm:$0xff]
          %v503 = vld [vmem:[%s501 + $0x8] sm:$0xff]
          %v504 = vld [vmem:[%s501 + $0x10] sm:$0xff]
          %v505 = vld [vmem:[%s501 + $0x18] sm:$0xff]
          %s506 = scalar_lea.vmem %s2, 256
          %v507 = vld [vmem:[%s506] sm:$0xff]
          %v508 = vld [vmem:[%s506 + $0x8] sm:$0xff]
          %v509 = vld [vmem:[%s506 + $0x10] sm:$0xff]
          %v510 = vld [vmem:[%s506 + $0x18] sm:$0xff]
          %v511 = vld [vmem:[%s3] sm:$0x1]
          %s512 = scalar_lea.vmem %s3, 4
          %v513 = vld [vmem:[%s512] sm:$0x1]
          %s514 = scalar_lea.vmem %s3, 8
          %v515 = vld [vmem:[%s514] sm:$0x1]
          %v517 = vlaneseq
          %v518 = vshrl.u32 %v517, 7
          %v519 = vsub.s32 0, %v518
          %v520 = vrot.slane %v511, %v519
          %v523 = vsel %vm461, %v496, 0
          %525 = vmatprep.subr.mxu0 0.0
          %526 = vmatpush1.msra.mxu0 %v497
          %527 = vmatprep.subr.mxu0 0.0
          %528 = vmatpush1.msra.mxu0 %v498
          %529 = vmatprep.subr.mxu0 0.0
          %530 = vmatpush1.msra.mxu0 %v499
          %531 = vmatprep.subr.mxu0 0.0
          %532 = vmatpush1.msra.mxu0 %v500
          %533 = vmatprep.subr.mxu0 0.0
          %534 = vmatpush1.msra.mxu0 0.0
          %535 = vmatprep.subr.mxu0 0.0
          %536 = vmatpush1.msra.mxu0 0.0
          %537 = vmatprep.subr.mxu0 0.0
          %538 = vmatpush1.msra.mxu0 0.0
          %539 = vmatprep.subr.mxu0 0.0
          %540 = vmatpush1.msra.mxu0 0.0
          %541 = vmatprep.subr.mxu0 0.0
          %542 = vmatpush1.msra.mxu0 0.0
          %543 = vmatprep.subr.mxu0 0.0
          %544 = vmatpush1.msra.mxu0 0.0
          %545 = vmatprep.subr.mxu0 0.0
          %546 = vmatpush1.msra.mxu0 0.0
          %547 = vmatprep.subr.mxu0 0.0
          %548 = vmatpush1.msra.mxu0 0.0
          %549 = vmatprep.subr.mxu0 0.0
          %550 = vmatpush1.msra.mxu0 0.0
          %551 = vmatprep.subr.mxu0 0.0
          %552 = vmatpush1.msra.mxu0 0.0
          %553 = vmatprep.subr.mxu0 0.0
          %554 = vmatpush1.msra.mxu0 0.0
          %555 = vmatprep.subr.mxu0 0.0
          %556 = vmatpush1.msra.mxu0 0.0
          %557 = vmatprep.subr.mxu0 0.0
          %558 = vmatpush1.msra.mxu0 0.0
          %559 = vmatprep.subr.mxu0 0.0
          %560 = vmatpush1.msra.mxu0 0.0
          %561 = vmatprep.subr.mxu0 0.0
          %562 = vmatpush1.msra.mxu0 0.0
          %563 = vmatprep.subr.mxu0 0.0
          %564 = vmatpush1.msra.mxu0 0.0
          %565 = vmatprep.subr.mxu0 0.0
          %566 = vmatpush1.msra.mxu0 0.0
          %567 = vmatprep.subr.mxu0 0.0
          %568 = vmatpush1.msra.mxu0 0.0
          %569 = vmatprep.subr.mxu0 0.0
          %570 = vmatpush1.msra.mxu0 0.0
          %571 = vmatprep.subr.mxu0 0.0
          %572 = vmatpush1.msra.mxu0 0.0
          %573 = vmatprep.subr.mxu0 0.0
          %574 = vmatpush1.msra.mxu0 0.0
          %575 = vmatprep.subr.mxu0 0.0
          %576 = vmatpush1.msra.mxu0 0.0
          %577 = vmatprep.subr.mxu0 0.0
          %578 = vmatpush1.msra.mxu0 0.0
          %579 = vmatprep.subr.mxu0 0.0
          %580 = vmatpush1.msra.mxu0 0.0
          %581 = vmatprep.subr.mxu0 0.0
          %582 = vmatpush1.msra.mxu0 0.0
          %583 = vmatprep.subr.mxu0 0.0
          %584 = vmatpush1.msra.mxu0 0.0
          %585 = vmatprep.subr.mxu0 0.0
          %586 = vmatpush1.msra.mxu0 0.0
          %587 = vmatprep.subr.mxu0 0.0
          %588 = vmatpush1.msra.mxu0 0.0
          %589 = vmatprep.mubr.f32.mxu0 0.0
          %590 = vmatmul.mubr.f32.gmra.mrb[0].mxu0 %v523
          %v591 = vpop.f32.mrb[0].mxu0
          %v592 = vadd.f32 %v520, %v591
          %v593 = vpop.f32.mrb[0].mxu0
          %594 = vdwg.mxu0
          %v596 = vlaneseq
          %v597 = vshrl.u32 %v596, 7
          %v598 = vsub.s32 0, %v597
          %v599 = vrot.slane %v513, %v598
          %601 = vmatprep.subr.mxu0 0.0
          %602 = vmatpush1.msra.mxu0 %v502
          %603 = vmatprep.subr.mxu0 0.0
          %604 = vmatpush1.msra.mxu0 %v503
          %605 = vmatprep.subr.mxu0 0.0
          %606 = vmatpush1.msra.mxu0 %v504
          %607 = vmatprep.subr.mxu0 0.0
          %608 = vmatpush1.msra.mxu0 %v505
          %609 = vmatprep.subr.mxu0 0.0
          %610 = vmatpush1.msra.mxu0 0.0
          %611 = vmatprep.subr.mxu0 0.0
          %612 = vmatpush1.msra.mxu0 0.0
          %613 = vmatprep.subr.mxu0 0.0
          %614 = vmatpush1.msra.mxu0 0.0
          %615 = vmatprep.subr.mxu0 0.0
          %616 = vmatpush1.msra.mxu0 0.0
          %617 = vmatprep.subr.mxu0 0.0
          %618 = vmatpush1.msra.mxu0 0.0
          %619 = vmatprep.subr.mxu0 0.0
          %620 = vmatpush1.msra.mxu0 0.0
          %621 = vmatprep.subr.mxu0 0.0
          %622 = vmatpush1.msra.mxu0 0.0
          %623 = vmatprep.subr.mxu0 0.0
          %624 = vmatpush1.msra.mxu0 0.0
          %625 = vmatprep.subr.mxu0 0.0
          %626 = vmatpush1.msra.mxu0 0.0
          %627 = vmatprep.subr.mxu0 0.0
          %628 = vmatpush1.msra.mxu0 0.0
          %629 = vmatprep.subr.mxu0 0.0
          %630 = vmatpush1.msra.mxu0 0.0
          %631 = vmatprep.subr.mxu0 0.0
          %632 = vmatpush1.msra.mxu0 0.0
          %633 = vmatprep.subr.mxu0 0.0
          %634 = vmatpush1.msra.mxu0 0.0
          %635 = vmatprep.subr.mxu0 0.0
          %636 = vmatpush1.msra.mxu0 0.0
          %637 = vmatprep.subr.mxu0 0.0
          %638 = vmatpush1.msra.mxu0 0.0
          %639 = vmatprep.subr.mxu0 0.0
          %640 = vmatpush1.msra.mxu0 0.0
          %641 = vmatprep.subr.mxu0 0.0
          %642 = vmatpush1.msra.mxu0 0.0
          %643 = vmatprep.subr.mxu0 0.0
          %644 = vmatpush1.msra.mxu0 0.0
          %645 = vmatprep.subr.mxu0 0.0
          %646 = vmatpush1.msra.mxu0 0.0
          %647 = vmatprep.subr.mxu0 0.0
          %648 = vmatpush1.msra.mxu0 0.0
          %649 = vmatprep.subr.mxu0 0.0
          %650 = vmatpush1.msra.mxu0 0.0
          %651 = vmatprep.subr.mxu0 0.0
          %652 = vmatpush1.msra.mxu0 0.0
          %653 = vmatprep.subr.mxu0 0.0
          %654 = vmatpush1.msra.mxu0 0.0
          %655 = vmatprep.subr.mxu0 0.0
          %656 = vmatpush1.msra.mxu0 0.0
          %657 = vmatprep.subr.mxu0 0.0
          %658 = vmatpush1.msra.mxu0 0.0
          %659 = vmatprep.subr.mxu0 0.0
          %660 = vmatpush1.msra.mxu0 0.0
          %661 = vmatprep.subr.mxu0 0.0
          %662 = vmatpush1.msra.mxu0 0.0
          %663 = vmatprep.subr.mxu0 0.0
          %664 = vmatpush1.msra.mxu0 0.0
          %665 = vmatprep.mubr.f32.mxu0 0.0
          %666 = vmatmul.mubr.f32.gmra.mrb[0].mxu0 %v523
          %v667 = vpop.f32.mrb[0].mxu0
          %v668 = vadd.f32 %v599, %v667
          %v669 = vpop.f32.mrb[0].mxu0
          %670 = vdwg.mxu0
          %v672 = vlaneseq
          %v673 = vshrl.u32 %v672, 7
          %v674 = vsub.s32 0, %v673
          %v675 = vrot.slane %v515, %v674
          %677 = vmatprep.subr.mxu0 0.0
          %678 = vmatpush1.msra.mxu0 %v507
          %679 = vmatprep.subr.mxu0 0.0
          %680 = vmatpush1.msra.mxu0 %v508
          %681 = vmatprep.subr.mxu0 0.0
          %682 = vmatpush1.msra.mxu0 %v509
          %683 = vmatprep.subr.mxu0 0.0
          %684 = vmatpush1.msra.mxu0 %v510
          %685 = vmatprep.subr.mxu0 0.0
          %686 = vmatpush1.msra.mxu0 0.0
          %687 = vmatprep.subr.mxu0 0.0
          %688 = vmatpush1.msra.mxu0 0.0
          %689 = vmatprep.subr.mxu0 0.0
          %690 = vmatpush1.msra.mxu0 0.0
          %691 = vmatprep.subr.mxu0 0.0
          %692 = vmatpush1.msra.mxu0 0.0
          %693 = vmatprep.subr.mxu0 0.0
          %694 = vmatpush1.msra.mxu0 0.0
          %695 = vmatprep.subr.mxu0 0.0
          %696 = vmatpush1.msra.mxu0 0.0
          %697 = vmatprep.subr.mxu0 0.0
          %698 = vmatpush1.msra.mxu0 0.0
          %699 = vmatprep.subr.mxu0 0.0
          %700 = vmatpush1.msra.mxu0 0.0
          %701 = vmatprep.subr.mxu0 0.0
          %702 = vmatpush1.msra.mxu0 0.0
          %703 = vmatprep.subr.mxu0 0.0
          %704 = vmatpush1.msra.mxu0 0.0
          %705 = vmatprep.subr.mxu0 0.0
          %706 = vmatpush1.msra.mxu0 0.0
          %707 = vmatprep.subr.mxu0 0.0
          %708 = vmatpush1.msra.mxu0 0.0
          %709 = vmatprep.subr.mxu0 0.0
          %710 = vmatpush1.msra.mxu0 0.0
          %711 = vmatprep.subr.mxu0 0.0
          %712 = vmatpush1.msra.mxu0 0.0
          %713 = vmatprep.subr.mxu0 0.0
          %714 = vmatpush1.msra.mxu0 0.0
          %715 = vmatprep.subr.mxu0 0.0
          %716 = vmatpush1.msra.mxu0 0.0
          %717 = vmatprep.subr.mxu0 0.0
          %718 = vmatpush1.msra.mxu0 0.0
          %719 = vmatprep.subr.mxu0 0.0
          %720 = vmatpush1.msra.mxu0 0.0
          %721 = vmatprep.subr.mxu0 0.0
          %722 = vmatpush1.msra.mxu0 0.0
          %723 = vmatprep.subr.mxu0 0.0
          %724 = vmatpush1.msra.mxu0 0.0
          %725 = vmatprep.subr.mxu0 0.0
          %726 = vmatpush1.msra.mxu0 0.0
          %727 = vmatprep.subr.mxu0 0.0
          %728 = vmatpush1.msra.mxu0 0.0
          %729 = vmatprep.subr.mxu0 0.0
          %730 = vmatpush1.msra.mxu0 0.0
          %731 = vmatprep.subr.mxu0 0.0
          %732 = vmatpush1.msra.mxu0 0.0
          %733 = vmatprep.subr.mxu0 0.0
          %734 = vmatpush1.msra.mxu0 0.0
          %735 = vmatprep.subr.mxu0 0.0
          %736 = vmatpush1.msra.mxu0 0.0
          %737 = vmatprep.subr.mxu0 0.0
          %738 = vmatpush1.msra.mxu0 0.0
          %739 = vmatprep.subr.mxu0 0.0
          %740 = vmatpush1.msra.mxu0 0.0
          %741 = vmatprep.mubr.f32.mxu0 0.0
          %742 = vmatmul.mubr.f32.gmra.mrb[0].mxu0 %v523
          %v743 = vpop.f32.mrb[0].mxu0
          %v744 = vadd.f32 %v675, %v743
          %v745 = vpop.f32.mrb[0].mxu0
          %746 = vdwg.mxu0
          %vm747 = vcmask 64512
          %v749 = vsel %vm747, %v592, 0
          %v752 = vsel %vm747, %v668, 0
          %754 = vmatprep.subr.mxu0 0.0
          %755 = vmatpush1.xpose.msra.mxu0 %v752
          %756 = vmatprep.subr.mxu0 0.0
          %757 = vmatpush1.xpose.msra.mxu0 0.0
          %758 = vmatprep.subr.mxu0 0.0
          %759 = vmatpush1.xpose.msra.mxu0 0.0
          %760 = vmatprep.subr.mxu0 0.0
          %761 = vmatpush1.xpose.msra.mxu0 0.0
          %762 = vmatprep.subr.mxu0 0.0
          %763 = vmatpush1.xpose.msra.mxu0 0.0
          %764 = vmatprep.subr.mxu0 0.0
          %765 = vmatpush1.xpose.msra.mxu0 0.0
          %766 = vmatprep.subr.mxu0 0.0
          %767 = vmatpush1.xpose.msra.mxu0 0.0
          %768 = vmatprep.subr.mxu0 0.0
          %769 = vmatpush1.xpose.msra.mxu0 0.0
          %770 = vmatprep.subr.mxu0 0.0
          %771 = vmatpush1.xpose.msra.mxu0 0.0
          %772 = vmatprep.subr.mxu0 0.0
          %773 = vmatpush1.xpose.msra.mxu0 0.0
          %774 = vmatprep.subr.mxu0 0.0
          %775 = vmatpush1.xpose.msra.mxu0 0.0
          %776 = vmatprep.subr.mxu0 0.0
          %777 = vmatpush1.xpose.msra.mxu0 0.0
          %778 = vmatprep.subr.mxu0 0.0
          %779 = vmatpush1.xpose.msra.mxu0 0.0
          %780 = vmatprep.subr.mxu0 0.0
          %781 = vmatpush1.xpose.msra.mxu0 0.0
          %782 = vmatprep.subr.mxu0 0.0
          %783 = vmatpush1.xpose.msra.mxu0 0.0
          %784 = vmatprep.subr.mxu0 0.0
          %785 = vmatpush1.xpose.msra.mxu0 0.0
          %786 = vmatprep.subr.mxu0 0.0
          %787 = vmatpush1.xpose.msra.mxu0 0.0
          %788 = vmatprep.subr.mxu0 0.0
          %789 = vmatpush1.xpose.msra.mxu0 0.0
          %790 = vmatprep.subr.mxu0 0.0
          %791 = vmatpush1.xpose.msra.mxu0 0.0
          %792 = vmatprep.subr.mxu0 0.0
          %793 = vmatpush1.xpose.msra.mxu0 0.0
          %794 = vmatprep.subr.mxu0 0.0
          %795 = vmatpush1.xpose.msra.mxu0 0.0
          %796 = vmatprep.subr.mxu0 0.0
          %797 = vmatpush1.xpose.msra.mxu0 0.0
          %798 = vmatprep.subr.mxu0 0.0
          %799 = vmatpush1.xpose.msra.mxu0 0.0
          %800 = vmatprep.subr.mxu0 0.0
          %801 = vmatpush1.xpose.msra.mxu0 0.0
          %802 = vmatprep.subr.mxu0 0.0
          %803 = vmatpush1.xpose.msra.mxu0 0.0
          %804 = vmatprep.subr.mxu0 0.0
          %805 = vmatpush1.xpose.msra.mxu0 0.0
          %806 = vmatprep.subr.mxu0 0.0
          %807 = vmatpush1.xpose.msra.mxu0 0.0
          %808 = vmatprep.subr.mxu0 0.0
          %809 = vmatpush1.xpose.msra.mxu0 0.0
          %810 = vmatprep.subr.mxu0 0.0
          %811 = vmatpush1.xpose.msra.mxu0 0.0
          %812 = vmatprep.subr.mxu0 0.0
          %813 = vmatpush1.xpose.msra.mxu0 0.0
          %814 = vmatprep.subr.mxu0 0.0
          %815 = vmatpush1.xpose.msra.mxu0 0.0
          %816 = vmatprep.subr.mxu0 0.0
          %817 = vmatpush1.xpose.msra.mxu0 0.0
          %818 = vmatprep.mubr.f32.mxu0 0.0
          %819 = vmatmul.mubr.f32.gmra.mrb[0].mxu0 %v749
          %v820 = vpop.f32.mrb[0].mxu0
          %v821 = vadd.f32 0.0, %v820
          %v822 = vpop.f32.mrb[0].mxu0
          %823 = vdwg.mxu0
          %v824 = vmul.f32 %v821, 0.35355338
          %v826 = vlaneseq
          %v827 = vshrl.u32 %v826, 7
          %v828 = vsub.s32 0, %v827
          %v829 = vrot.slane %v424, %v828
          %v831 = vadd.f32 %v824, %v829
          %v832 = vsel %vm747, %v831, -inf
          %833 = vmax.xlane.f32.xlu0 %v832
          %v834 = vpop.xlane.xlu0 %833
          %v835 = vsub.f32 %v831, %v834
          %v836 = vmul.f32 %v835, 1.442695
          %v837 = vpow.pop %v836
          %v838 = vsel %vm747, %v837, 0.0
          %839 = vadd.xlane.f32.xlu0 %v838
          %v840 = vpop.xlane.xlu0 %839
          %v841 = vrcp.pop %v840
          %v842 = vmul.f32 %v837, %v841
          %v844 = vsel %vm747, %v842, 0
          %846 = vmatprep.subr.mxu0 0.0
          %847 = vmatpush1.msra.mxu0 %v744
          %848 = vmatprep.subr.mxu0 0.0
          %849 = vmatpush1.msra.mxu0 0.0
          %850 = vmatprep.subr.mxu0 0.0
          %851 = vmatpush1.msra.mxu0 0.0
          %852 = vmatprep.subr.mxu0 0.0
          %853 = vmatpush1.msra.mxu0 0.0
          %854 = vmatprep.subr.mxu0 0.0
          %855 = vmatpush1.msra.mxu0 0.0
          %856 = vmatprep.subr.mxu0 0.0
          %857 = vmatpush1.msra.mxu0 0.0
          %858 = vmatprep.subr.mxu0 0.0
          %859 = vmatpush1.msra.mxu0 0.0
          %860 = vmatprep.subr.mxu0 0.0
          %861 = vmatpush1.msra.mxu0 0.0
          %862 = vmatprep.subr.mxu0 0.0
          %863 = vmatpush1.msra.mxu0 0.0
          %864 = vmatprep.subr.mxu0 0.0
          %865 = vmatpush1.msra.mxu0 0.0
          %866 = vmatprep.subr.mxu0 0.0
          %867 = vmatpush1.msra.mxu0 0.0
          %868 = vmatprep.subr.mxu0 0.0
          %869 = vmatpush1.msra.mxu0 0.0
          %870 = vmatprep.subr.mxu0 0.0
          %871 = vmatpush1.msra.mxu0 0.0
          %872 = vmatprep.subr.mxu0 0.0
          %873 = vmatpush1.msra.mxu0 0.0
          %874 = vmatprep.subr.mxu0 0.0
          %875 = vmatpush1.msra.mxu0 0.0
          %876 = vmatprep.subr.mxu0 0.0
          %877 = vmatpush1.msra.mxu0 0.0
          %878 = vmatprep.subr.mxu0 0.0
          %879 = vmatpush1.msra.mxu0 0.0
          %880 = vmatprep.subr.mxu0 0.0
          %881 = vmatpush1.msra.mxu0 0.0
          %882 = vmatprep.subr.mxu0 0.0
          %883 = vmatpush1.msra.mxu0 0.0
          %884 = vmatprep.subr.mxu0 0.0
          %885 = vmatpush1.msra.mxu0 0.0
          %886 = vmatprep.subr.mxu0 0.0
          %887 = vmatpush1.msra.mxu0 0.0
          %888 = vmatprep.subr.mxu0 0.0
          %889 = vmatpush1.msra.mxu0 0.0
          %890 = vmatprep.subr.mxu0 0.0
          %891 = vmatpush1.msra.mxu0 0.0
          %892 = vmatprep.subr.mxu0 0.0
          %893 = vmatpush1.msra.mxu0 0.0
          %894 = vmatprep.subr.mxu0 0.0
          %895 = vmatpush1.msra.mxu0 0.0
          %896 = vmatprep.subr.mxu0 0.0
          %897 = vmatpush1.msra.mxu0 0.0
          %898 = vmatprep.subr.mxu0 0.0
          %899 = vmatpush1.msra.mxu0 0.0
          %900 = vmatprep.subr.mxu0 0.0
          %901 = vmatpush1.msra.mxu0 0.0
          %902 = vmatprep.subr.mxu0 0.0
          %903 = vmatpush1.msra.mxu0 0.0
          %904 = vmatprep.subr.mxu0 0.0
          %905 = vmatpush1.msra.mxu0 0.0
          %906 = vmatprep.subr.mxu0 0.0
          %907 = vmatpush1.msra.mxu0 0.0
          %908 = vmatprep.subr.mxu0 0.0
          %909 = vmatpush1.msra.mxu0 0.0
          %910 = vmatprep.mubr.f32.mxu0 0.0
          %911 = vmatmul.mubr.f32.gmra.mrb[0].mxu0 %v844
          %v912 = vpop.f32.mrb[0].mxu0
          %v913 = vadd.f32 0.0, %v912
          %v914 = vpop.f32.mrb[0].mxu0
          %915 = vdwg.mxu0
          %s916 = scalar_lea.vmem %s2, 32
          %v917 = vld [vmem:[%s916] sm:$0xff]
          %v918 = vld [vmem:[%s916 + $0x8] sm:$0xff]
          %v919 = vld [vmem:[%s916 + $0x10] sm:$0xff]
          %v920 = vld [vmem:[%s916 + $0x18] sm:$0xff]
          %s921 = scalar_lea.vmem %s2, 160
          %v922 = vld [vmem:[%s921] sm:$0xff]
          %v923 = vld [vmem:[%s921 + $0x8] sm:$0xff]
          %v924 = vld [vmem:[%s921 + $0x10] sm:$0xff]
          %v925 = vld [vmem:[%s921 + $0x18] sm:$0xff]
          %s926 = scalar_lea.vmem %s2, 288
          %v927 = vld [vmem:[%s926] sm:$0xff]
          %v928 = vld [vmem:[%s926 + $0x8] sm:$0xff]
          %v929 = vld [vmem:[%s926 + $0x10] sm:$0xff]
          %v930 = vld [vmem:[%s926 + $0x18] sm:$0xff]
          %s931 = scalar_lea.vmem %s3, 1
          %v932 = vld [vmem:[%s931] sm:$0x1]
          %s933 = scalar_lea.vmem %s3, 5
          %v934 = vld [vmem:[%s933] sm:$0x1]
          %s935 = scalar_lea.vmem %s3, 9
          %v936 = vld [vmem:[%s935] sm:$0x1]
          %v938 = vlaneseq
          %v939 = vshrl.u32 %v938, 7
          %v940 = vsub.s32 0, %v939
          %v941 = vrot.slane %v932, %v940
          %943 = vmatprep.subr.mxu0 0.0
          %944 = vmatpush1.msra.mxu0 %v917
          %945 = vmatprep.subr.mxu0 0.0
          %946 = vmatpush1.msra.mxu0 %v918
          %947 = vmatprep.subr.mxu0 0.0
          %948 = vmatpush1.msra.mxu0 %v919
          %949 = vmatprep.subr.mxu0 0.0
          %950 = vmatpush1.msra.mxu0 %v920
          %951 = vmatprep.subr.mxu0 0.0
          %952 = vmatpush1.msra.mxu0 0.0
          %953 = vmatprep.subr.mxu0 0.0
          %954 = vmatpush1.msra.mxu0 0.0
          %955 = vmatprep.subr.mxu0 0.0
          %956 = vmatpush1.msra.mxu0 0.0
          %957 = vmatprep.subr.mxu0 0.0
          %958 = vmatpush1.msra.mxu0 0.0
          %959 = vmatprep.subr.mxu0 0.0
          %960 = vmatpush1.msra.mxu0 0.0
          %961 = vmatprep.subr.mxu0 0.0
          %962 = vmatpush1.msra.mxu0 0.0
          %963 = vmatprep.subr.mxu0 0.0
          %964 = vmatpush1.msra.mxu0 0.0
          %965 = vmatprep.subr.mxu0 0.0
          %966 = vmatpush1.msra.mxu0 0.0
          %967 = vmatprep.subr.mxu0 0.0
          %968 = vmatpush1.msra.mxu0 0.0
          %969 = vmatprep.subr.mxu0 0.0
          %970 = vmatpush1.msra.mxu0 0.0
          %971 = vmatprep.subr.mxu0 0.0
          %972 = vmatpush1.msra.mxu0 0.0
          %973 = vmatprep.subr.mxu0 0.0
          %974 = vmatpush1.msra.mxu0 0.0
          %975 = vmatprep.subr.mxu0 0.0
          %976 = vmatpush1.msra.mxu0 0.0
          %977 = vmatprep.subr.mxu0 0.0
          %978 = vmatpush1.msra.mxu0 0.0
          %979 = vmatprep.subr.mxu0 0.0
          %980 = vmatpush1.msra.mxu0 0.0
          %981 = vmatprep.subr.mxu0 0.0
          %982 = vmatpush1.msra.mxu0 0.0
          %983 = vmatprep.subr.mxu0 0.0
          %984 = vmatpush1.msra.mxu0 0.0
          %985 = vmatprep.subr.mxu0 0.0
          %986 = vmatpush1.msra.mxu0 0.0
          %987 = vmatprep.subr.mxu0 0.0
          %988 = vmatpush1.msra.mxu0 0.0
          %989 = vmatprep.subr.mxu0 0.0
          %990 = vmatpush1.msra.mxu0 0.0
          %991 = vmatprep.subr.mxu0 0.0
          %992 = vmatpush1.msra.mxu0 0.0
          %993 = vmatprep.subr.mxu0 0.0
          %994 = vmatpush1.msra.mxu0 0.0
          %995 = vmatprep.subr.mxu0 0.0
          %996 = vmatpush1.msra.mxu0 0.0
          %997 = vmatprep.subr.mxu0 0.0
          %998 = vmatpush1.msra.mxu0 0.0
          %999 = vmatprep.subr.mxu0 0.0
          %1000 = vmatpush1.msra.mxu0 0.0
          %1001 = vmatprep.subr.mxu0 0.0
          %1002 = vmatpush1.msra.mxu0 0.0
          %1003 = vmatprep.subr.mxu0 0.0
          %1004 = vmatpush1.msra.mxu0 0.0
          %1005 = vmatprep.subr.mxu0 0.0
          %1006 = vmatpush1.msra.mxu0 0.0
          %1007 = vmatprep.mubr.f32.mxu0 0.0
          %1008 = vmatmul.mubr.f32.gmra.mrb[0].mxu0 %v523
          %v1009 = vpop.f32.mrb[0].mxu0
          %v1010 = vadd.f32 %v941, %v1009
          %v1011 = vpop.f32.mrb[0].mxu0
          %1012 = vdwg.mxu0
          %v1014 = vlaneseq
          %v1015 = vshrl.u32 %v1014, 7
          %v1016 = vsub.s32 0, %v1015
          %v1017 = vrot.slane %v934, %v1016
          %1019 = vmatprep.subr.mxu0 0.0
          %1020 = vmatpush1.msra.mxu0 %v922
          %1021 = vmatprep.subr.mxu0 0.0
          %1022 = vmatpush1.msra.mxu0 %v923
          %1023 = vmatprep.subr.mxu0 0.0
          %1024 = vmatpush1.msra.mxu0 %v924
          %1025 = vmatprep.subr.mxu0 0.0
          %1026 = vmatpush1.msra.mxu0 %v925
          %1027 = vmatprep.subr.mxu0 0.0
          %1028 = vmatpush1.msra.mxu0 0.0
          %1029 = vmatprep.subr.mxu0 0.0
          %1030 = vmatpush1.msra.mxu0 0.0
          %1031 = vmatprep.subr.mxu0 0.0
          %1032 = vmatpush1.msra.mxu0 0.0
          %1033 = vmatprep.subr.mxu0 0.0
          %1034 = vmatpush1.msra.mxu0 0.0
          %1035 = vmatprep.subr.mxu0 0.0
          %1036 = vmatpush1.msra.mxu0 0.0
          %1037 = vmatprep.subr.mxu0 0.0
          %1038 = vmatpush1.msra.mxu0 0.0
          %1039 = vmatprep.subr.mxu0 0.0
          %1040 = vmatpush1.msra.mxu0 0.0
          %1041 = vmatprep.subr.mxu0 0.0
          %1042 = vmatpush1.msra.mxu0 0.0
          %1043 = vmatprep.subr.mxu0 0.0
          %1044 = vmatpush1.msra.mxu0 0.0
          %1045 = vmatprep.subr.mxu0 0.0
          %1046 = vmatpush1.msra.mxu0 0.0
          %1047 = vmatprep.subr.mxu0 0.0
          %1048 = vmatpush1.msra.mxu0 0.0
          %1049 = vmatprep.subr.mxu0 0.0
          %1050 = vmatpush1.msra.mxu0 0.0
          %1051 = vmatprep.subr.mxu0 0.0
          %1052 = vmatpush1.msra.mxu0 0.0
          %1053 = vmatprep.subr.mxu0 0.0
          %1054 = vmatpush1.msra.mxu0 0.0
          %1055 = vmatprep.subr.mxu0 0.0
          %1056 = vmatpush1.msra.mxu0 0.0
          %1057 = vmatprep.subr.mxu0 0.0
          %1058 = vmatpush1.msra.mxu0 0.0
          %1059 = vmatprep.subr.mxu0 0.0
          %1060 = vmatpush1.msra.mxu0 0.0
          %1061 = vmatprep.subr.mxu0 0.0
          %1062 = vmatpush1.msra.mxu0 0.0
          %1063 = vmatprep.subr.mxu0 0.0
          %1064 = vmatpush1.msra.mxu0 0.0
          %1065 = vmatprep.subr.mxu0 0.0
          %1066 = vmatpush1.msra.mxu0 0.0
          %1067 = vmatprep.subr.mxu0 0.0
          %1068 = vmatpush1.msra.mxu0 0.0
          %1069 = vmatprep.subr.mxu0 0.0
          %1070 = vmatpush1.msra.mxu0 0.0
          %1071 = vmatprep.subr.mxu0 0.0
          %1072 = vmatpush1.msra.mxu0 0.0
          %1073 = vmatprep.subr.mxu0 0.0
          %1074 = vmatpush1.msra.mxu0 0.0
          %1075 = vmatprep.subr.mxu0 0.0
          %1076 = vmatpush1.msra.mxu0 0.0
          %1077 = vmatprep.subr.mxu0 0.0
          %1078 = vmatpush1.msra.mxu0 0.0
          %1079 = vmatprep.subr.mxu0 0.0
          %1080 = vmatpush1.msra.mxu0 0.0
          %1081 = vmatprep.subr.mxu0 0.0
          %1082 = vmatpush1.msra.mxu0 0.0
          %1083 = vmatprep.mubr.f32.mxu0 0.0
          %1084 = vmatmul.mubr.f32.gmra.mrb[0].mxu0 %v523
          %v1085 = vpop.f32.mrb[0].mxu0
          %v1086 = vadd.f32 %v1017, %v1085
          %v1087 = vpop.f32.mrb[0].mxu0
          %1088 = vdwg.mxu0
          %v1090 = vlaneseq
          %v1091 = vshrl.u32 %v1090, 7
          %v1092 = vsub.s32 0, %v1091
          %v1093 = vrot.slane %v936, %v1092
          %1095 = vmatprep.subr.mxu0 0.0
          %1096 = vmatpush1.msra.mxu0 %v927
          %1097 = vmatprep.subr.mxu0 0.0
          %1098 = vmatpush1.msra.mxu0 %v928
          %1099 = vmatprep.subr.mxu0 0.0
          %1100 = vmatpush1.msra.mxu0 %v929
          %1101 = vmatprep.subr.mxu0 0.0
          %1102 = vmatpush1.msra.mxu0 %v930
          %1103 = vmatprep.subr.mxu0 0.0
          %1104 = vmatpush1.msra.mxu0 0.0
          %1105 = vmatprep.subr.mxu0 0.0
          %1106 = vmatpush1.msra.mxu0 0.0
          %1107 = vmatprep.subr.mxu0 0.0
          %1108 = vmatpush1.msra.mxu0 0.0
          %1109 = vmatprep.subr.mxu0 0.0
          %1110 = vmatpush1.msra.mxu0 0.0
          %1111 = vmatprep.subr.mxu0 0.0
          %1112 = vmatpush1.msra.mxu0 0.0
          %1113 = vmatprep.subr.mxu0 0.0
          %1114 = vmatpush1.msra.mxu0 0.0
          %1115 = vmatprep.subr.mxu0 0.0
          %1116 = vmatpush1.msra.mxu0 0.0
          %1117 = vmatprep.subr.mxu0 0.0
          %1118 = vmatpush1.msra.mxu0 0.0
          %1119 = vmatprep.subr.mxu0 0.0
          %1120 = vmatpush1.msra.mxu0 0.0
          %1121 = vmatprep.subr.mxu0 0.0
          %1122 = vmatpush1.msra.mxu0 0.0
          %1123 = vmatprep.subr.mxu0 0.0
          %1124 = vmatpush1.msra.mxu0 0.0
          %1125 = vmatprep.subr.mxu0 0.0
          %1126 = vmatpush1.msra.mxu0 0.0
          %1127 = vmatprep.subr.mxu0 0.0
          %1128 = vmatpush1.msra.mxu0 0.0
          %1129 = vmatprep.subr.mxu0 0.0
          %1130 = vmatpush1.msra.mxu0 0.0
          %1131 = vmatprep.subr.mxu0 0.0
          %1132 = vmatpush1.msra.mxu0 0.0
          %1133 = vmatprep.subr.mxu0 0.0
          %1134 = vmatpush1.msra.mxu0 0.0
          %1135 = vmatprep.subr.mxu0 0.0
          %1136 = vmatpush1.msra.mxu0 0.0
          %1137 = vmatprep.subr.mxu0 0.0
          %1138 = vmatpush1.msra.mxu0 0.0
          %1139 = vmatprep.subr.mxu0 0.0
          %1140 = vmatpush1.msra.mxu0 0.0
          %1141 = vmatprep.subr.mxu0 0.0
          %1142 = vmatpush1.msra.mxu0 0.0
          %1143 = vmatprep.subr.mxu0 0.0
          %1144 = vmatpush1.msra.mxu0 0.0
          %1145 = vmatprep.subr.mxu0 0.0
          %1146 = vmatpush1.msra.mxu0 0.0
          %1147 = vmatprep.subr.mxu0 0.0
          %1148 = vmatpush1.msra.mxu0 0.0
          %1149 = vmatprep.subr.mxu0 0.0
          %1150 = vmatpush1.msra.mxu0 0.0
          %1151 = vmatprep.subr.mxu0 0.0
          %1152 = vmatpush1.msra.mxu0 0.0
          %1153 = vmatprep.subr.mxu0 0.0
          %1154 = vmatpush1.msra.mxu0 0.0
          %1155 = vmatprep.subr.mxu0 0.0
          %1156 = vmatpush1.msra.mxu0 0.0
          %1157 = vmatprep.subr.mxu0 0.0
          %1158 = vmatpush1.msra.mxu0 0.0
          %1159 = vmatprep.mubr.f32.mxu0 0.0
          %1160 = vmatmul.mubr.f32.gmra.mrb[0].mxu0 %v523
          %v1161 = vpop.f32.mrb[0].mxu0
          %v1162 = vadd.f32 %v1093, %v1161
          %v1163 = vpop.f32.mrb[0].mxu0
          %1164 = vdwg.mxu0
          %v1166 = vsel %vm747, %v1010, 0
          %v1169 = vsel %vm747, %v1086, 0
          %1171 = vmatprep.subr.mxu0 0.0
          %1172 = vmatpush1.xpose.msra.mxu0 %v1169
          %1173 = vmatprep.subr.mxu0 0.0
          %1174 = vmatpush1.xpose.msra.mxu0 0.0
          %1175 = vmatprep.subr.mxu0 0.0
          %1176 = vmatpush1.xpose.msra.mxu0 0.0
          %1177 = vmatprep.subr.mxu0 0.0
          %1178 = vmatpush1.xpose.msra.mxu0 0.0
          %1179 = vmatprep.subr.mxu0 0.0
          %1180 = vmatpush1.xpose.msra.mxu0 0.0
          %1181 = vmatprep.subr.mxu0 0.0
          %1182 = vmatpush1.xpose.msra.mxu0 0.0
          %1183 = vmatprep.subr.mxu0 0.0
          %1184 = vmatpush1.xpose.msra.mxu0 0.0
          %1185 = vmatprep.subr.mxu0 0.0
          %1186 = vmatpush1.xpose.msra.mxu0 0.0
          %1187 = vmatprep.subr.mxu0 0.0
          %1188 = vmatpush1.xpose.msra.mxu0 0.0
          %1189 = vmatprep.subr.mxu0 0.0
          %1190 = vmatpush1.xpose.msra.mxu0 0.0
          %1191 = vmatprep.subr.mxu0 0.0
          %1192 = vmatpush1.xpose.msra.mxu0 0.0
          %1193 = vmatprep.subr.mxu0 0.0
          %1194 = vmatpush1.xpose.msra.mxu0 0.0
          %1195 = vmatprep.subr.mxu0 0.0
          %1196 = vmatpush1.xpose.msra.mxu0 0.0
          %1197 = vmatprep.subr.mxu0 0.0
          %1198 = vmatpush1.xpose.msra.mxu0 0.0
          %1199 = vmatprep.subr.mxu0 0.0
          %1200 = vmatpush1.xpose.msra.mxu0 0.0
          %1201 = vmatprep.subr.mxu0 0.0
          %1202 = vmatpush1.xpose.msra.mxu0 0.0
          %1203 = vmatprep.subr.mxu0 0.0
          %1204 = vmatpush1.xpose.msra.mxu0 0.0
          %1205 = vmatprep.subr.mxu0 0.0
          %1206 = vmatpush1.xpose.msra.mxu0 0.0
          %1207 = vmatprep.subr.mxu0 0.0
          %1208 = vmatpush1.xpose.msra.mxu0 0.0
          %1209 = vmatprep.subr.mxu0 0.0
          %1210 = vmatpush1.xpose.msra.mxu0 0.0
          %1211 = vmatprep.subr.mxu0 0.0
          %1212 = vmatpush1.xpose.msra.mxu0 0.0
          %1213 = vmatprep.subr.mxu0 0.0
          %1214 = vmatpush1.xpose.msra.mxu0 0.0
          %1215 = vmatprep.subr.mxu0 0.0
          %1216 = vmatpush1.xpose.msra.mxu0 0.0
          %1217 = vmatprep.subr.mxu0 0.0
          %1218 = vmatpush1.xpose.msra.mxu0 0.0
          %1219 = vmatprep.subr.mxu0 0.0
          %1220 = vmatpush1.xpose.msra.mxu0 0.0
          %1221 = vmatprep.subr.mxu0 0.0
          %1222 = vmatpush1.xpose.msra.mxu0 0.0
          %1223 = vmatprep.subr.mxu0 0.0
          %1224 = vmatpush1.xpose.msra.mxu0 0.0
          %1225 = vmatprep.subr.mxu0 0.0
          %1226 = vmatpush1.xpose.msra.mxu0 0.0
          %1227 = vmatprep.subr.mxu0 0.0
          %1228 = vmatpush1.xpose.msra.mxu0 0.0
          %1229 = vmatprep.subr.mxu0 0.0
          %1230 = vmatpush1.xpose.msra.mxu0 0.0
          %1231 = vmatprep.subr.mxu0 0.0
          %1232 = vmatpush1.xpose.msra.mxu0 0.0
          %1233 = vmatprep.subr.mxu0 0.0
          %1234 = vmatpush1.xpose.msra.mxu0 0.0
          %1235 = vmatprep.mubr.f32.mxu0 0.0
          %1236 = vmatmul.mubr.f32.gmra.mrb[0].mxu0 %v1166
          %v1237 = vpop.f32.mrb[0].mxu0
          %v1238 = vadd.f32 0.0, %v1237
          %v1239 = vpop.f32.mrb[0].mxu0
          %1240 = vdwg.mxu0
          %v1241 = vmul.f32 %v1238, 0.35355338
          %v1242 = vadd.f32 %v1241, %v829
          %v1243 = vsel %vm747, %v1242, -inf
          %1244 = vmax.xlane.f32.xlu0 %v1243
          %v1245 = vpop.xlane.xlu0 %1244
          %v1246 = vsub.f32 %v1242, %v1245
          %v1247 = vmul.f32 %v1246, 1.442695
          %v1248 = vpow.pop %v1247
          %v1249 = vsel %vm747, %v1248, 0.0
          %1250 = vadd.xlane.f32.xlu0 %v1249
          %v1251 = vpop.xlane.xlu0 %1250
          %v1252 = vrcp.pop %v1251
          %v1253 = vmul.f32 %v1248, %v1252
          %v1255 = vsel %vm747, %v1253, 0
          %1257 = vmatprep.subr.mxu0 0.0
          %1258 = vmatpush1.msra.mxu0 %v1162
          %1259 = vmatprep.subr.mxu0 0.0
          %1260 = vmatpush1.msra.mxu0 0.0
          %1261 = vmatprep.subr.mxu0 0.0
          %1262 = vmatpush1.msra.mxu0 0.0
          %1263 = vmatprep.subr.mxu0 0.0
          %1264 = vmatpush1.msra.mxu0 0.0
          %1265 = vmatprep.subr.mxu0 0.0
          %1266 = vmatpush1.msra.mxu0 0.0
          %1267 = vmatprep.subr.mxu0 0.0
          %1268 = vmatpush1.msra.mxu0 0.0
          %1269 = vmatprep.subr.mxu0 0.0
          %1270 = vmatpush1.msra.mxu0 0.0
          %1271 = vmatprep.subr.mxu0 0.0
          %1272 = vmatpush1.msra.mxu0 0.0
          %1273 = vmatprep.subr.mxu0 0.0
          %1274 = vmatpush1.msra.mxu0 0.0
          %1275 = vmatprep.subr.mxu0 0.0
          %1276 = vmatpush1.msra.mxu0 0.0
          %1277 = vmatprep.subr.mxu0 0.0
          %1278 = vmatpush1.msra.mxu0 0.0
          %1279 = vmatprep.subr.mxu0 0.0
          %1280 = vmatpush1.msra.mxu0 0.0
          %1281 = vmatprep.subr.mxu0 0.0
          %1282 = vmatpush1.msra.mxu0 0.0
          %1283 = vmatprep.subr.mxu0 0.0
          %1284 = vmatpush1.msra.mxu0 0.0
          %1285 = vmatprep.subr.mxu0 0.0
          %1286 = vmatpush1.msra.mxu0 0.0
          %1287 = vmatprep.subr.mxu0 0.0
          %1288 = vmatpush1.msra.mxu0 0.0
          %1289 = vmatprep.subr.mxu0 0.0
          %1290 = vmatpush1.msra.mxu0 0.0
          %1291 = vmatprep.subr.mxu0 0.0
          %1292 = vmatpush1.msra.mxu0 0.0
          %1293 = vmatprep.subr.mxu0 0.0
          %1294 = vmatpush1.msra.mxu0 0.0
          %1295 = vmatprep.subr.mxu0 0.0
          %1296 = vmatpush1.msra.mxu0 0.0
          %1297 = vmatprep.subr.mxu0 0.0
          %1298 = vmatpush1.msra.mxu0 0.0
          %1299 = vmatprep.subr.mxu0 0.0
          %1300 = vmatpush1.msra.mxu0 0.0
          %1301 = vmatprep.subr.mxu0 0.0
          %1302 = vmatpush1.msra.mxu0 0.0
          %1303 = vmatprep.subr.mxu0 0.0
          %1304 = vmatpush1.msra.mxu0 0.0
          %1305 = vmatprep.subr.mxu0 0.0
          %1306 = vmatpush1.msra.mxu0 0.0
          %1307 = vmatprep.subr.mxu0 0.0
          %1308 = vmatpush1.msra.mxu0 0.0
          %1309 = vmatprep.subr.mxu0 0.0
          %1310 = vmatpush1.msra.mxu0 0.0
          %1311 = vmatprep.subr.mxu0 0.0
          %1312 = vmatpush1.msra.mxu0 0.0
          %1313 = vmatprep.subr.mxu0 0.0
          %1314 = vmatpush1.msra.mxu0 0.0
          %1315 = vmatprep.subr.mxu0 0.0
          %1316 = vmatpush1.msra.mxu0 0.0
          %1317 = vmatprep.subr.mxu0 0.0
          %1318 = vmatpush1.msra.mxu0 0.0
          %1319 = vmatprep.subr.mxu0 0.0
          %1320 = vmatpush1.msra.mxu0 0.0
          %1321 = vmatprep.mubr.f32.mxu0 0.0
          %1322 = vmatmul.mubr.f32.gmra.mrb[0].mxu0 %v1255
          %v1323 = vpop.f32.mrb[0].mxu0
          %v1324 = vadd.f32 0.0, %v1323
          %v1325 = vpop.f32.mrb[0].mxu0
          %1326 = vdwg.mxu0
          %v1328 = vsel %vm747, %v1324, 0
          %1330 = vmatprep.subr.mxu0 0.0
          %1331 = vmatpush1.msra.mxu0 %v426
          %1332 = vmatprep.subr.mxu0 0.0
          %1333 = vmatpush1.msra.mxu0 0.0
          %1334 = vmatprep.subr.mxu0 0.0
          %1335 = vmatpush1.msra.mxu0 0.0
          %1336 = vmatprep.subr.mxu0 0.0
          %1337 = vmatpush1.msra.mxu0 0.0
          %1338 = vmatprep.subr.mxu0 0.0
          %1339 = vmatpush1.msra.mxu0 0.0
          %1340 = vmatprep.subr.mxu0 0.0
          %1341 = vmatpush1.msra.mxu0 0.0
          %1342 = vmatprep.subr.mxu0 0.0
          %1343 = vmatpush1.msra.mxu0 0.0
          %1344 = vmatprep.subr.mxu0 0.0
          %1345 = vmatpush1.msra.mxu0 0.0
          %1346 = vmatprep.subr.mxu0 0.0
          %1347 = vmatpush1.msra.mxu0 0.0
          %1348 = vmatprep.subr.mxu0 0.0
          %1349 = vmatpush1.msra.mxu0 0.0
          %1350 = vmatprep.subr.mxu0 0.0
          %1351 = vmatpush1.msra.mxu0 0.0
          %1352 = vmatprep.subr.mxu0 0.0
          %1353 = vmatpush1.msra.mxu0 0.0
          %1354 = vmatprep.subr.mxu0 0.0
          %1355 = vmatpush1.msra.mxu0 0.0
          %1356 = vmatprep.subr.mxu0 0.0
          %1357 = vmatpush1.msra.mxu0 0.0
          %1358 = vmatprep.subr.mxu0 0.0
          %1359 = vmatpush1.msra.mxu0 0.0
          %1360 = vmatprep.subr.mxu0 0.0
          %1361 = vmatpush1.msra.mxu0 0.0
          %1362 = vmatprep.subr.mxu0 0.0
          %1363 = vmatpush1.msra.mxu0 0.0
          %1364 = vmatprep.subr.mxu0 0.0
          %1365 = vmatpush1.msra.mxu0 0.0
          %1366 = vmatprep.subr.mxu0 0.0
          %1367 = vmatpush1.msra.mxu0 0.0
          %1368 = vmatprep.subr.mxu0 0.0
          %1369 = vmatpush1.msra.mxu0 0.0
          %1370 = vmatprep.subr.mxu0 0.0
          %1371 = vmatpush1.msra.mxu0 0.0
          %1372 = vmatprep.subr.mxu0 0.0
          %1373 = vmatpush1.msra.mxu0 0.0
          %1374 = vmatprep.subr.mxu0 0.0
          %1375 = vmatpush1.msra.mxu0 0.0
          %1376 = vmatprep.subr.mxu0 0.0
          %1377 = vmatpush1.msra.mxu0 0.0
          %1378 = vmatprep.subr.mxu0 0.0
          %1379 = vmatpush1.msra.mxu0 0.0
          %1380 = vmatprep.subr.mxu0 0.0
          %1381 = vmatpush1.msra.mxu0 0.0
          %1382 = vmatprep.subr.mxu0 0.0
          %1383 = vmatpush1.msra.mxu0 0.0
          %1384 = vmatprep.subr.mxu0 0.0
          %1385 = vmatpush1.msra.mxu0 0.0
          %1386 = vmatprep.subr.mxu0 0.0
          %1387 = vmatpush1.msra.mxu0 0.0
          %1388 = vmatprep.subr.mxu0 0.0
          %1389 = vmatpush1.msra.mxu0 0.0
          %1390 = vmatprep.subr.mxu0 0.0
          %1391 = vmatpush1.msra.mxu0 0.0
          %1392 = vmatprep.subr.mxu0 0.0
          %1393 = vmatpush1.msra.mxu0 0.0
          %1394 = vmatprep.mubr.f32.mxu0 0.0
          %1395 = vmatmul.mubr.f32.gmra.mrb[0].mxu0 %v1328
          %v1396 = vpop.f32.mrb[0].mxu0
          %v1397 = vadd.f32 0.0, %v1396
          %v1398 = vpop.f32.mrb[0].mxu0
          %1399 = vdwg.mxu0
          %v1401 = vsel %vm747, %v913, 0
          %1403 = vmatprep.subr.mxu0 0.0
          %1404 = vmatpush1.msra.mxu0 %v425
          %1405 = vmatprep.subr.mxu0 0.0
          %1406 = vmatpush1.msra.mxu0 0.0
          %1407 = vmatprep.subr.mxu0 0.0
          %1408 = vmatpush1.msra.mxu0 0.0
          %1409 = vmatprep.subr.mxu0 0.0
          %1410 = vmatpush1.msra.mxu0 0.0
          %1411 = vmatprep.subr.mxu0 0.0
          %1412 = vmatpush1.msra.mxu0 0.0
          %1413 = vmatprep.subr.mxu0 0.0
          %1414 = vmatpush1.msra.mxu0 0.0
          %1415 = vmatprep.subr.mxu0 0.0
          %1416 = vmatpush1.msra.mxu0 0.0
          %1417 = vmatprep.subr.mxu0 0.0
          %1418 = vmatpush1.msra.mxu0 0.0
          %1419 = vmatprep.subr.mxu0 0.0
          %1420 = vmatpush1.msra.mxu0 0.0
          %1421 = vmatprep.subr.mxu0 0.0
          %1422 = vmatpush1.msra.mxu0 0.0
          %1423 = vmatprep.subr.mxu0 0.0
          %1424 = vmatpush1.msra.mxu0 0.0
          %1425 = vmatprep.subr.mxu0 0.0
          %1426 = vmatpush1.msra.mxu0 0.0
          %1427 = vmatprep.subr.mxu0 0.0
          %1428 = vmatpush1.msra.mxu0 0.0
          %1429 = vmatprep.subr.mxu0 0.0
          %1430 = vmatpush1.msra.mxu0 0.0
          %1431 = vmatprep.subr.mxu0 0.0
          %1432 = vmatpush1.msra.mxu0 0.0
          %1433 = vmatprep.subr.mxu0 0.0
          %1434 = vmatpush1.msra.mxu0 0.0
          %1435 = vmatprep.subr.mxu0 0.0
          %1436 = vmatpush1.msra.mxu0 0.0
          %1437 = vmatprep.subr.mxu0 0.0
          %1438 = vmatpush1.msra.mxu0 0.0
          %1439 = vmatprep.subr.mxu0 0.0
          %1440 = vmatpush1.msra.mxu0 0.0
          %1441 = vmatprep.subr.mxu0 0.0
          %1442 = vmatpush1.msra.mxu0 0.0
          %1443 = vmatprep.subr.mxu0 0.0
          %1444 = vmatpush1.msra.mxu0 0.0
          %1445 = vmatprep.subr.mxu0 0.0
          %1446 = vmatpush1.msra.mxu0 0.0
          %1447 = vmatprep.subr.mxu0 0.0
          %1448 = vmatpush1.msra.mxu0 0.0
          %1449 = vmatprep.subr.mxu0 0.0
          %1450 = vmatpush1.msra.mxu0 0.0
          %1451 = vmatprep.subr.mxu0 0.0
          %1452 = vmatpush1.msra.mxu0 0.0
          %1453 = vmatprep.subr.mxu0 0.0
          %1454 = vmatpush1.msra.mxu0 0.0
          %1455 = vmatprep.subr.mxu0 0.0
          %1456 = vmatpush1.msra.mxu0 0.0
          %1457 = vmatprep.subr.mxu0 0.0
          %1458 = vmatpush1.msra.mxu0 0.0
          %1459 = vmatprep.subr.mxu0 0.0
          %1460 = vmatpush1.msra.mxu0 0.0
          %1461 = vmatprep.subr.mxu0 0.0
          %1462 = vmatpush1.msra.mxu0 0.0
          %1463 = vmatprep.subr.mxu0 0.0
          %1464 = vmatpush1.msra.mxu0 0.0
          %1465 = vmatprep.subr.mxu0 0.0
          %1466 = vmatpush1.msra.mxu0 0.0
          %1467 = vmatprep.mubr.f32.mxu0 0.0
          %1468 = vmatmul.mubr.f32.gmra.mrb[0].mxu0 %v1401
          %v1469 = vpop.f32.mrb[0].mxu0
          %v1470 = vadd.f32 %v1397, %v1469
          %v1471 = vpop.f32.mrb[0].mxu0
          %1472 = vdwg.mxu0
          %s1473 = scalar_lea.vmem %s2, 64
          %v1474 = vld [vmem:[%s1473] sm:$0xff]
          %v1475 = vld [vmem:[%s1473 + $0x8] sm:$0xff]
          %v1476 = vld [vmem:[%s1473 + $0x10] sm:$0xff]
          %v1477 = vld [vmem:[%s1473 + $0x18] sm:$0xff]
          %s1478 = scalar_lea.vmem %s2, 192
          %v1479 = vld [vmem:[%s1478] sm:$0xff]
          %v1480 = vld [vmem:[%s1478 + $0x8] sm:$0xff]
          %v1481 = vld [vmem:[%s1478 + $0x10] sm:$0xff]
          %v1482 = vld [vmem:[%s1478 + $0x18] sm:$0xff]
          %s1483 = scalar_lea.vmem %s2, 320
          %v1484 = vld [vmem:[%s1483] sm:$0xff]
          %v1485 = vld [vmem:[%s1483 + $0x8] sm:$0xff]
          %v1486 = vld [vmem:[%s1483 + $0x10] sm:$0xff]
          %v1487 = vld [vmem:[%s1483 + $0x18] sm:$0xff]
          %s1488 = scalar_lea.vmem %s3, 2
          %v1489 = vld [vmem:[%s1488] sm:$0x1]
          %s1490 = scalar_lea.vmem %s3, 6
          %v1491 = vld [vmem:[%s1490] sm:$0x1]
          %s1492 = scalar_lea.vmem %s3, 10
          %v1493 = vld [vmem:[%s1492] sm:$0x1]
          %v1495 = vlaneseq
          %v1496 = vshrl.u32 %v1495, 7
          %v1497 = vsub.s32 0, %v1496
          %v1498 = vrot.slane %v1489, %v1497
          %1500 = vmatprep.subr.mxu0 0.0
          %1501 = vmatpush1.msra.mxu0 %v1474
          %1502 = vmatprep.subr.mxu0 0.0
          %1503 = vmatpush1.msra.mxu0 %v1475
          %1504 = vmatprep.subr.mxu0 0.0
          %1505 = vmatpush1.msra.mxu0 %v1476
          %1506 = vmatprep.subr.mxu0 0.0
          %1507 = vmatpush1.msra.mxu0 %v1477
          %1508 = vmatprep.subr.mxu0 0.0
          %1509 = vmatpush1.msra.mxu0 0.0
          %1510 = vmatprep.subr.mxu0 0.0
          %1511 = vmatpush1.msra.mxu0 0.0
          %1512 = vmatprep.subr.mxu0 0.0
          %1513 = vmatpush1.msra.mxu0 0.0
          %1514 = vmatprep.subr.mxu0 0.0
          %1515 = vmatpush1.msra.mxu0 0.0
          %1516 = vmatprep.subr.mxu0 0.0
          %1517 = vmatpush1.msra.mxu0 0.0
          %1518 = vmatprep.subr.mxu0 0.0
          %1519 = vmatpush1.msra.mxu0 0.0
          %1520 = vmatprep.subr.mxu0 0.0
          %1521 = vmatpush1.msra.mxu0 0.0
          %1522 = vmatprep.subr.mxu0 0.0
          %1523 = vmatpush1.msra.mxu0 0.0
          %1524 = vmatprep.subr.mxu0 0.0
          %1525 = vmatpush1.msra.mxu0 0.0
          %1526 = vmatprep.subr.mxu0 0.0
          %1527 = vmatpush1.msra.mxu0 0.0
          %1528 = vmatprep.subr.mxu0 0.0
          %1529 = vmatpush1.msra.mxu0 0.0
          %1530 = vmatprep.subr.mxu0 0.0
          %1531 = vmatpush1.msra.mxu0 0.0
          %1532 = vmatprep.subr.mxu0 0.0
          %1533 = vmatpush1.msra.mxu0 0.0
          %1534 = vmatprep.subr.mxu0 0.0
          %1535 = vmatpush1.msra.mxu0 0.0
          %1536 = vmatprep.subr.mxu0 0.0
          %1537 = vmatpush1.msra.mxu0 0.0
          %1538 = vmatprep.subr.mxu0 0.0
          %1539 = vmatpush1.msra.mxu0 0.0
          %1540 = vmatprep.subr.mxu0 0.0
          %1541 = vmatpush1.msra.mxu0 0.0
          %1542 = vmatprep.subr.mxu0 0.0
          %1543 = vmatpush1.msra.mxu0 0.0
          %1544 = vmatprep.subr.mxu0 0.0
          %1545 = vmatpush1.msra.mxu0 0.0
          %1546 = vmatprep.subr.mxu0 0.0
          %1547 = vmatpush1.msra.mxu0 0.0
          %1548 = vmatprep.subr.mxu0 0.0
          %1549 = vmatpush1.msra.mxu0 0.0
          %1550 = vmatprep.subr.mxu0 0.0
          %1551 = vmatpush1.msra.mxu0 0.0
          %1552 = vmatprep.subr.mxu0 0.0
          %1553 = vmatpush1.msra.mxu0 0.0
          %1554 = vmatprep.subr.mxu0 0.0
          %1555 = vmatpush1.msra.mxu0 0.0
          %1556 = vmatprep.subr.mxu0 0.0
          %1557 = vmatpush1.msra.mxu0 0.0
          %1558 = vmatprep.subr.mxu0 0.0
          %1559 = vmatpush1.msra.mxu0 0.0
          %1560 = vmatprep.subr.mxu0 0.0
          %1561 = vmatpush1.msra.mxu0 0.0
          %1562 = vmatprep.subr.mxu0 0.0
          %1563 = vmatpush1.msra.mxu0 0.0
          %1564 = vmatprep.mubr.f32.mxu0 0.0
          %1565 = vmatmul.mubr.f32.gmra.mrb[0].mxu0 %v523
          %v1566 = vpop.f32.mrb[0].mxu0
          %v1567 = vadd.f32 %v1498, %v1566
          %v1568 = vpop.f32.mrb[0].mxu0
          %1569 = vdwg.mxu0
          %v1571 = vlaneseq
          %v1572 = vshrl.u32 %v1571, 7
          %v1573 = vsub.s32 0, %v1572
          %v1574 = vrot.slane %v1491, %v1573
          %1576 = vmatprep.subr.mxu0 0.0
          %1577 = vmatpush1.msra.mxu0 %v1479
          %1578 = vmatprep.subr.mxu0 0.0
          %1579 = vmatpush1.msra.mxu0 %v1480
          %1580 = vmatprep.subr.mxu0 0.0
          %1581 = vmatpush1.msra.mxu0 %v1481
          %1582 = vmatprep.subr.mxu0 0.0
          %1583 = vmatpush1.msra.mxu0 %v1482
          %1584 = vmatprep.subr.mxu0 0.0
          %1585 = vmatpush1.msra.mxu0 0.0
          %1586 = vmatprep.subr.mxu0 0.0
          %1587 = vmatpush1.msra.mxu0 0.0
          %1588 = vmatprep.subr.mxu0 0.0
          %1589 = vmatpush1.msra.mxu0 0.0
          %1590 = vmatprep.subr.mxu0 0.0
          %1591 = vmatpush1.msra.mxu0 0.0
          %1592 = vmatprep.subr.mxu0 0.0
          %1593 = vmatpush1.msra.mxu0 0.0
          %1594 = vmatprep.subr.mxu0 0.0
          %1595 = vmatpush1.msra.mxu0 0.0
          %1596 = vmatprep.subr.mxu0 0.0
          %1597 = vmatpush1.msra.mxu0 0.0
          %1598 = vmatprep.subr.mxu0 0.0
          %1599 = vmatpush1.msra.mxu0 0.0
          %1600 = vmatprep.subr.mxu0 0.0
          %1601 = vmatpush1.msra.mxu0 0.0
          %1602 = vmatprep.subr.mxu0 0.0
          %1603 = vmatpush1.msra.mxu0 0.0
          %1604 = vmatprep.subr.mxu0 0.0
          %1605 = vmatpush1.msra.mxu0 0.0
          %1606 = vmatprep.subr.mxu0 0.0
          %1607 = vmatpush1.msra.mxu0 0.0
          %1608 = vmatprep.subr.mxu0 0.0
          %1609 = vmatpush1.msra.mxu0 0.0
          %1610 = vmatprep.subr.mxu0 0.0
          %1611 = vmatpush1.msra.mxu0 0.0
          %1612 = vmatprep.subr.mxu0 0.0
          %1613 = vmatpush1.msra.mxu0 0.0
          %1614 = vmatprep.subr.mxu0 0.0
          %1615 = vmatpush1.msra.mxu0 0.0
          %1616 = vmatprep.subr.mxu0 0.0
          %1617 = vmatpush1.msra.mxu0 0.0
          %1618 = vmatprep.subr.mxu0 0.0
          %1619 = vmatpush1.msra.mxu0 0.0
          %1620 = vmatprep.subr.mxu0 0.0
          %1621 = vmatpush1.msra.mxu0 0.0
          %1622 = vmatprep.subr.mxu0 0.0
          %1623 = vmatpush1.msra.mxu0 0.0
          %1624 = vmatprep.subr.mxu0 0.0
          %1625 = vmatpush1.msra.mxu0 0.0
          %1626 = vmatprep.subr.mxu0 0.0
          %1627 = vmatpush1.msra.mxu0 0.0
          %1628 = vmatprep.subr.mxu0 0.0
          %1629 = vmatpush1.msra.mxu0 0.0
          %1630 = vmatprep.subr.mxu0 0.0
          %1631 = vmatpush1.msra.mxu0 0.0
          %1632 = vmatprep.subr.mxu0 0.0
          %1633 = vmatpush1.msra.mxu0 0.0
          %1634 = vmatprep.subr.mxu0 0.0
          %1635 = vmatpush1.msra.mxu0 0.0
          %1636 = vmatprep.subr.mxu0 0.0
          %1637 = vmatpush1.msra.mxu0 0.0
          %1638 = vmatprep.subr.mxu0 0.0
          %1639 = vmatpush1.msra.mxu0 0.0
          %1640 = vmatprep.mubr.f32.mxu0 0.0
          %1641 = vmatmul.mubr.f32.gmra.mrb[0].mxu0 %v523
          %v1642 = vpop.f32.mrb[0].mxu0
          %v1643 = vadd.f32 %v1574, %v1642
          %v1644 = vpop.f32.mrb[0].mxu0
          %1645 = vdwg.mxu0
          %v1647 = vlaneseq
          %v1648 = vshrl.u32 %v1647, 7
          %v1649 = vsub.s32 0, %v1648
          %v1650 = vrot.slane %v1493, %v1649
          %1652 = vmatprep.subr.mxu0 0.0
          %1653 = vmatpush1.msra.mxu0 %v1484
          %1654 = vmatprep.subr.mxu0 0.0
          %1655 = vmatpush1.msra.mxu0 %v1485
          %1656 = vmatprep.subr.mxu0 0.0
          %1657 = vmatpush1.msra.mxu0 %v1486
          %1658 = vmatprep.subr.mxu0 0.0
          %1659 = vmatpush1.msra.mxu0 %v1487
          %1660 = vmatprep.subr.mxu0 0.0
          %1661 = vmatpush1.msra.mxu0 0.0
          %1662 = vmatprep.subr.mxu0 0.0
          %1663 = vmatpush1.msra.mxu0 0.0
          %1664 = vmatprep.subr.mxu0 0.0
          %1665 = vmatpush1.msra.mxu0 0.0
          %1666 = vmatprep.subr.mxu0 0.0
          %1667 = vmatpush1.msra.mxu0 0.0
          %1668 = vmatprep.subr.mxu0 0.0
          %1669 = vmatpush1.msra.mxu0 0.0
          %1670 = vmatprep.subr.mxu0 0.0
          %1671 = vmatpush1.msra.mxu0 0.0
          %1672 = vmatprep.subr.mxu0 0.0
          %1673 = vmatpush1.msra.mxu0 0.0
          %1674 = vmatprep.subr.mxu0 0.0
          %1675 = vmatpush1.msra.mxu0 0.0
          %1676 = vmatprep.subr.mxu0 0.0
          %1677 = vmatpush1.msra.mxu0 0.0
          %1678 = vmatprep.subr.mxu0 0.0
          %1679 = vmatpush1.msra.mxu0 0.0
          %1680 = vmatprep.subr.mxu0 0.0
          %1681 = vmatpush1.msra.mxu0 0.0
          %1682 = vmatprep.subr.mxu0 0.0
          %1683 = vmatpush1.msra.mxu0 0.0
          %1684 = vmatprep.subr.mxu0 0.0
          %1685 = vmatpush1.msra.mxu0 0.0
          %1686 = vmatprep.subr.mxu0 0.0
          %1687 = vmatpush1.msra.mxu0 0.0
          %1688 = vmatprep.subr.mxu0 0.0
          %1689 = vmatpush1.msra.mxu0 0.0
          %1690 = vmatprep.subr.mxu0 0.0
          %1691 = vmatpush1.msra.mxu0 0.0
          %1692 = vmatprep.subr.mxu0 0.0
          %1693 = vmatpush1.msra.mxu0 0.0
          %1694 = vmatprep.subr.mxu0 0.0
          %1695 = vmatpush1.msra.mxu0 0.0
          %1696 = vmatprep.subr.mxu0 0.0
          %1697 = vmatpush1.msra.mxu0 0.0
          %1698 = vmatprep.subr.mxu0 0.0
          %1699 = vmatpush1.msra.mxu0 0.0
          %1700 = vmatprep.subr.mxu0 0.0
          %1701 = vmatpush1.msra.mxu0 0.0
          %1702 = vmatprep.subr.mxu0 0.0
          %1703 = vmatpush1.msra.mxu0 0.0
          %1704 = vmatprep.subr.mxu0 0.0
          %1705 = vmatpush1.msra.mxu0 0.0
          %1706 = vmatprep.subr.mxu0 0.0
          %1707 = vmatpush1.msra.mxu0 0.0
          %1708 = vmatprep.subr.mxu0 0.0
          %1709 = vmatpush1.msra.mxu0 0.0
          %1710 = vmatprep.subr.mxu0 0.0
          %1711 = vmatpush1.msra.mxu0 0.0
          %1712 = vmatprep.subr.mxu0 0.0
          %1713 = vmatpush1.msra.mxu0 0.0
          %1714 = vmatprep.subr.mxu0 0.0
          %1715 = vmatpush1.msra.mxu0 0.0
          %1716 = vmatprep.mubr.f32.mxu0 0.0
          %1717 = vmatmul.mubr.f32.gmra.mrb[0].mxu0 %v523
          %v1718 = vpop.f32.mrb[0].mxu0
          %v1719 = vadd.f32 %v1650, %v1718
          %v1720 = vpop.f32.mrb[0].mxu0
          %1721 = vdwg.mxu0
          %v1723 = vsel %vm747, %v1567, 0
          %v1726 = vsel %vm747, %v1643, 0
          %1728 = vmatprep.subr.mxu0 0.0
          %1729 = vmatpush1.xpose.msra.mxu0 %v1726
          %1730 = vmatprep.subr.mxu0 0.0
          %1731 = vmatpush1.xpose.msra.mxu0 0.0
          %1732 = vmatprep.subr.mxu0 0.0
          %1733 = vmatpush1.xpose.msra.mxu0 0.0
          %1734 = vmatprep.subr.mxu0 0.0
          %1735 = vmatpush1.xpose.msra.mxu0 0.0
          %1736 = vmatprep.subr.mxu0 0.0
          %1737 = vmatpush1.xpose.msra.mxu0 0.0
          %1738 = vmatprep.subr.mxu0 0.0
          %1739 = vmatpush1.xpose.msra.mxu0 0.0
          %1740 = vmatprep.subr.mxu0 0.0
          %1741 = vmatpush1.xpose.msra.mxu0 0.0
          %1742 = vmatprep.subr.mxu0 0.0
          %1743 = vmatpush1.xpose.msra.mxu0 0.0
          %1744 = vmatprep.subr.mxu0 0.0
          %1745 = vmatpush1.xpose.msra.mxu0 0.0
          %1746 = vmatprep.subr.mxu0 0.0
          %1747 = vmatpush1.xpose.msra.mxu0 0.0
          %1748 = vmatprep.subr.mxu0 0.0
          %1749 = vmatpush1.xpose.msra.mxu0 0.0
          %1750 = vmatprep.subr.mxu0 0.0
          %1751 = vmatpush1.xpose.msra.mxu0 0.0
          %1752 = vmatprep.subr.mxu0 0.0
          %1753 = vmatpush1.xpose.msra.mxu0 0.0
          %1754 = vmatprep.subr.mxu0 0.0
          %1755 = vmatpush1.xpose.msra.mxu0 0.0
          %1756 = vmatprep.subr.mxu0 0.0
          %1757 = vmatpush1.xpose.msra.mxu0 0.0
          %1758 = vmatprep.subr.mxu0 0.0
          %1759 = vmatpush1.xpose.msra.mxu0 0.0
          %1760 = vmatprep.subr.mxu0 0.0
          %1761 = vmatpush1.xpose.msra.mxu0 0.0
          %1762 = vmatprep.subr.mxu0 0.0
          %1763 = vmatpush1.xpose.msra.mxu0 0.0
          %1764 = vmatprep.subr.mxu0 0.0
          %1765 = vmatpush1.xpose.msra.mxu0 0.0
          %1766 = vmatprep.subr.mxu0 0.0
          %1767 = vmatpush1.xpose.msra.mxu0 0.0
          %1768 = vmatprep.subr.mxu0 0.0
          %1769 = vmatpush1.xpose.msra.mxu0 0.0
          %1770 = vmatprep.subr.mxu0 0.0
          %1771 = vmatpush1.xpose.msra.mxu0 0.0
          %1772 = vmatprep.subr.mxu0 0.0
          %1773 = vmatpush1.xpose.msra.mxu0 0.0
          %1774 = vmatprep.subr.mxu0 0.0
          %1775 = vmatpush1.xpose.msra.mxu0 0.0
          %1776 = vmatprep.subr.mxu0 0.0
          %1777 = vmatpush1.xpose.msra.mxu0 0.0
          %1778 = vmatprep.subr.mxu0 0.0
          %1779 = vmatpush1.xpose.msra.mxu0 0.0
          %1780 = vmatprep.subr.mxu0 0.0
          %1781 = vmatpush1.xpose.msra.mxu0 0.0
          %1782 = vmatprep.subr.mxu0 0.0
          %1783 = vmatpush1.xpose.msra.mxu0 0.0
          %1784 = vmatprep.subr.mxu0 0.0
          %1785 = vmatpush1.xpose.msra.mxu0 0.0
          %1786 = vmatprep.subr.mxu0 0.0
          %1787 = vmatpush1.xpose.msra.mxu0 0.0
          %1788 = vmatprep.subr.mxu0 0.0
          %1789 = vmatpush1.xpose.msra.mxu0 0.0
          %1790 = vmatprep.subr.mxu0 0.0
          %1791 = vmatpush1.xpose.msra.mxu0 0.0
          %1792 = vmatprep.mubr.f32.mxu0 0.0
          %1793 = vmatmul.mubr.f32.gmra.mrb[0].mxu0 %v1723
          %v1794 = vpop.f32.mrb[0].mxu0
          %v1795 = vadd.f32 0.0, %v1794
          %v1796 = vpop.f32.mrb[0].mxu0
          %1797 = vdwg.mxu0
          %v1798 = vmul.f32 %v1795, 0.35355338
          %v1799 = vadd.f32 %v1798, %v829
          %v1800 = vsel %vm747, %v1799, -inf
          %1801 = vmax.xlane.f32.xlu0 %v1800
          %v1802 = vpop.xlane.xlu0 %1801
          %v1803 = vsub.f32 %v1799, %v1802
          %v1804 = vmul.f32 %v1803, 1.442695
          %v1805 = vpow.pop %v1804
          %v1806 = vsel %vm747, %v1805, 0.0
          %1807 = vadd.xlane.f32.xlu0 %v1806
          %v1808 = vpop.xlane.xlu0 %1807
          %v1809 = vrcp.pop %v1808
          %v1810 = vmul.f32 %v1805, %v1809
          %v1812 = vsel %vm747, %v1810, 0
          %1814 = vmatprep.subr.mxu0 0.0
          %1815 = vmatpush1.msra.mxu0 %v1719
          %1816 = vmatprep.subr.mxu0 0.0
          %1817 = vmatpush1.msra.mxu0 0.0
          %1818 = vmatprep.subr.mxu0 0.0
          %1819 = vmatpush1.msra.mxu0 0.0
          %1820 = vmatprep.subr.mxu0 0.0
          %1821 = vmatpush1.msra.mxu0 0.0
          %1822 = vmatprep.subr.mxu0 0.0
          %1823 = vmatpush1.msra.mxu0 0.0
          %1824 = vmatprep.subr.mxu0 0.0
          %1825 = vmatpush1.msra.mxu0 0.0
          %1826 = vmatprep.subr.mxu0 0.0
          %1827 = vmatpush1.msra.mxu0 0.0
          %1828 = vmatprep.subr.mxu0 0.0
          %1829 = vmatpush1.msra.mxu0 0.0
          %1830 = vmatprep.subr.mxu0 0.0
          %1831 = vmatpush1.msra.mxu0 0.0
          %1832 = vmatprep.subr.mxu0 0.0
          %1833 = vmatpush1.msra.mxu0 0.0
          %1834 = vmatprep.subr.mxu0 0.0
          %1835 = vmatpush1.msra.mxu0 0.0
          %1836 = vmatprep.subr.mxu0 0.0
          %1837 = vmatpush1.msra.mxu0 0.0
          %1838 = vmatprep.subr.mxu0 0.0
          %1839 = vmatpush1.msra.mxu0 0.0
          %1840 = vmatprep.subr.mxu0 0.0
          %1841 = vmatpush1.msra.mxu0 0.0
          %1842 = vmatprep.subr.mxu0 0.0
          %1843 = vmatpush1.msra.mxu0 0.0
          %1844 = vmatprep.subr.mxu0 0.0
          %1845 = vmatpush1.msra.mxu0 0.0
          %1846 = vmatprep.subr.mxu0 0.0
          %1847 = vmatpush1.msra.mxu0 0.0
          %1848 = vmatprep.subr.mxu0 0.0
          %1849 = vmatpush1.msra.mxu0 0.0
          %1850 = vmatprep.subr.mxu0 0.0
          %1851 = vmatpush1.msra.mxu0 0.0
          %1852 = vmatprep.subr.mxu0 0.0
          %1853 = vmatpush1.msra.mxu0 0.0
          %1854 = vmatprep.subr.mxu0 0.0
          %1855 = vmatpush1.msra.mxu0 0.0
          %1856 = vmatprep.subr.mxu0 0.0
          %1857 = vmatpush1.msra.mxu0 0.0
          %1858 = vmatprep.subr.mxu0 0.0
          %1859 = vmatpush1.msra.mxu0 0.0
          %1860 = vmatprep.subr.mxu0 0.0
          %1861 = vmatpush1.msra.mxu0 0.0
          %1862 = vmatprep.subr.mxu0 0.0
          %1863 = vmatpush1.msra.mxu0 0.0
          %1864 = vmatprep.subr.mxu0 0.0
          %1865 = vmatpush1.msra.mxu0 0.0
          %1866 = vmatprep.subr.mxu0 0.0
          %1867 = vmatpush1.msra.mxu0 0.0
          %1868 = vmatprep.subr.mxu0 0.0
          %1869 = vmatpush1.msra.mxu0 0.0
          %1870 = vmatprep.subr.mxu0 0.0
          %1871 = vmatpush1.msra.mxu0 0.0
          %1872 = vmatprep.subr.mxu0 0.0
          %1873 = vmatpush1.msra.mxu0 0.0
          %1874 = vmatprep.subr.mxu0 0.0
          %1875 = vmatpush1.msra.mxu0 0.0
          %1876 = vmatprep.subr.mxu0 0.0
          %1877 = vmatpush1.msra.mxu0 0.0
          %1878 = vmatprep.mubr.f32.mxu0 0.0
          %1879 = vmatmul.mubr.f32.gmra.mrb[0].mxu0 %v1812
          %v1880 = vpop.f32.mrb[0].mxu0
          %v1881 = vadd.f32 0.0, %v1880
          %v1882 = vpop.f32.mrb[0].mxu0
          %1883 = vdwg.mxu0
          %v1885 = vsel %vm747, %v1881, 0
          %1887 = vmatprep.subr.mxu0 0.0
          %1888 = vmatpush1.msra.mxu0 %v427
          %1889 = vmatprep.subr.mxu0 0.0
          %1890 = vmatpush1.msra.mxu0 0.0
          %1891 = vmatprep.subr.mxu0 0.0
          %1892 = vmatpush1.msra.mxu0 0.0
          %1893 = vmatprep.subr.mxu0 0.0
          %1894 = vmatpush1.msra.mxu0 0.0
          %1895 = vmatprep.subr.mxu0 0.0
          %1896 = vmatpush1.msra.mxu0 0.0
          %1897 = vmatprep.subr.mxu0 0.0
          %1898 = vmatpush1.msra.mxu0 0.0
          %1899 = vmatprep.subr.mxu0 0.0
          %1900 = vmatpush1.msra.mxu0 0.0
          %1901 = vmatprep.subr.mxu0 0.0
          %1902 = vmatpush1.msra.mxu0 0.0
          %1903 = vmatprep.subr.mxu0 0.0
          %1904 = vmatpush1.msra.mxu0 0.0
          %1905 = vmatprep.subr.mxu0 0.0
          %1906 = vmatpush1.msra.mxu0 0.0
          %1907 = vmatprep.subr.mxu0 0.0
          %1908 = vmatpush1.msra.mxu0 0.0
          %1909 = vmatprep.subr.mxu0 0.0
          %1910 = vmatpush1.msra.mxu0 0.0
          %1911 = vmatprep.subr.mxu0 0.0
          %1912 = vmatpush1.msra.mxu0 0.0
          %1913 = vmatprep.subr.mxu0 0.0
          %1914 = vmatpush1.msra.mxu0 0.0
          %1915 = vmatprep.subr.mxu0 0.0
          %1916 = vmatpush1.msra.mxu0 0.0
          %1917 = vmatprep.subr.mxu0 0.0
          %1918 = vmatpush1.msra.mxu0 0.0
          %1919 = vmatprep.subr.mxu0 0.0
          %1920 = vmatpush1.msra.mxu0 0.0
          %1921 = vmatprep.subr.mxu0 0.0
          %1922 = vmatpush1.msra.mxu0 0.0
          %1923 = vmatprep.subr.mxu0 0.0
          %1924 = vmatpush1.msra.mxu0 0.0
          %1925 = vmatprep.subr.mxu0 0.0
          %1926 = vmatpush1.msra.mxu0 0.0
          %1927 = vmatprep.subr.mxu0 0.0
          %1928 = vmatpush1.msra.mxu0 0.0
          %1929 = vmatprep.subr.mxu0 0.0
          %1930 = vmatpush1.msra.mxu0 0.0
          %1931 = vmatprep.subr.mxu0 0.0
          %1932 = vmatpush1.msra.mxu0 0.0
          %1933 = vmatprep.subr.mxu0 0.0
          %1934 = vmatpush1.msra.mxu0 0.0
          %1935 = vmatprep.subr.mxu0 0.0
          %1936 = vmatpush1.msra.mxu0 0.0
          %1937 = vmatprep.subr.mxu0 0.0
          %1938 = vmatpush1.msra.mxu0 0.0
          %1939 = vmatprep.subr.mxu0 0.0
          %1940 = vmatpush1.msra.mxu0 0.0
          %1941 = vmatprep.subr.mxu0 0.0
          %1942 = vmatpush1.msra.mxu0 0.0
          %1943 = vmatprep.subr.mxu0 0.0
          %1944 = vmatpush1.msra.mxu0 0.0
          %1945 = vmatprep.subr.mxu0 0.0
          %1946 = vmatpush1.msra.mxu0 0.0
          %1947 = vmatprep.subr.mxu0 0.0
          %1948 = vmatpush1.msra.mxu0 0.0
          %1949 = vmatprep.subr.mxu0 0.0
          %1950 = vmatpush1.msra.mxu0 0.0
          %1951 = vmatprep.mubr.f32.mxu0 0.0
          %1952 = vmatmul.mubr.f32.gmra.mrb[0].mxu0 %v1885
          %v1953 = vpop.f32.mrb[0].mxu0
          %v1954 = vadd.f32 0.0, %v1953
          %v1955 = vpop.f32.mrb[0].mxu0
          %1956 = vdwg.mxu0
          %v1957 = vadd.f32 %v1470, %v1954
          %s1958 = scalar_lea.vmem %s2, 96
          %v1959 = vld [vmem:[%s1958] sm:$0xff]
          %v1960 = vld [vmem:[%s1958 + $0x8] sm:$0xff]
          %v1961 = vld [vmem:[%s1958 + $0x10] sm:$0xff]
          %v1962 = vld [vmem:[%s1958 + $0x18] sm:$0xff]
          %s1963 = scalar_lea.vmem %s2, 224
          %v1964 = vld [vmem:[%s1963] sm:$0xff]
          %v1965 = vld [vmem:[%s1963 + $0x8] sm:$0xff]
          %v1966 = vld [vmem:[%s1963 + $0x10] sm:$0xff]
          %v1967 = vld [vmem:[%s1963 + $0x18] sm:$0xff]
          %s1968 = scalar_lea.vmem %s2, 352
          %v1969 = vld [vmem:[%s1968] sm:$0xff]
          %v1970 = vld [vmem:[%s1968 + $0x8] sm:$0xff]
          %v1971 = vld [vmem:[%s1968 + $0x10] sm:$0xff]
          %v1972 = vld [vmem:[%s1968 + $0x18] sm:$0xff]
          %s1973 = scalar_lea.vmem %s3, 3
          %v1974 = vld [vmem:[%s1973] sm:$0x1]
          %s1975 = scalar_lea.vmem %s3, 7
          %v1976 = vld [vmem:[%s1975] sm:$0x1]
          %s1977 = scalar_lea.vmem %s3, 11
          %v1978 = vld [vmem:[%s1977] sm:$0x1]
          %v1980 = vlaneseq
          %v1981 = vshrl.u32 %v1980, 7
          %v1982 = vsub.s32 0, %v1981
          %v1983 = vrot.slane %v1974, %v1982
          %1985 = vmatprep.subr.mxu0 0.0
          %1986 = vmatpush1.msra.mxu0 %v1959
          %1987 = vmatprep.subr.mxu0 0.0
          %1988 = vmatpush1.msra.mxu0 %v1960
          %1989 = vmatprep.subr.mxu0 0.0
          %1990 = vmatpush1.msra.mxu0 %v1961
          %1991 = vmatprep.subr.mxu0 0.0
          %1992 = vmatpush1.msra.mxu0 %v1962
          %1993 = vmatprep.subr.mxu0 0.0
          %1994 = vmatpush1.msra.mxu0 0.0
          %1995 = vmatprep.subr.mxu0 0.0
          %1996 = vmatpush1.msra.mxu0 0.0
          %1997 = vmatprep.subr.mxu0 0.0
          %1998 = vmatpush1.msra.mxu0 0.0
          %1999 = vmatprep.subr.mxu0 0.0
          %2000 = vmatpush1.msra.mxu0 0.0
          %2001 = vmatprep.subr.mxu0 0.0
          %2002 = vmatpush1.msra.mxu0 0.0
          %2003 = vmatprep.subr.mxu0 0.0
          %2004 = vmatpush1.msra.mxu0 0.0
          %2005 = vmatprep.subr.mxu0 0.0
          %2006 = vmatpush1.msra.mxu0 0.0
          %2007 = vmatprep.subr.mxu0 0.0
          %2008 = vmatpush1.msra.mxu0 0.0
          %2009 = vmatprep.subr.mxu0 0.0
          %2010 = vmatpush1.msra.mxu0 0.0
          %2011 = vmatprep.subr.mxu0 0.0
          %2012 = vmatpush1.msra.mxu0 0.0
          %2013 = vmatprep.subr.mxu0 0.0
          %2014 = vmatpush1.msra.mxu0 0.0
          %2015 = vmatprep.subr.mxu0 0.0
          %2016 = vmatpush1.msra.mxu0 0.0
          %2017 = vmatprep.subr.mxu0 0.0
          %2018 = vmatpush1.msra.mxu0 0.0
          %2019 = vmatprep.subr.mxu0 0.0
          %2020 = vmatpush1.msra.mxu0 0.0
          %2021 = vmatprep.subr.mxu0 0.0
          %2022 = vmatpush1.msra.mxu0 0.0
          %2023 = vmatprep.subr.mxu0 0.0
          %2024 = vmatpush1.msra.mxu0 0.0
          %2025 = vmatprep.subr.mxu0 0.0
          %2026 = vmatpush1.msra.mxu0 0.0
          %2027 = vmatprep.subr.mxu0 0.0
          %2028 = vmatpush1.msra.mxu0 0.0
          %2029 = vmatprep.subr.mxu0 0.0
          %2030 = vmatpush1.msra.mxu0 0.0
          %2031 = vmatprep.subr.mxu0 0.0
          %2032 = vmatpush1.msra.mxu0 0.0
          %2033 = vmatprep.subr.mxu0 0.0
          %2034 = vmatpush1.msra.mxu0 0.0
          %2035 = vmatprep.subr.mxu0 0.0
          %2036 = vmatpush1.msra.mxu0 0.0
          %2037 = vmatprep.subr.mxu0 0.0
          %2038 = vmatpush1.msra.mxu0 0.0
          %2039 = vmatprep.subr.mxu0 0.0
          %2040 = vmatpush1.msra.mxu0 0.0
          %2041 = vmatprep.subr.mxu0 0.0
          %2042 = vmatpush1.msra.mxu0 0.0
          %2043 = vmatprep.subr.mxu0 0.0
          %2044 = vmatpush1.msra.mxu0 0.0
          %2045 = vmatprep.subr.mxu0 0.0
          %2046 = vmatpush1.msra.mxu0 0.0
          %2047 = vmatprep.subr.mxu0 0.0
          %2048 = vmatpush1.msra.mxu0 0.0
          %2049 = vmatprep.mubr.f32.mxu0 0.0
          %2050 = vmatmul.mubr.f32.gmra.mrb[0].mxu0 %v523
          %v2051 = vpop.f32.mrb[0].mxu0
          %v2052 = vadd.f32 %v1983, %v2051
          %v2053 = vpop.f32.mrb[0].mxu0
          %2054 = vdwg.mxu0
          %v2056 = vlaneseq
          %v2057 = vshrl.u32 %v2056, 7
          %v2058 = vsub.s32 0, %v2057
          %v2059 = vrot.slane %v1976, %v2058
          %2061 = vmatprep.subr.mxu0 0.0
          %2062 = vmatpush1.msra.mxu0 %v1964
          %2063 = vmatprep.subr.mxu0 0.0
          %2064 = vmatpush1.msra.mxu0 %v1965
          %2065 = vmatprep.subr.mxu0 0.0
          %2066 = vmatpush1.msra.mxu0 %v1966
          %2067 = vmatprep.subr.mxu0 0.0
          %2068 = vmatpush1.msra.mxu0 %v1967
          %2069 = vmatprep.subr.mxu0 0.0
          %2070 = vmatpush1.msra.mxu0 0.0
          %2071 = vmatprep.subr.mxu0 0.0
          %2072 = vmatpush1.msra.mxu0 0.0
          %2073 = vmatprep.subr.mxu0 0.0
          %2074 = vmatpush1.msra.mxu0 0.0
          %2075 = vmatprep.subr.mxu0 0.0
          %2076 = vmatpush1.msra.mxu0 0.0
          %2077 = vmatprep.subr.mxu0 0.0
          %2078 = vmatpush1.msra.mxu0 0.0
          %2079 = vmatprep.subr.mxu0 0.0
          %2080 = vmatpush1.msra.mxu0 0.0
          %2081 = vmatprep.subr.mxu0 0.0
          %2082 = vmatpush1.msra.mxu0 0.0
          %2083 = vmatprep.subr.mxu0 0.0
          %2084 = vmatpush1.msra.mxu0 0.0
          %2085 = vmatprep.subr.mxu0 0.0
          %2086 = vmatpush1.msra.mxu0 0.0
          %2087 = vmatprep.subr.mxu0 0.0
          %2088 = vmatpush1.msra.mxu0 0.0
          %2089 = vmatprep.subr.mxu0 0.0
          %2090 = vmatpush1.msra.mxu0 0.0
          %2091 = vmatprep.subr.mxu0 0.0
          %2092 = vmatpush1.msra.mxu0 0.0
          %2093 = vmatprep.subr.mxu0 0.0
          %2094 = vmatpush1.msra.mxu0 0.0
          %2095 = vmatprep.subr.mxu0 0.0
          %2096 = vmatpush1.msra.mxu0 0.0
          %2097 = vmatprep.subr.mxu0 0.0
          %2098 = vmatpush1.msra.mxu0 0.0
          %2099 = vmatprep.subr.mxu0 0.0
          %2100 = vmatpush1.msra.mxu0 0.0
          %2101 = vmatprep.subr.mxu0 0.0
          %2102 = vmatpush1.msra.mxu0 0.0
          %2103 = vmatprep.subr.mxu0 0.0
          %2104 = vmatpush1.msra.mxu0 0.0
          %2105 = vmatprep.subr.mxu0 0.0
          %2106 = vmatpush1.msra.mxu0 0.0
          %2107 = vmatprep.subr.mxu0 0.0
          %2108 = vmatpush1.msra.mxu0 0.0
          %2109 = vmatprep.subr.mxu0 0.0
          %2110 = vmatpush1.msra.mxu0 0.0
          %2111 = vmatprep.subr.mxu0 0.0
          %2112 = vmatpush1.msra.mxu0 0.0
          %2113 = vmatprep.subr.mxu0 0.0
          %2114 = vmatpush1.msra.mxu0 0.0
          %2115 = vmatprep.subr.mxu0 0.0
          %2116 = vmatpush1.msra.mxu0 0.0
          %2117 = vmatprep.subr.mxu0 0.0
          %2118 = vmatpush1.msra.mxu0 0.0
          %2119 = vmatprep.subr.mxu0 0.0
          %2120 = vmatpush1.msra.mxu0 0.0
          %2121 = vmatprep.subr.mxu0 0.0
          %2122 = vmatpush1.msra.mxu0 0.0
          %2123 = vmatprep.subr.mxu0 0.0
          %2124 = vmatpush1.msra.mxu0 0.0
          %2125 = vmatprep.mubr.f32.mxu0 0.0
          %2126 = vmatmul.mubr.f32.gmra.mrb[0].mxu0 %v523
          %v2127 = vpop.f32.mrb[0].mxu0
          %v2128 = vadd.f32 %v2059, %v2127
          %v2129 = vpop.f32.mrb[0].mxu0
          %2130 = vdwg.mxu0
          %v2132 = vlaneseq
          %v2133 = vshrl.u32 %v2132, 7
          %v2134 = vsub.s32 0, %v2133
          %v2135 = vrot.slane %v1978, %v2134
          %2137 = vmatprep.subr.mxu0 0.0
          %2138 = vmatpush1.msra.mxu0 %v1969
          %2139 = vmatprep.subr.mxu0 0.0
          %2140 = vmatpush1.msra.mxu0 %v1970
          %2141 = vmatprep.subr.mxu0 0.0
          %2142 = vmatpush1.msra.mxu0 %v1971
          %2143 = vmatprep.subr.mxu0 0.0
          %2144 = vmatpush1.msra.mxu0 %v1972
          %2145 = vmatprep.subr.mxu0 0.0
          %2146 = vmatpush1.msra.mxu0 0.0
          %2147 = vmatprep.subr.mxu0 0.0
          %2148 = vmatpush1.msra.mxu0 0.0
          %2149 = vmatprep.subr.mxu0 0.0
          %2150 = vmatpush1.msra.mxu0 0.0
          %2151 = vmatprep.subr.mxu0 0.0
          %2152 = vmatpush1.msra.mxu0 0.0
          %2153 = vmatprep.subr.mxu0 0.0
          %2154 = vmatpush1.msra.mxu0 0.0
          %2155 = vmatprep.subr.mxu0 0.0
          %2156 = vmatpush1.msra.mxu0 0.0
          %2157 = vmatprep.subr.mxu0 0.0
          %2158 = vmatpush1.msra.mxu0 0.0
          %2159 = vmatprep.subr.mxu0 0.0
          %2160 = vmatpush1.msra.mxu0 0.0
          %2161 = vmatprep.subr.mxu0 0.0
          %2162 = vmatpush1.msra.mxu0 0.0
          %2163 = vmatprep.subr.mxu0 0.0
          %2164 = vmatpush1.msra.mxu0 0.0
          %2165 = vmatprep.subr.mxu0 0.0
          %2166 = vmatpush1.msra.mxu0 0.0
          %2167 = vmatprep.subr.mxu0 0.0
          %2168 = vmatpush1.msra.mxu0 0.0
          %2169 = vmatprep.subr.mxu0 0.0
          %2170 = vmatpush1.msra.mxu0 0.0
          %2171 = vmatprep.subr.mxu0 0.0
          %2172 = vmatpush1.msra.mxu0 0.0
          %2173 = vmatprep.subr.mxu0 0.0
          %2174 = vmatpush1.msra.mxu0 0.0
          %2175 = vmatprep.subr.mxu0 0.0
          %2176 = vmatpush1.msra.mxu0 0.0
          %2177 = vmatprep.subr.mxu0 0.0
          %2178 = vmatpush1.msra.mxu0 0.0
          %2179 = vmatprep.subr.mxu0 0.0
          %2180 = vmatpush1.msra.mxu0 0.0
          %2181 = vmatprep.subr.mxu0 0.0
          %2182 = vmatpush1.msra.mxu0 0.0
          %2183 = vmatprep.subr.mxu0 0.0
          %2184 = vmatpush1.msra.mxu0 0.0
          %2185 = vmatprep.subr.mxu0 0.0
          %2186 = vmatpush1.msra.mxu0 0.0
          %2187 = vmatprep.subr.mxu0 0.0
          %2188 = vmatpush1.msra.mxu0 0.0
          %2189 = vmatprep.subr.mxu0 0.0
          %2190 = vmatpush1.msra.mxu0 0.0
          %2191 = vmatprep.subr.mxu0 0.0
          %2192 = vmatpush1.msra.mxu0 0.0
          %2193 = vmatprep.subr.mxu0 0.0
          %2194 = vmatpush1.msra.mxu0 0.0
          %2195 = vmatprep.subr.mxu0 0.0
          %2196 = vmatpush1.msra.mxu0 0.0
          %2197 = vmatprep.subr.mxu0 0.0
          %2198 = vmatpush1.msra.mxu0 0.0
          %2199 = vmatprep.subr.mxu0 0.0
          %2200 = vmatpush1.msra.mxu0 0.0
          %2201 = vmatprep.mubr.f32.mxu0 0.0
          %2202 = vmatmul.mubr.f32.gmra.mrb[0].mxu0 %v523
          %v2203 = vpop.f32.mrb[0].mxu0
          %v2204 = vadd.f32 %v2135, %v2203
          %v2205 = vpop.f32.mrb[0].mxu0
          %2206 = vdwg.mxu0
          %v2208 = vsel %vm747, %v2052, 0
          %v2211 = vsel %vm747, %v2128, 0
          %2213 = vmatprep.subr.mxu0 0.0
          %2214 = vmatpush1.xpose.msra.mxu0 %v2211
          %2215 = vmatprep.subr.mxu0 0.0
          %2216 = vmatpush1.xpose.msra.mxu0 0.0
          %2217 = vmatprep.subr.mxu0 0.0
          %2218 = vmatpush1.xpose.msra.mxu0 0.0
          %2219 = vmatprep.subr.mxu0 0.0
          %2220 = vmatpush1.xpose.msra.mxu0 0.0
          %2221 = vmatprep.subr.mxu0 0.0
          %2222 = vmatpush1.xpose.msra.mxu0 0.0
          %2223 = vmatprep.subr.mxu0 0.0
          %2224 = vmatpush1.xpose.msra.mxu0 0.0
          %2225 = vmatprep.subr.mxu0 0.0
          %2226 = vmatpush1.xpose.msra.mxu0 0.0
          %2227 = vmatprep.subr.mxu0 0.0
          %2228 = vmatpush1.xpose.msra.mxu0 0.0
          %2229 = vmatprep.subr.mxu0 0.0
          %2230 = vmatpush1.xpose.msra.mxu0 0.0
          %2231 = vmatprep.subr.mxu0 0.0
          %2232 = vmatpush1.xpose.msra.mxu0 0.0
          %2233 = vmatprep.subr.mxu0 0.0
          %2234 = vmatpush1.xpose.msra.mxu0 0.0
          %2235 = vmatprep.subr.mxu0 0.0
          %2236 = vmatpush1.xpose.msra.mxu0 0.0
          %2237 = vmatprep.subr.mxu0 0.0
          %2238 = vmatpush1.xpose.msra.mxu0 0.0
          %2239 = vmatprep.subr.mxu0 0.0
          %2240 = vmatpush1.xpose.msra.mxu0 0.0
          %2241 = vmatprep.subr.mxu0 0.0
          %2242 = vmatpush1.xpose.msra.mxu0 0.0
          %2243 = vmatprep.subr.mxu0 0.0
          %2244 = vmatpush1.xpose.msra.mxu0 0.0
          %2245 = vmatprep.subr.mxu0 0.0
          %2246 = vmatpush1.xpose.msra.mxu0 0.0
          %2247 = vmatprep.subr.mxu0 0.0
          %2248 = vmatpush1.xpose.msra.mxu0 0.0
          %2249 = vmatprep.subr.mxu0 0.0
          %2250 = vmatpush1.xpose.msra.mxu0 0.0
          %2251 = vmatprep.subr.mxu0 0.0
          %2252 = vmatpush1.xpose.msra.mxu0 0.0
          %2253 = vmatprep.subr.mxu0 0.0
          %2254 = vmatpush1.xpose.msra.mxu0 0.0
          %2255 = vmatprep.subr.mxu0 0.0
          %2256 = vmatpush1.xpose.msra.mxu0 0.0
          %2257 = vmatprep.subr.mxu0 0.0
          %2258 = vmatpush1.xpose.msra.mxu0 0.0
          %2259 = vmatprep.subr.mxu0 0.0
          %2260 = vmatpush1.xpose.msra.mxu0 0.0
          %2261 = vmatprep.subr.mxu0 0.0
          %2262 = vmatpush1.xpose.msra.mxu0 0.0
          %2263 = vmatprep.subr.mxu0 0.0
          %2264 = vmatpush1.xpose.msra.mxu0 0.0
          %2265 = vmatprep.subr.mxu0 0.0
          %2266 = vmatpush1.xpose.msra.mxu0 0.0
          %2267 = vmatprep.subr.mxu0 0.0
          %2268 = vmatpush1.xpose.msra.mxu0 0.0
          %2269 = vmatprep.subr.mxu0 0.0
          %2270 = vmatpush1.xpose.msra.mxu0 0.0
          %2271 = vmatprep.subr.mxu0 0.0
          %2272 = vmatpush1.xpose.msra.mxu0 0.0
          %2273 = vmatprep.subr.mxu0 0.0
          %2274 = vmatpush1.xpose.msra.mxu0 0.0
          %2275 = vmatprep.subr.mxu0 0.0
          %2276 = vmatpush1.xpose.msra.mxu0 0.0
          %2277 = vmatprep.mubr.f32.mxu0 0.0
          %2278 = vmatmul.mubr.f32.gmra.mrb[0].mxu0 %v2208
          %v2279 = vpop.f32.mrb[0].mxu0
          %v2280 = vadd.f32 0.0, %v2279
          %v2281 = vpop.f32.mrb[0].mxu0
          %2282 = vdwg.mxu0
          %v2283 = vmul.f32 %v2280, 0.35355338
          %v2284 = vadd.f32 %v2283, %v829
          %v2285 = vsel %vm747, %v2284, -inf
          %2286 = vmax.xlane.f32.xlu0 %v2285
          %v2287 = vpop.xlane.xlu0 %2286
          %v2288 = vsub.f32 %v2284, %v2287
          %v2289 = vmul.f32 %v2288, 1.442695
          %v2290 = vpow.pop %v2289
          %v2291 = vsel %vm747, %v2290, 0.0
          %2292 = vadd.xlane.f32.xlu0 %v2291
          %v2293 = vpop.xlane.xlu0 %2292
          %v2294 = vrcp.pop %v2293
          %v2295 = vmul.f32 %v2290, %v2294
          %v2297 = vsel %vm747, %v2295, 0
          %2299 = vmatprep.subr.mxu0 0.0
          %2300 = vmatpush1.msra.mxu0 %v2204
          %2301 = vmatprep.subr.mxu0 0.0
          %2302 = vmatpush1.msra.mxu0 0.0
          %2303 = vmatprep.subr.mxu0 0.0
          %2304 = vmatpush1.msra.mxu0 0.0
          %2305 = vmatprep.subr.mxu0 0.0
          %2306 = vmatpush1.msra.mxu0 0.0
          %2307 = vmatprep.subr.mxu0 0.0
          %2308 = vmatpush1.msra.mxu0 0.0
          %2309 = vmatprep.subr.mxu0 0.0
          %2310 = vmatpush1.msra.mxu0 0.0
          %2311 = vmatprep.subr.mxu0 0.0
          %2312 = vmatpush1.msra.mxu0 0.0
          %2313 = vmatprep.subr.mxu0 0.0
          %2314 = vmatpush1.msra.mxu0 0.0
          %2315 = vmatprep.subr.mxu0 0.0
          %2316 = vmatpush1.msra.mxu0 0.0
          %2317 = vmatprep.subr.mxu0 0.0
          %2318 = vmatpush1.msra.mxu0 0.0
          %2319 = vmatprep.subr.mxu0 0.0
          %2320 = vmatpush1.msra.mxu0 0.0
          %2321 = vmatprep.subr.mxu0 0.0
          %2322 = vmatpush1.msra.mxu0 0.0
          %2323 = vmatprep.subr.mxu0 0.0
          %2324 = vmatpush1.msra.mxu0 0.0
          %2325 = vmatprep.subr.mxu0 0.0
          %2326 = vmatpush1.msra.mxu0 0.0
          %2327 = vmatprep.subr.mxu0 0.0
          %2328 = vmatpush1.msra.mxu0 0.0
          %2329 = vmatprep.subr.mxu0 0.0
          %2330 = vmatpush1.msra.mxu0 0.0
          %2331 = vmatprep.subr.mxu0 0.0
          %2332 = vmatpush1.msra.mxu0 0.0
          %2333 = vmatprep.subr.mxu0 0.0
          %2334 = vmatpush1.msra.mxu0 0.0
          %2335 = vmatprep.subr.mxu0 0.0
          %2336 = vmatpush1.msra.mxu0 0.0
          %2337 = vmatprep.subr.mxu0 0.0
          %2338 = vmatpush1.msra.mxu0 0.0
          %2339 = vmatprep.subr.mxu0 0.0
          %2340 = vmatpush1.msra.mxu0 0.0
          %2341 = vmatprep.subr.mxu0 0.0
          %2342 = vmatpush1.msra.mxu0 0.0
          %2343 = vmatprep.subr.mxu0 0.0
          %2344 = vmatpush1.msra.mxu0 0.0
          %2345 = vmatprep.subr.mxu0 0.0
          %2346 = vmatpush1.msra.mxu0 0.0
          %2347 = vmatprep.subr.mxu0 0.0
          %2348 = vmatpush1.msra.mxu0 0.0
          %2349 = vmatprep.subr.mxu0 0.0
          %2350 = vmatpush1.msra.mxu0 0.0
          %2351 = vmatprep.subr.mxu0 0.0
          %2352 = vmatpush1.msra.mxu0 0.0
          %2353 = vmatprep.subr.mxu0 0.0
          %2354 = vmatpush1.msra.mxu0 0.0
          %2355 = vmatprep.subr.mxu0 0.0
          %2356 = vmatpush1.msra.mxu0 0.0
          %2357 = vmatprep.subr.mxu0 0.0
          %2358 = vmatpush1.msra.mxu0 0.0
          %2359 = vmatprep.subr.mxu0 0.0
          %2360 = vmatpush1.msra.mxu0 0.0
          %2361 = vmatprep.subr.mxu0 0.0
          %2362 = vmatpush1.msra.mxu0 0.0
          %2363 = vmatprep.mubr.f32.mxu0 0.0
          %2364 = vmatmul.mubr.f32.gmra.mrb[0].mxu0 %v2297
          %v2365 = vpop.f32.mrb[0].mxu0
          %v2366 = vadd.f32 0.0, %v2365
          %v2367 = vpop.f32.mrb[0].mxu0
          %2368 = vdwg.mxu0
          %v2370 = vsel %vm747, %v2366, 0
          %2372 = vmatprep.subr.mxu0 0.0
          %2373 = vmatpush1.msra.mxu0 %v428
          %2374 = vmatprep.subr.mxu0 0.0
          %2375 = vmatpush1.msra.mxu0 0.0
          %2376 = vmatprep.subr.mxu0 0.0
          %2377 = vmatpush1.msra.mxu0 0.0
          %2378 = vmatprep.subr.mxu0 0.0
          %2379 = vmatpush1.msra.mxu0 0.0
          %2380 = vmatprep.subr.mxu0 0.0
          %2381 = vmatpush1.msra.mxu0 0.0
          %2382 = vmatprep.subr.mxu0 0.0
          %2383 = vmatpush1.msra.mxu0 0.0
          %2384 = vmatprep.subr.mxu0 0.0
          %2385 = vmatpush1.msra.mxu0 0.0
          %2386 = vmatprep.subr.mxu0 0.0
          %2387 = vmatpush1.msra.mxu0 0.0
          %2388 = vmatprep.subr.mxu0 0.0
          %2389 = vmatpush1.msra.mxu0 0.0
          %2390 = vmatprep.subr.mxu0 0.0
          %2391 = vmatpush1.msra.mxu0 0.0
          %2392 = vmatprep.subr.mxu0 0.0
          %2393 = vmatpush1.msra.mxu0 0.0
          %2394 = vmatprep.subr.mxu0 0.0
          %2395 = vmatpush1.msra.mxu0 0.0
          %2396 = vmatprep.subr.mxu0 0.0
          %2397 = vmatpush1.msra.mxu0 0.0
          %2398 = vmatprep.subr.mxu0 0.0
          %2399 = vmatpush1.msra.mxu0 0.0
          %2400 = vmatprep.subr.mxu0 0.0
          %2401 = vmatpush1.msra.mxu0 0.0
          %2402 = vmatprep.subr.mxu0 0.0
          %2403 = vmatpush1.msra.mxu0 0.0
          %2404 = vmatprep.subr.mxu0 0.0
          %2405 = vmatpush1.msra.mxu0 0.0
          %2406 = vmatprep.subr.mxu0 0.0
          %2407 = vmatpush1.msra.mxu0 0.0
          %2408 = vmatprep.subr.mxu0 0.0
          %2409 = vmatpush1.msra.mxu0 0.0
          %2410 = vmatprep.subr.mxu0 0.0
          %2411 = vmatpush1.msra.mxu0 0.0
          %2412 = vmatprep.subr.mxu0 0.0
          %2413 = vmatpush1.msra.mxu0 0.0
          %2414 = vmatprep.subr.mxu0 0.0
          %2415 = vmatpush1.msra.mxu0 0.0
          %2416 = vmatprep.subr.mxu0 0.0
          %2417 = vmatpush1.msra.mxu0 0.0
          %2418 = vmatprep.subr.mxu0 0.0
          %2419 = vmatpush1.msra.mxu0 0.0
          %2420 = vmatprep.subr.mxu0 0.0
          %2421 = vmatpush1.msra.mxu0 0.0
          %2422 = vmatprep.subr.mxu0 0.0
          %2423 = vmatpush1.msra.mxu0 0.0
          %2424 = vmatprep.subr.mxu0 0.0
          %2425 = vmatpush1.msra.mxu0 0.0
          %2426 = vmatprep.subr.mxu0 0.0
          %2427 = vmatpush1.msra.mxu0 0.0
          %2428 = vmatprep.subr.mxu0 0.0
          %2429 = vmatpush1.msra.mxu0 0.0
          %2430 = vmatprep.subr.mxu0 0.0
          %2431 = vmatpush1.msra.mxu0 0.0
          %2432 = vmatprep.subr.mxu0 0.0
          %2433 = vmatpush1.msra.mxu0 0.0
          %2434 = vmatprep.subr.mxu0 0.0
          %2435 = vmatpush1.msra.mxu0 0.0
          %2436 = vmatprep.mubr.f32.mxu0 0.0
          %2437 = vmatmul.mubr.f32.gmra.mrb[0].mxu0 %v2370
          %v2438 = vpop.f32.mrb[0].mxu0
          %v2439 = vadd.f32 0.0, %v2438
          %v2440 = vpop.f32.mrb[0].mxu0
          %2441 = vdwg.mxu0
          %v2442 = vadd.f32 %v1957, %v2439
          %v2443 = vadd.f32 %v460, %v2442
          %v2445 = vlaneseq
          %v2446 = vshrl.u32 %v2445, 7
          %v2447 = vsub.s32 0, %v2446
          %v2448 = vrot.slane %v429, %v2447
          %v2450 = vadd.f32 %v2443, %v2448
          %v2451 = vsel %vm461, %v2450, 0.0
          %2452 = vadd.xlane.f32.xlu0 %v2451
          %v2453 = vpop.xlane.xlu0 %2452
          %v2454 = vmul.f32 %v2453, %v465
          %v2455 = vsub.f32 %v2450, %v2454
          %v2456 = vmul.f32 %v2455, %v2455
          %v2457 = vsel %vm461, %v2456, 0.0
          %2458 = vadd.xlane.f32.xlu0 %v2457
          %v2459 = vpop.xlane.xlu0 %2458
          %v2460 = vmul.f32 %v2459, 0.032258064
          %v2461 = vrsqrt.pop %v2460
          %v2462 = vmul.f32 %v2460, %v2461
          %vm2463 = vcmp.eq.f32.partialorder %v2460, inf
          %v2464 = vsel %vm2463, %v2460, %v2462
          %vm2465 = vcmp.eq.f32.partialorder %v2460, 0.0
          %v2466 = vand.u32 %v2460, 2147483648
          %v2467 = vsel %vm2465, %v2466, %v2464
          %v2468 = vadd.f32 %v2467, 1e-06
          %v2469 = vrcp.pop %v2468
          %v2471 = vlaneseq
          %v2472 = vshrl.u32 %v2471, 7
          %v2473 = vsub.s32 0, %v2472
          %v2474 = vrot.slane %v447, %v2473
          %v2476 = vmul.f32 %v2474, %v2455
          %v2477 = vmul.f32 %v2476, %v2469
          %v2479 = vlaneseq
          %v2480 = vshrl.u32 %v2479, 7
          %v2481 = vsub.s32 0, %v2480
          %v2482 = vrot.slane %v449, %v2481
          %v2484 = vadd.f32 %v2477, %v2482
          %v2486 = vlaneseq
          %v2487 = vshrl.u32 %v2486, 7
          %v2488 = vsub.s32 0, %v2487
          %v2489 = vrot.slane %v434, %v2488
          %v2492 = vsel %vm461, %v2484, 0
          %2494 = vmatprep.subr.mxu0 0.0
          %2495 = vmatpush1.msra.mxu0 %v430
          %2496 = vmatprep.subr.mxu0 0.0
          %2497 = vmatpush1.msra.mxu0 %v431
          %2498 = vmatprep.subr.mxu0 0.0
          %2499 = vmatpush1.msra.mxu0 %v432
          %2500 = vmatprep.subr.mxu0 0.0
          %2501 = vmatpush1.msra.mxu0 %v433
          %2502 = vmatprep.subr.mxu0 0.0
          %2503 = vmatpush1.msra.mxu0 0.0
          %2504 = vmatprep.subr.mxu0 0.0
          %2505 = vmatpush1.msra.mxu0 0.0
          %2506 = vmatprep.subr.mxu0 0.0
          %2507 = vmatpush1.msra.mxu0 0.0
          %2508 = vmatprep.subr.mxu0 0.0
          %2509 = vmatpush1.msra.mxu0 0.0
          %2510 = vmatprep.subr.mxu0 0.0
          %2511 = vmatpush1.msra.mxu0 0.0
          %2512 = vmatprep.subr.mxu0 0.0
          %2513 = vmatpush1.msra.mxu0 0.0
          %2514 = vmatprep.subr.mxu0 0.0
          %2515 = vmatpush1.msra.mxu0 0.0
          %2516 = vmatprep.subr.mxu0 0.0
          %2517 = vmatpush1.msra.mxu0 0.0
          %2518 = vmatprep.subr.mxu0 0.0
          %2519 = vmatpush1.msra.mxu0 0.0
          %2520 = vmatprep.subr.mxu0 0.0
          %2521 = vmatpush1.msra.mxu0 0.0
          %2522 = vmatprep.subr.mxu0 0.0
          %2523 = vmatpush1.msra.mxu0 0.0
          %2524 = vmatprep.subr.mxu0 0.0
          %2525 = vmatpush1.msra.mxu0 0.0
          %2526 = vmatprep.subr.mxu0 0.0
          %2527 = vmatpush1.msra.mxu0 0.0
          %2528 = vmatprep.subr.mxu0 0.0
          %2529 = vmatpush1.msra.mxu0 0.0
          %2530 = vmatprep.subr.mxu0 0.0
          %2531 = vmatpush1.msra.mxu0 0.0
          %2532 = vmatprep.subr.mxu0 0.0
          %2533 = vmatpush1.msra.mxu0 0.0
          %2534 = vmatprep.subr.mxu0 0.0
          %2535 = vmatpush1.msra.mxu0 0.0
          %2536 = vmatprep.subr.mxu0 0.0
          %2537 = vmatpush1.msra.mxu0 0.0
          %2538 = vmatprep.subr.mxu0 0.0
          %2539 = vmatpush1.msra.mxu0 0.0
          %2540 = vmatprep.subr.mxu0 0.0
          %2541 = vmatpush1.msra.mxu0 0.0
          %2542 = vmatprep.subr.mxu0 0.0
          %2543 = vmatpush1.msra.mxu0 0.0
          %2544 = vmatprep.subr.mxu0 0.0
          %2545 = vmatpush1.msra.mxu0 0.0
          %2546 = vmatprep.subr.mxu0 0.0
          %2547 = vmatpush1.msra.mxu0 0.0
          %2548 = vmatprep.subr.mxu0 0.0
          %2549 = vmatpush1.msra.mxu0 0.0
          %2550 = vmatprep.subr.mxu0 0.0
          %2551 = vmatpush1.msra.mxu0 0.0
          %2552 = vmatprep.subr.mxu0 0.0
          %2553 = vmatpush1.msra.mxu0 0.0
          %2554 = vmatprep.subr.mxu0 0.0
          %2555 = vmatpush1.msra.mxu0 0.0
          %2556 = vmatprep.subr.mxu0 0.0
          %2557 = vmatpush1.msra.mxu0 0.0
          %2558 = vmatprep.mubr.f32.mxu0 0.0
          %2559 = vmatmul.mubr.f32.gmra.mrb[0].mxu0 %v2492
          %v2560 = vpop.f32.mrb[0].mxu0
          %v2561 = vadd.f32 %v2489, %v2560
          %v2562 = vpop.f32.mrb[0].mxu0
          %2563 = vdwg.mxu0
          %v2564 = vmax.f32 %v2561, 0.0
          %v2566 = vlaneseq
          %v2567 = vshrl.u32 %v2566, 7
          %v2568 = vsub.s32 0, %v2567
          %v2569 = vrot.slane %v443, %v2568
          %vm2571 = vcmask 523264
          %v2573 = vsel %vm2571, %v2564, 0
          %2575 = vmatprep.subr.mxu0 0.0
          %2576 = vmatpush1.msra.mxu0 %v435
          %2577 = vmatprep.subr.mxu0 0.0
          %2578 = vmatpush1.msra.mxu0 %v436
          %2579 = vmatprep.subr.mxu0 0.0
          %2580 = vmatpush1.msra.mxu0 %v437
          %2581 = vmatprep.subr.mxu0 0.0
          %2582 = vmatpush1.msra.mxu0 %v438
          %2583 = vmatprep.subr.mxu0 0.0
          %2584 = vmatpush1.msra.mxu0 %v439
          %2585 = vmatprep.subr.mxu0 0.0
          %2586 = vmatpush1.msra.mxu0 %v440
          %2587 = vmatprep.subr.mxu0 0.0
          %2588 = vmatpush1.msra.mxu0 %v441
          %2589 = vmatprep.subr.mxu0 0.0
          %2590 = vmatpush1.msra.mxu0 %v442
          %2591 = vmatprep.subr.mxu0 0.0
          %2592 = vmatpush1.msra.mxu0 0.0
          %2593 = vmatprep.subr.mxu0 0.0
          %2594 = vmatpush1.msra.mxu0 0.0
          %2595 = vmatprep.subr.mxu0 0.0
          %2596 = vmatpush1.msra.mxu0 0.0
          %2597 = vmatprep.subr.mxu0 0.0
          %2598 = vmatpush1.msra.mxu0 0.0
          %2599 = vmatprep.subr.mxu0 0.0
          %2600 = vmatpush1.msra.mxu0 0.0
          %2601 = vmatprep.subr.mxu0 0.0
          %2602 = vmatpush1.msra.mxu0 0.0
          %2603 = vmatprep.subr.mxu0 0.0
          %2604 = vmatpush1.msra.mxu0 0.0
          %2605 = vmatprep.subr.mxu0 0.0
          %2606 = vmatpush1.msra.mxu0 0.0
          %2607 = vmatprep.subr.mxu0 0.0
          %2608 = vmatpush1.msra.mxu0 0.0
          %2609 = vmatprep.subr.mxu0 0.0
          %2610 = vmatpush1.msra.mxu0 0.0
          %2611 = vmatprep.subr.mxu0 0.0
          %2612 = vmatpush1.msra.mxu0 0.0
          %2613 = vmatprep.subr.mxu0 0.0
          %2614 = vmatpush1.msra.mxu0 0.0
          %2615 = vmatprep.subr.mxu0 0.0
          %2616 = vmatpush1.msra.mxu0 0.0
          %2617 = vmatprep.subr.mxu0 0.0
          %2618 = vmatpush1.msra.mxu0 0.0
          %2619 = vmatprep.subr.mxu0 0.0
          %2620 = vmatpush1.msra.mxu0 0.0
          %2621 = vmatprep.subr.mxu0 0.0
          %2622 = vmatpush1.msra.mxu0 0.0
          %2623 = vmatprep.subr.mxu0 0.0
          %2624 = vmatpush1.msra.mxu0 0.0
          %2625 = vmatprep.subr.mxu0 0.0
          %2626 = vmatpush1.msra.mxu0 0.0
          %2627 = vmatprep.subr.mxu0 0.0
          %2628 = vmatpush1.msra.mxu0 0.0
          %2629 = vmatprep.subr.mxu0 0.0
          %2630 = vmatpush1.msra.mxu0 0.0
          %2631 = vmatprep.subr.mxu0 0.0
          %2632 = vmatpush1.msra.mxu0 0.0
          %2633 = vmatprep.subr.mxu0 0.0
          %2634 = vmatpush1.msra.mxu0 0.0
          %2635 = vmatprep.subr.mxu0 0.0
          %2636 = vmatpush1.msra.mxu0 0.0
          %2637 = vmatprep.subr.mxu0 0.0
          %2638 = vmatpush1.msra.mxu0 0.0
          %2639 = vmatprep.mubr.f32.mxu0 0.0
          %2640 = vmatmul.mubr.f32.gmra.mrb[0].mxu0 %v2573
          %v2641 = vpop.f32.mrb[0].mxu0
          %v2642 = vadd.f32 %v2569, %v2641
          %v2643 = vpop.f32.mrb[0].mxu0
          %2644 = vdwg.mxu0
          %v2645 = vadd.f32 %v2450, %v2642
        $region73: #{encoder_forward.1} parent=67 // loop_footer
          %s459 = sadd.s32 1, %s455
        $region74: #{encoder_forward.1} parent=67 // loop_footer_branch
          %454 = sbr.rel target = $region70
        $region75: #{encoder_forward.1} parent=67 // loop_exit
          _
        %vm2646 = vcmask 261120
        %v2647 = vsel %vm2646, %v460, 0.0
        %2648 = vadd.xlane.f32.xlu0 %v2647
        %v2649 = vpop.xlane.xlu0 %2648
        %v2650 = vrcp.pop 32.0
        %v2651 = vmul.f32 %v2649, %v2650
        %v2652 = vsub.f32 %v460, %v2651
        %v2653 = vmul.f32 %v2652, %v2652
        %v2654 = vsel %vm2646, %v2653, 0.0
        %2655 = vadd.xlane.f32.xlu0 %v2654
        %v2656 = vpop.xlane.xlu0 %2655
        %v2657 = vmul.f32 %v2656, 0.032258064
        %v2658 = vrsqrt.pop %v2657
        %v2659 = vmul.f32 %v2657, %v2658
        %vm2660 = vcmp.eq.f32.partialorder %v2657, inf
        %v2661 = vsel %vm2660, %v2657, %v2659
        %vm2662 = vcmp.eq.f32.partialorder %v2657, 0.0
        %v2663 = vand.u32 %v2657, 2147483648
        %v2664 = vsel %vm2662, %v2663, %v2661
        %v2665 = vadd.f32 %v2664, 1e-06
        %v2666 = vrcp.pop %v2665
        %v2668 = vlaneseq
        %v2669 = vshrl.u32 %v2668, 7
        %v2670 = vsub.s32 0, %v2669
        %v2671 = vrot.slane %v451, %v2670
        %v2673 = vmul.f32 %v2671, %v2652
        %v2674 = vmul.f32 %v2673, %v2666
        %v2676 = vlaneseq
        %v2677 = vshrl.u32 %v2676, 7
        %v2678 = vsub.s32 0, %v2677
        %v2679 = vrot.slane %v453, %v2678
        %v2681 = vadd.f32 %v2674, %v2679
        %2682 = vst.msk [vmem:[%s415] sm:$0xff] %vm2646, %v2681
        %s2683 = sand.u32 %s296, 1
        %s2684 = scalar_lea.sflag [#allocation3], %s2683
        %s2685 = sand.u32 %s296, 1
        %s2686 = smul.addr %s2685, 8
        %s2687 = scalar_lea.vmem [#allocation2], %s2686
        // Predicated region
        $region76: #{encoder_forward.1} parent=67 // pred_check
          %p2688 = pneg %p306
        $region77: #{encoder_forward.1} parent=67 // pred_check_branch
          %2690 = sbr.rel (%p2688) target = $region79
        $region78: #{encoder_forward.1} parent=67 // pred_region
          %s2692 = ssub.s32 128, 128
          %2693 = vsyncadd %s2684, %s2692
          %s2694 = smul.addr %s26, 128
          %s2695 = scalar_lea.hbm %s12, %s2694
          %s2697 = sshll.u32 %s2687, 4
          %s2698 = int_to_ptr.vmem [resolvable:$true] %s2697
          %2700 = dma.vmem_to_hbm [thread:$0]  %s2698, 128, %s2695, %s2684
        $region79: #{encoder_forward.1} parent=67 // pred_fallthru
          _
      $region68: #{encoder_forward.1} parent=5 // pred_fallthru
        _
      %p2701 = scmp.le.s32.totalorder 2, %s21
      // Predicated region
      $region80: #{encoder_forward.1} parent=5 // pred_check
        %p2702 = pneg %p2701
      $region81: #{encoder_forward.1} parent=5 // pred_check_branch
        %2704 = sbr.rel (%p2702) target = $region83
      $region82: #{encoder_forward.1} parent=5 // pred_region
        %s2705 = ssub.s32 %s21, 2
        // Predicated region
        $region84: #{encoder_forward.1} parent=82 // pred_check
          %p2706 = pneg %p312
        $region85: #{encoder_forward.1} parent=82 // pred_check_branch
          %2708 = sbr.rel (%p2706) target = $region87
        $region86: #{encoder_forward.1} parent=82 // pred_region
          %s2709 = sand.u32 %s297, 1
          %s2710 = scalar_lea.sflag [#allocation3], %s2709
          %s2711 = sand.u32 %s297, 1
          %s2712 = smul.addr %s2711, 8
          %s2713 = scalar_lea.vmem [#allocation2], %s2712
          %2714 = dma.done %s2710, 128
        $region87: #{encoder_forward.1} parent=82 // pred_fallthru
          _
      $region83: #{encoder_forward.1} parent=5 // pred_fallthru
        _
    $region6: #{encoder_forward.1} parent=1 // loop_footer
      %s25 = sadd.s32 1, %s21
    $region7: #{encoder_forward.1} parent=1 // loop_footer_branch
      %20 = sbr.rel target = $region3
    $region8: #{encoder_forward.1} parent=1 // loop_exit
      _
    %2715 = vsyncpa [#allocation3], 1
    %s2716 = scalar_lea.sflag [#allocation3], 1
    %2717 = vsyncpa %s2716, 1

</llo_original>
